<compile_context>
chip_gen: v6e
topology: v6e:2x2x1
jax: 0.10.0
libtpu: 0.0.40
codegen_flags: <defaults>
</compile_context>

<pallas_src>
import functools
import math

import jax
import jax.numpy as jnp
from jax.experimental import pallas as pl
from jax.experimental.pallas import tpu as pltpu


def pma_kernel(q_ref, x_ref,
               wkT_ref, bk_ref, wvT_ref, bv_ref, woT_ref, bo_ref,
               o_ref, *, num_heads):
    """One block of batch elements per grid step.

    q_ref  : (num_seeds, dim)   precomputed fc_q(S), batch-invariant, UNscaled
    x_ref  : (Bblk, N, dim)     input set block
    wkT_ref: (dim, dim)         Wk.T * (1/sqrt(dim_V))   (scale folded into K)
    bk_ref : (1, dim)           bk   * (1/sqrt(dim_V))
    wvT_ref: (dim, dim)         Wv.T      ;  bv_ref: (1, dim)
    woT_ref: (dim, dim)         Wo.T      ;  bo_ref: (1, dim)
    o_ref  : (Bblk, num_seeds, dim)
    """
    bb, n, dim = x_ref.shape
    ns = q_ref.shape[0]
    ds = dim // num_heads

    # --- K/V projections as big lane-dense 2-D MXU matmuls ------------------
    x2 = x_ref[...].reshape(bb * n, dim)                       # (Bblk*N, dim)
    k = jnp.dot(x2, wkT_ref[...], preferred_element_type=jnp.float32)
    k = k + bk_ref[...].astype(jnp.float32)                    # scaled K
    v = jnp.dot(x2, wvT_ref[...], preferred_element_type=jnp.float32)
    v = v + bv_ref[...].astype(jnp.float32)
    k3 = k.reshape(bb, n, dim)
    v3 = v.reshape(bb, n, dim)

    # Broadcast the shared Q once (hoisted out of the head loop; JAX does not
    # CSE broadcast_in_dim, so doing this per head would replicate it).
    q = q_ref[...].astype(jnp.float32)                         # (ns, dim)
    qb = jnp.broadcast_to(q[None], (bb, ns, dim))              # (Bblk, ns, dim)

    # --- per-head attention over the whole batch block ----------------------
    head_outs = []
    for h in range(num_heads):                                 # static, small
        lo, hi = h * ds, (h + 1) * ds
        qh = qb[:, :, lo:hi]                                   # (Bblk, ns, ds)
        kh = k3[:, :, lo:hi]                                   # (Bblk, N,  ds)
        vh = v3[:, :, lo:hi]

        # K already carries the 1/sqrt(dim_V) scale -> no extra VPU multiply.
        logits = jnp.einsum('bsd,bnd->bsn', qh, kh,
                            preferred_element_type=jnp.float32)
        m = jnp.max(logits, axis=-1, keepdims=True)
        p = jnp.exp(logits - m)
        denom = jnp.sum(p, axis=-1, keepdims=True)
        a = p * pl.reciprocal(denom, approx=True)              # EUP reciprocal
        av = jnp.einsum('bsn,bnd->bsd', a, vh,
                        preferred_element_type=jnp.float32)
        head_outs.append(qh + av)                              # residual: unscaled Q

    o3 = jnp.concatenate(head_outs, axis=-1)                   # (Bblk, ns, dim)

    # --- O = O + relu(fc_o(O)), flattened so the matmul M-dim is Bblk*ns ----
    o2 = o3.reshape(bb * ns, dim)
    fc = jnp.dot(o2, woT_ref[...], preferred_element_type=jnp.float32)
    fc = fc + bo_ref[...].astype(jnp.float32)
    o2 = o2 + jnp.maximum(fc, 0.0)

    o_ref[...] = o2.reshape(bb, ns, dim).astype(o_ref.dtype)


def _pick_batch_block(batch, set_size, dim, itemsize=4):
    """Largest divisor of `batch` such that:
      * the projection slab has ~>=128 rows (good MXU M-dim) but stays small,
      * the double-buffered X block stays well under the VMEM budget,
      * at least 2 grid steps remain when possible (megacore / 2-TC chips)."""
    cap = max(1, 256 // max(set_size, 1))                      # ~256 rows per step
    # VMEM guard: X block is double-buffered by the pipeline.
    vmem_budget = 8 * 1024 * 1024
    per_elem = 2 * set_size * dim * itemsize
    cap = min(cap, max(1, vmem_budget // max(per_elem, 1)))
    if batch >= 2:
        cap = min(cap, max(1, batch // 2))                     # keep >=2 grid steps
    bb = 1
    for d in range(1, batch + 1):
        if batch % d == 0 and d <= cap:
            bb = d
    return bb


def pma_forward(x, params, *, num_heads, batch_block=None):
    """x: (B, N, dim). params: dict of S, Wq, bq, Wk, bk, Wv, bv, Wo, bo."""
    B, N, dim = x.shape
    assert dim % num_heads == 0, "dim must be divisible by num_heads"
    S = params["S"]                                            # (1, num_seeds, dim)
    num_seeds = S.shape[1]
    bb = batch_block if batch_block is not None else _pick_batch_block(
        B, N, dim, jnp.dtype(x.dtype).itemsize)
    assert B % bb == 0

    scale = 1.0 / math.sqrt(dim)   # 1/sqrt(dim_V), matches the PyTorch module.

    # Hoist all batch-invariant work out of the kernel (done once, wrapper-side):
    q0 = jnp.dot(S[0], params["Wq"].T) + params["bq"]          # (num_seeds, dim)
    wkT = params["Wk"].T * scale                               # scale folded into K
    bk = params["bk"] * scale
    wvT = params["Wv"].T
    woT = params["Wo"].T

    def fullspec(shape):
        nd = len(shape)
        # Constant block index across the grid -> Pallas keeps these resident.
        return pl.BlockSpec(shape, lambda b, nd=nd: (0,) * nd)

    in_specs = [
        fullspec((num_seeds, dim)),                            # Q (shared)
        pl.BlockSpec((bb, N, dim), lambda b: (b, 0, 0)),       # X block
        fullspec((dim, dim)), fullspec((1, dim)),              # WkT*scale, bk*scale
        fullspec((dim, dim)), fullspec((1, dim)),              # WvT, bv
        fullspec((dim, dim)), fullspec((1, dim)),              # WoT, bo
    ]
    out_spec = pl.BlockSpec((bb, num_seeds, dim), lambda b: (b, 0, 0))

    kernel = functools.partial(pma_kernel, num_heads=num_heads)

    return pl.pallas_call(
        kernel,
        out_shape=jax.ShapeDtypeStruct((B, num_seeds, dim), x.dtype),
        grid_spec=pltpu.PrefetchScalarGridSpec(
            num_scalar_prefetch=0,
            grid=(B // bb,),
            in_specs=in_specs,
            out_specs=out_spec,
        ),
        compiler_params=pltpu.CompilerParams(
            dimension_semantics=("parallel",)),
    )(q0, x, wkT, bk, wvT, params["bv"], woT, params["bo"])


def pma_reference(x, params, *, num_heads):
    """Pure-JAX reference matching the PyTorch semantics exactly."""
    B, N, dim = x.shape
    S = jnp.broadcast_to(params["S"], (B,) + params["S"].shape[1:])
    q = S @ params["Wq"].T + params["bq"]
    k = x @ params["Wk"].T + params["bk"]
    v = x @ params["Wv"].T + params["bv"]
    # torch.cat(split(dim_split, 2), 0): head h occupies rows [h*B:(h+1)*B]
    q_ = jnp.concatenate(jnp.split(q, num_heads, axis=2), axis=0)
    k_ = jnp.concatenate(jnp.split(k, num_heads, axis=2), axis=0)
    v_ = jnp.concatenate(jnp.split(v, num_heads, axis=2), axis=0)
    a = jax.nn.softmax(jnp.einsum("bqd,bkd->bqk", q_, k_) / math.sqrt(dim), axis=2)
    o_ = q_ + jnp.einsum("bqk,bkd->bqd", a, v_)
    o = jnp.concatenate(jnp.split(o_, num_heads, axis=0), axis=2)
    o = o + jax.nn.relu(o @ params["Wo"].T + params["bo"])
    return o


def init_params(key, dim, num_seeds):
    """Deterministic synthetic init (shapes match the PyTorch module)."""
    keys = jax.random.split(key, 9)
    seed_bound = math.sqrt(6.0 / (num_seeds + dim))   # xavier-uniform-ish
    lin_bound = 1.0 / math.sqrt(dim)                  # nn.Linear default-ish
    u = lambda k, shape, b: jax.random.uniform(k, shape, jnp.float32, -b, b)
    return {
        "S":  u(keys[0], (1, num_seeds, dim), seed_bound),
        "Wq": u(keys[1], (dim, dim), lin_bound), "bq": u(keys[2], (1, dim), lin_bound),
        "Wk": u(keys[3], (dim, dim), lin_bound), "bk": u(keys[4], (1, dim), lin_bound),
        "Wv": u(keys[5], (dim, dim), lin_bound), "bv": u(keys[6], (1, dim), lin_bound),
        "Wo": u(keys[7], (dim, dim), lin_bound), "bo": u(keys[8], (1, dim), lin_bound),
    }


if __name__ == "__main__":
    # Small shapes: batch=8, set size N=16, dim=32, num_heads=4, num_seeds=8.
    # (batch=8 -> batch_block=4, grid=(2,) so both TensorCores stay busy on v7x.)
    B, N, dim, num_heads, num_seeds = 8, 16, 32, 4, 8

    key = jax.random.PRNGKey(0)
    kx, kp = jax.random.split(key)
    x = jax.random.normal(kx, (B, N, dim), dtype=jnp.float32)
    params = init_params(kp, dim, num_seeds)

    out = jax.block_until_ready(pma_forward(x, params, num_heads=num_heads))
    ref = pma_reference(x, params, num_heads=num_heads)

    assert out.shape == (B, num_seeds, dim), out.shape
    # Slightly looser tolerance than exact-divide: softmax denom uses the
    # EUP approx reciprocal (~1e-4 relative), everything else is f32.
    assert jnp.allclose(out, ref, atol=2e-3, rtol=2e-3), \
        float(jnp.max(jnp.abs(out - ref)))

    print("KERNEL_OK")
</pallas_src>

<mosaic_0001>
module attributes {stable_mosaic.version = 11 : i64} {
  func.func @pma_kernel(%arg0: i32, %arg1: memref<8x32xf32, #tpu.memory_space<vmem>>, %arg2: memref<4x16x32xf32, #tpu.memory_space<vmem>>, %arg3: memref<32x32xf32, #tpu.memory_space<vmem>>, %arg4: memref<1x32xf32, #tpu.memory_space<vmem>>, %arg5: memref<32x32xf32, #tpu.memory_space<vmem>>, %arg6: memref<1x32xf32, #tpu.memory_space<vmem>>, %arg7: memref<32x32xf32, #tpu.memory_space<vmem>>, %arg8: memref<1x32xf32, #tpu.memory_space<vmem>>, %arg9: memref<4x8x32xf32, #tpu.memory_space<vmem>>) attributes {dimension_semantics = [#tpu.dimension_semantics<parallel>], iteration_bounds = array<i64: 2>, scalar_prefetch = 0 : i64, scratch_operands = 0 : i64, tpu.core_type = #tpu.core_type<tc>, window_params = [{pipeline_mode = #tpu.pipeline_mode<synchronous>, transform_indices = @transform_0, window_bounds = array<i64: 8, 32>}, {transform_indices = @transform_1, window_bounds = array<i64: 4, 16, 32>}, {pipeline_mode = #tpu.pipeline_mode<synchronous>, transform_indices = @transform_2, window_bounds = array<i64: 32, 32>}, {pipeline_mode = #tpu.pipeline_mode<synchronous>, transform_indices = @transform_3, window_bounds = array<i64: 1, 32>}, {pipeline_mode = #tpu.pipeline_mode<synchronous>, transform_indices = @transform_4, window_bounds = array<i64: 32, 32>}, {pipeline_mode = #tpu.pipeline_mode<synchronous>, transform_indices = @transform_5, window_bounds = array<i64: 1, 32>}, {pipeline_mode = #tpu.pipeline_mode<synchronous>, transform_indices = @transform_6, window_bounds = array<i64: 32, 32>}, {pipeline_mode = #tpu.pipeline_mode<synchronous>, transform_indices = @transform_7, window_bounds = array<i64: 1, 32>}, {transform_indices = @transform_8, window_bounds = array<i64: 4, 8, 32>}]} {
    %c0 = arith.constant 0 : index
    %c0_0 = arith.constant 0 : index
    %c0_1 = arith.constant 0 : index
    %0 = vector.load %arg2[%c0, %c0_0, %c0_1] : memref<4x16x32xf32, #tpu.memory_space<vmem>>, vector<4x16x32xf32>
    %1 = vector.shape_cast %0 : vector<4x16x32xf32> to vector<64x32xf32>
    %c0_2 = arith.constant 0 : index
    %c0_3 = arith.constant 0 : index
    %2 = vector.load %arg3[%c0_2, %c0_3] : memref<32x32xf32, #tpu.memory_space<vmem>>, vector<32x32xf32>
    %cst = arith.constant dense<0.000000e+00> : vector<64x32xf32>
    %3 = tpu.matmul %1, %2, %cst {dimension_numbers = #tpu.dot_dimension_numbers<[1], [0], [0], [1], [0, 0, 1, 1], [], []>} : vector<64x32xf32>, vector<32x32xf32>, vector<64x32xf32> -> vector<64x32xf32>
    %c0_4 = arith.constant 0 : index
    %c0_5 = arith.constant 0 : index
    %4 = vector.load %arg4[%c0_4, %c0_5] : memref<1x32xf32, #tpu.memory_space<vmem>>, vector<1x32xf32>
    %5 = vector.broadcast %4 : vector<1x32xf32> to vector<64x32xf32>
    %6 = arith.addf %3, %5 : vector<64x32xf32>
    %c0_6 = arith.constant 0 : index
    %c0_7 = arith.constant 0 : index
    %7 = vector.load %arg5[%c0_6, %c0_7] : memref<32x32xf32, #tpu.memory_space<vmem>>, vector<32x32xf32>
    %cst_8 = arith.constant dense<0.000000e+00> : vector<64x32xf32>
    %8 = tpu.matmul %1, %7, %cst_8 {dimension_numbers = #tpu.dot_dimension_numbers<[1], [0], [0], [1], [0, 0, 1, 1], [], []>} : vector<64x32xf32>, vector<32x32xf32>, vector<64x32xf32> -> vector<64x32xf32>
    %c0_9 = arith.constant 0 : index
    %c0_10 = arith.constant 0 : index
    %9 = vector.load %arg6[%c0_9, %c0_10] : memref<1x32xf32, #tpu.memory_space<vmem>>, vector<1x32xf32>
    %10 = vector.broadcast %9 : vector<1x32xf32> to vector<64x32xf32>
    %11 = arith.addf %8, %10 : vector<64x32xf32>
    %12 = vector.shape_cast %6 : vector<64x32xf32> to vector<4x16x32xf32>
    %13 = vector.shape_cast %11 : vector<64x32xf32> to vector<4x16x32xf32>
    %c0_11 = arith.constant 0 : index
    %c0_12 = arith.constant 0 : index
    %14 = vector.load %arg1[%c0_11, %c0_12] : memref<8x32xf32, #tpu.memory_space<vmem>>, vector<8x32xf32>
    %15 = vector.shape_cast %14 : vector<8x32xf32> to vector<1x8x32xf32>
    %16 = vector.shape_cast %15 : vector<1x8x32xf32> to vector<1x8x32xf32>
    %17 = vector.broadcast %16 : vector<1x8x32xf32> to vector<4x8x32xf32>
    %18 = vector.extract_strided_slice %17 {offsets = [0, 0, 0], sizes = [4, 8, 8], strides = [1, 1, 1]} : vector<4x8x32xf32> to vector<4x8x8xf32>
    %19 = vector.extract_strided_slice %12 {offsets = [0, 0, 0], sizes = [4, 16, 8], strides = [1, 1, 1]} : vector<4x16x32xf32> to vector<4x16x8xf32>
    %20 = vector.extract_strided_slice %13 {offsets = [0, 0, 0], sizes = [4, 16, 8], strides = [1, 1, 1]} : vector<4x16x32xf32> to vector<4x16x8xf32>
    "tpu.trace_start"() <{level = 10 : i32, message = "bsd,bnd->bsn"}> : () -> ()
    %cst_13 = arith.constant dense<0.000000e+00> : vector<4x8x16xf32>
    %21 = tpu.matmul %18, %19, %cst_13 {dimension_numbers = #tpu.dot_dimension_numbers<[2], [2], [1], [1], [0, 0, 0, 1, 1, 1], [0], [0]>} : vector<4x8x8xf32>, vector<4x16x8xf32>, vector<4x8x16xf32> -> vector<4x8x16xf32>
    "tpu.trace_stop"() : () -> ()
    %cst_14 = arith.constant dense<0xFF800000> : vector<4x8xf32>
    %22 = vector.multi_reduction <maximumf>, %21, %cst_14 [2] : vector<4x8x16xf32> to vector<4x8xf32>
    %23 = vector.shape_cast %22 : vector<4x8xf32> to vector<4x8x1xf32>
    %24 = vector.broadcast %23 : vector<4x8x1xf32> to vector<4x8x16xf32>
    %25 = arith.subf %21, %24 : vector<4x8x16xf32>
    %26 = math.exp %25 : vector<4x8x16xf32>
    %cst_15 = arith.constant dense<0.000000e+00> : vector<4x8xf32>
    %27 = vector.multi_reduction <add>, %26, %cst_15 [2] : vector<4x8x16xf32> to vector<4x8xf32>
    %28 = vector.shape_cast %27 : vector<4x8xf32> to vector<4x8x1xf32>
    %29 = tpu.reciprocal %28 {approx = true} : vector<4x8x1xf32> -> vector<4x8x1xf32>
    %30 = vector.broadcast %29 : vector<4x8x1xf32> to vector<4x8x16xf32>
    %31 = arith.mulf %26, %30 : vector<4x8x16xf32>
    "tpu.trace_start"() <{level = 10 : i32, message = "bsn,bnd->bsd"}> : () -> ()
    %cst_16 = arith.constant dense<0.000000e+00> : vector<4x8x8xf32>
    %32 = tpu.matmul %31, %20, %cst_16 {dimension_numbers = #tpu.dot_dimension_numbers<[2], [1], [1], [2], [0, 0, 0, 1, 1, 2], [0], [0]>} : vector<4x8x16xf32>, vector<4x16x8xf32>, vector<4x8x8xf32> -> vector<4x8x8xf32>
    "tpu.trace_stop"() : () -> ()
    %33 = arith.addf %18, %32 : vector<4x8x8xf32>
    %34 = vector.extract_strided_slice %17 {offsets = [0, 0, 8], sizes = [4, 8, 8], strides = [1, 1, 1]} : vector<4x8x32xf32> to vector<4x8x8xf32>
    %35 = vector.extract_strided_slice %12 {offsets = [0, 0, 8], sizes = [4, 16, 8], strides = [1, 1, 1]} : vector<4x16x32xf32> to vector<4x16x8xf32>
    %36 = vector.extract_strided_slice %13 {offsets = [0, 0, 8], sizes = [4, 16, 8], strides = [1, 1, 1]} : vector<4x16x32xf32> to vector<4x16x8xf32>
    "tpu.trace_start"() <{level = 10 : i32, message = "bsd,bnd->bsn"}> : () -> ()
    %cst_17 = arith.constant dense<0.000000e+00> : vector<4x8x16xf32>
    %37 = tpu.matmul %34, %35, %cst_17 {dimension_numbers = #tpu.dot_dimension_numbers<[2], [2], [1], [1], [0, 0, 0, 1, 1, 1], [0], [0]>} : vector<4x8x8xf32>, vector<4x16x8xf32>, vector<4x8x16xf32> -> vector<4x8x16xf32>
    "tpu.trace_stop"() : () -> ()
    %cst_18 = arith.constant dense<0xFF800000> : vector<4x8xf32>
    %38 = vector.multi_reduction <maximumf>, %37, %cst_18 [2] : vector<4x8x16xf32> to vector<4x8xf32>
    %39 = vector.shape_cast %38 : vector<4x8xf32> to vector<4x8x1xf32>
    %40 = vector.broadcast %39 : vector<4x8x1xf32> to vector<4x8x16xf32>
    %41 = arith.subf %37, %40 : vector<4x8x16xf32>
    %42 = math.exp %41 : vector<4x8x16xf32>
    %cst_19 = arith.constant dense<0.000000e+00> : vector<4x8xf32>
    %43 = vector.multi_reduction <add>, %42, %cst_19 [2] : vector<4x8x16xf32> to vector<4x8xf32>
    %44 = vector.shape_cast %43 : vector<4x8xf32> to vector<4x8x1xf32>
    %45 = tpu.reciprocal %44 {approx = true} : vector<4x8x1xf32> -> vector<4x8x1xf32>
    %46 = vector.broadcast %45 : vector<4x8x1xf32> to vector<4x8x16xf32>
    %47 = arith.mulf %42, %46 : vector<4x8x16xf32>
    "tpu.trace_start"() <{level = 10 : i32, message = "bsn,bnd->bsd"}> : () -> ()
    %cst_20 = arith.constant dense<0.000000e+00> : vector<4x8x8xf32>
    %48 = tpu.matmul %47, %36, %cst_20 {dimension_numbers = #tpu.dot_dimension_numbers<[2], [1], [1], [2], [0, 0, 0, 1, 1, 2], [0], [0]>} : vector<4x8x16xf32>, vector<4x16x8xf32>, vector<4x8x8xf32> -> vector<4x8x8xf32>
    "tpu.trace_stop"() : () -> ()
    %49 = arith.addf %34, %48 : vector<4x8x8xf32>
    %50 = vector.extract_strided_slice %17 {offsets = [0, 0, 16], sizes = [4, 8, 8], strides = [1, 1, 1]} : vector<4x8x32xf32> to vector<4x8x8xf32>
    %51 = vector.extract_strided_slice %12 {offsets = [0, 0, 16], sizes = [4, 16, 8], strides = [1, 1, 1]} : vector<4x16x32xf32> to vector<4x16x8xf32>
    %52 = vector.extract_strided_slice %13 {offsets = [0, 0, 16], sizes = [4, 16, 8], strides = [1, 1, 1]} : vector<4x16x32xf32> to vector<4x16x8xf32>
    "tpu.trace_start"() <{level = 10 : i32, message = "bsd,bnd->bsn"}> : () -> ()
    %cst_21 = arith.constant dense<0.000000e+00> : vector<4x8x16xf32>
    %53 = tpu.matmul %50, %51, %cst_21 {dimension_numbers = #tpu.dot_dimension_numbers<[2], [2], [1], [1], [0, 0, 0, 1, 1, 1], [0], [0]>} : vector<4x8x8xf32>, vector<4x16x8xf32>, vector<4x8x16xf32> -> vector<4x8x16xf32>
    "tpu.trace_stop"() : () -> ()
    %cst_22 = arith.constant dense<0xFF800000> : vector<4x8xf32>
    %54 = vector.multi_reduction <maximumf>, %53, %cst_22 [2] : vector<4x8x16xf32> to vector<4x8xf32>
    %55 = vector.shape_cast %54 : vector<4x8xf32> to vector<4x8x1xf32>
    %56 = vector.broadcast %55 : vector<4x8x1xf32> to vector<4x8x16xf32>
    %57 = arith.subf %53, %56 : vector<4x8x16xf32>
    %58 = math.exp %57 : vector<4x8x16xf32>
    %cst_23 = arith.constant dense<0.000000e+00> : vector<4x8xf32>
    %59 = vector.multi_reduction <add>, %58, %cst_23 [2] : vector<4x8x16xf32> to vector<4x8xf32>
    %60 = vector.shape_cast %59 : vector<4x8xf32> to vector<4x8x1xf32>
    %61 = tpu.reciprocal %60 {approx = true} : vector<4x8x1xf32> -> vector<4x8x1xf32>
    %62 = vector.broadcast %61 : vector<4x8x1xf32> to vector<4x8x16xf32>
    %63 = arith.mulf %58, %62 : vector<4x8x16xf32>
    "tpu.trace_start"() <{level = 10 : i32, message = "bsn,bnd->bsd"}> : () -> ()
    %cst_24 = arith.constant dense<0.000000e+00> : vector<4x8x8xf32>
    %64 = tpu.matmul %63, %52, %cst_24 {dimension_numbers = #tpu.dot_dimension_numbers<[2], [1], [1], [2], [0, 0, 0, 1, 1, 2], [0], [0]>} : vector<4x8x16xf32>, vector<4x16x8xf32>, vector<4x8x8xf32> -> vector<4x8x8xf32>
    "tpu.trace_stop"() : () -> ()
    %65 = arith.addf %50, %64 : vector<4x8x8xf32>
    %66 = vector.extract_strided_slice %17 {offsets = [0, 0, 24], sizes = [4, 8, 8], strides = [1, 1, 1]} : vector<4x8x32xf32> to vector<4x8x8xf32>
    %67 = vector.extract_strided_slice %12 {offsets = [0, 0, 24], sizes = [4, 16, 8], strides = [1, 1, 1]} : vector<4x16x32xf32> to vector<4x16x8xf32>
    %68 = vector.extract_strided_slice %13 {offsets = [0, 0, 24], sizes = [4, 16, 8], strides = [1, 1, 1]} : vector<4x16x32xf32> to vector<4x16x8xf32>
    "tpu.trace_start"() <{level = 10 : i32, message = "bsd,bnd->bsn"}> : () -> ()
    %cst_25 = arith.constant dense<0.000000e+00> : vector<4x8x16xf32>
    %69 = tpu.matmul %66, %67, %cst_25 {dimension_numbers = #tpu.dot_dimension_numbers<[2], [2], [1], [1], [0, 0, 0, 1, 1, 1], [0], [0]>} : vector<4x8x8xf32>, vector<4x16x8xf32>, vector<4x8x16xf32> -> vector<4x8x16xf32>
    "tpu.trace_stop"() : () -> ()
    %cst_26 = arith.constant dense<0xFF800000> : vector<4x8xf32>
    %70 = vector.multi_reduction <maximumf>, %69, %cst_26 [2] : vector<4x8x16xf32> to vector<4x8xf32>
    %71 = vector.shape_cast %70 : vector<4x8xf32> to vector<4x8x1xf32>
    %72 = vector.broadcast %71 : vector<4x8x1xf32> to vector<4x8x16xf32>
    %73 = arith.subf %69, %72 : vector<4x8x16xf32>
    %74 = math.exp %73 : vector<4x8x16xf32>
    %cst_27 = arith.constant dense<0.000000e+00> : vector<4x8xf32>
    %75 = vector.multi_reduction <add>, %74, %cst_27 [2] : vector<4x8x16xf32> to vector<4x8xf32>
    %76 = vector.shape_cast %75 : vector<4x8xf32> to vector<4x8x1xf32>
    %77 = tpu.reciprocal %76 {approx = true} : vector<4x8x1xf32> -> vector<4x8x1xf32>
    %78 = vector.broadcast %77 : vector<4x8x1xf32> to vector<4x8x16xf32>
    %79 = arith.mulf %74, %78 : vector<4x8x16xf32>
    "tpu.trace_start"() <{level = 10 : i32, message = "bsn,bnd->bsd"}> : () -> ()
    %cst_28 = arith.constant dense<0.000000e+00> : vector<4x8x8xf32>
    %80 = tpu.matmul %79, %68, %cst_28 {dimension_numbers = #tpu.dot_dimension_numbers<[2], [1], [1], [2], [0, 0, 0, 1, 1, 2], [0], [0]>} : vector<4x8x16xf32>, vector<4x16x8xf32>, vector<4x8x8xf32> -> vector<4x8x8xf32>
    "tpu.trace_stop"() : () -> ()
    %81 = arith.addf %66, %80 : vector<4x8x8xf32>
    %82 = tpu.concatenate %33, %49, %65, %81 in 2 : vector<4x8x8xf32>, vector<4x8x8xf32>, vector<4x8x8xf32>, vector<4x8x8xf32> -> vector<4x8x32xf32>
    %83 = vector.shape_cast %82 : vector<4x8x32xf32> to vector<32x32xf32>
    %c0_29 = arith.constant 0 : index
    %c0_30 = arith.constant 0 : index
    %84 = vector.load %arg7[%c0_29, %c0_30] : memref<32x32xf32, #tpu.memory_space<vmem>>, vector<32x32xf32>
    %cst_31 = arith.constant dense<0.000000e+00> : vector<32x32xf32>
    %85 = tpu.matmul %83, %84, %cst_31 {dimension_numbers = #tpu.dot_dimension_numbers<[1], [0], [0], [1], [0, 0, 1, 1], [], []>} : vector<32x32xf32>, vector<32x32xf32>, vector<32x32xf32> -> vector<32x32xf32>
    %c0_32 = arith.constant 0 : index
    %c0_33 = arith.constant 0 : index
    %86 = vector.load %arg8[%c0_32, %c0_33] : memref<1x32xf32, #tpu.memory_space<vmem>>, vector<1x32xf32>
    %87 = vector.broadcast %86 : vector<1x32xf32> to vector<32x32xf32>
    %88 = arith.addf %85, %87 : vector<32x32xf32>
    %cst_34 = arith.constant 0.000000e+00 : f32
    %89 = vector.broadcast %cst_34 : f32 to vector<32x32xf32>
    %90 = arith.maximumf %88, %89 : vector<32x32xf32>
    %91 = arith.addf %83, %90 : vector<32x32xf32>
    %92 = vector.shape_cast %91 : vector<32x32xf32> to vector<4x8x32xf32>
    %c0_35 = arith.constant 0 : index
    %c0_36 = arith.constant 0 : index
    %c0_37 = arith.constant 0 : index
    %93 = vector.load %arg9[%c0_35, %c0_36, %c0_37] : memref<4x8x32xf32, #tpu.memory_space<vmem>>, vector<4x8x32xf32>
    tpu.vector_store %arg9[%c0_35, %c0_36, %c0_37], %92 {strides = array<i32>} : memref<4x8x32xf32, #tpu.memory_space<vmem>>, vector<4x8x32xf32>,
    return
  }
  func.func @transform_0(%arg0: i32) -> (i32, i32) {
    %c0_i32 = arith.constant 0 : i32
    %c0_i32_0 = arith.constant 0 : i32
    %c0_i32_1 = arith.constant 0 : i32
    return %c0_i32, %c0_i32_0 : i32, i32
  }
  func.func @transform_1(%arg0: i32) -> (i32, i32, i32) {
    %c0_i32 = arith.constant 0 : i32
    %c0_i32_0 = arith.constant 0 : i32
    %c0_i32_1 = arith.constant 0 : i32
    return %arg0, %c0_i32, %c0_i32_0 : i32, i32, i32
  }
  func.func @transform_2(%arg0: i32) -> (i32, i32) {
    %c0_i32 = arith.constant 0 : i32
    %c0_i32_0 = arith.constant 0 : i32
    %c0_i32_1 = arith.constant 0 : i32
    return %c0_i32, %c0_i32_0 : i32, i32
  }
  func.func @transform_3(%arg0: i32) -> (i32, i32) {
    %c0_i32 = arith.constant 0 : i32
    %c0_i32_0 = arith.constant 0 : i32
    %c0_i32_1 = arith.constant 0 : i32
    return %c0_i32, %c0_i32_0 : i32, i32
  }
  func.func @transform_4(%arg0: i32) -> (i32, i32) {
    %c0_i32 = arith.constant 0 : i32
    %c0_i32_0 = arith.constant 0 : i32
    %c0_i32_1 = arith.constant 0 : i32
    return %c0_i32, %c0_i32_0 : i32, i32
  }
  func.func @transform_5(%arg0: i32) -> (i32, i32) {
    %c0_i32 = arith.constant 0 : i32
    %c0_i32_0 = arith.constant 0 : i32
    %c0_i32_1 = arith.constant 0 : i32
    return %c0_i32, %c0_i32_0 : i32, i32
  }
  func.func @transform_6(%arg0: i32) -> (i32, i32) {
    %c0_i32 = arith.constant 0 : i32
    %c0_i32_0 = arith.constant 0 : i32
    %c0_i32_1 = arith.constant 0 : i32
    return %c0_i32, %c0_i32_0 : i32, i32
  }
  func.func @transform_7(%arg0: i32) -> (i32, i32) {
    %c0_i32 = arith.constant 0 : i32
    %c0_i32_0 = arith.constant 0 : i32
    %c0_i32_1 = arith.constant 0 : i32
    return %c0_i32, %c0_i32_0 : i32, i32
  }
  func.func @transform_8(%arg0: i32) -> (i32, i32, i32) {
    %c0_i32 = arith.constant 0 : i32
    %c0_i32_0 = arith.constant 0 : i32
    %c0_i32_1 = arith.constant 0 : i32
    return %arg0, %c0_i32, %c0_i32_0 : i32, i32, i32
  }
}

</mosaic_0001>

<llo_original>
// kernel: tpu_custom_call.1
$region0: #{tpu_custom_call.1}
  #allocation0 [shape = 'u32[]', space=smem, size = 0x4, offset = 0x4, fixed_abs, tag = 'smem constant byte address 0x4 - core index']
  #allocation1 [shape = 'u32[144,128]{1,0:T(1,128)}', space=vmem, size = 0x12000, scoped, tag = 'internal scratch']
  %s0 = inlined_call_operand.hbm [shape: f32[8,32], index: 0, kind: input, shape index: {}]
  %s1 = inlined_call_operand.hbm [shape: f32[8,16,32], index: 1, kind: input, shape index: {}]
  %s2 = inlined_call_operand.hbm [shape: f32[32,32], index: 2, kind: input, shape index: {}]
  %s3 = inlined_call_operand.vmem [shape: f32[1,32], index: 3, kind: input, shape index: {}]
  %s4 = inlined_call_operand.hbm [shape: f32[32,32], index: 4, kind: input, shape index: {}]
  %s5 = inlined_call_operand.vmem [shape: f32[1,32], index: 5, kind: input, shape index: {}]
  %s6 = inlined_call_operand.hbm [shape: f32[32,32], index: 6, kind: input, shape index: {}]
  %s7 = inlined_call_operand.vmem [shape: f32[1,32], index: 7, kind: input, shape index: {}]
  %s8 = inlined_call_operand.hbm [shape: f32[8,8,32], index: 8, kind: output, shape index: {}]
  %s9 = sld [smem:[#allocation0]]
  $region85: #{tpu_custom_call.1} parent=0
    _
  %s11 = ssub.s32 1, %s9
  %s12 = scalar_select 0, %s11, %s9
  $region1: #{tpu_custom_call.1} parent=0
    #allocation2 [shape = 'u8[4096]{0}', space=vmem, size = 0x1000, scoped, tag = 'input window, operand 0, single buffered']
    #allocation3 [shape = 's32[2]{0}', space=sflag, size = 0x8, scoped, tag = 'scoped memory for tpu_custom_call.1']
    #allocation4 [shape = 's32[2]{0}', space=sflag, size = 0x8, scoped, tag = 'scoped memory for tpu_custom_call.1']
    #allocation5 [shape = 'u8[65536]{0}', space=vmem, size = 0x10000, scoped, tag = 'input window, operand 1']
    #allocation6 [shape = 's32[2]{0}', space=sflag, size = 0x8, scoped, tag = 'scoped memory for tpu_custom_call.1']
    #allocation7 [shape = 'u8[16384]{0}', space=vmem, size = 0x4000, scoped, tag = 'input window, operand 2, single buffered']
    #allocation8 [shape = 'u8[16384]{0}', space=vmem, size = 0x4000, scoped, tag = 'input window, operand 4, single buffered']
    #allocation9 [shape = 's32[1]{0}', space=sflag, size = 0x4, scoped, tag = 'scoped memory for tpu_custom_call.1']
    #allocation10 [shape = 'u8[16384]{0}', space=vmem, size = 0x4000, scoped, tag = 'input window, operand 6, single buffered']
    #allocation11 [shape = 'u8[32768]{0}', space=vmem, size = 0x8000, scoped, tag = 'output window, operand 0']
    %13 = vsyncpa [#allocation3], 0
    %14 = vsyncpa [#allocation6], 0
    %s15 = scalar_lea.sflag [#allocation6], 1
    %16 = vsyncpa %s15, 0
    %17 = vsyncpa [#allocation9], 0
    %18 = vsyncpa [#allocation4], 0
    %s19 = scalar_lea.sflag [#allocation4], 1
    %20 = vsyncpa %s19, 0
    loop: start=0, step=1, limit=4
    $region2: #{tpu_custom_call.1} parent=1 // loop_pre_header
      _
    $region3: #{tpu_custom_call.1} parent=1 // loop_header
      %s22 = sphi 0, %s26
      %p23 = scmp.ge.s32.totalorder %s22, 4
      %s30 = sphi 0, %s30
      %s32 = sphi 0, %s30
      %s33 = sphi 0, %s32
      %s47 = sphi 0, %s33
      %s53 = sphi 0, %s55
      %s56 = sphi 0, %s53
      %s57 = sphi 0, %s56
      %s73 = sphi 0, %s57
      %s77 = sphi 0, %s77
      %s79 = sphi 0, %s77
      %s80 = sphi 0, %s79
      %s94 = sphi 0, %s80
      %s98 = sphi 0, %s98
      %s100 = sphi 0, %s98
      %s101 = sphi 0, %s100
      %s115 = sphi 0, %s101
      %s119 = sphi 0, %s119
      %s121 = sphi 0, %s119
      %s122 = sphi 0, %s121
      %s136 = sphi 0, %s122
      %s140 = sphi 0, %s140
      %s142 = sphi 0, %s140
      %s143 = sphi 0, %s142
      %s157 = sphi 0, %s143
      %s161 = sphi 0, %s161
      %s163 = sphi 0, %s161
      %s164 = sphi 0, %s163
      %s178 = sphi 0, %s164
      %s182 = sphi 0, %s182
      %s184 = sphi 0, %s182
      %s185 = sphi 0, %s184
      %s199 = sphi 0, %s185
      %s205 = sphi 0, %s207
      %s208 = sphi 0, %s205
      %s209 = sphi 0, %s208
      %s225 = sphi 0, %s209
    $region4: #{tpu_custom_call.1} parent=1 // loop_header_branch
      %25 = sbr.rel (%p23) target = $region8
    $region5: #{tpu_custom_call.1} parent=1 // loop_body
      %s27 = ssub.s32 %s22, 1
      %s28 = ssub.s32 %s22, 2
      %s29 = sadd.s32 %s22, 1
      %s31 = sadd.s32 %s30, 1
      %p34 = scmp.eq.s32.totalorder %s22, 1
      %p35 = scmp.ne.s32.totalorder %s30, %s32
      %p36 = scmp.eq.s32.totalorder %s22, 0
      %p37 = por %p35, %p36
      %p38 = scmp.ne.s32.totalorder %s30, %s32
      %p39 = scmp.eq.s32.totalorder %s27, 1
      %p40 = por %p38, %p39
      %p41 = scmp.ne.s32.totalorder %s32, %s33
      %p42 = scmp.eq.s32.totalorder %s27, 0
      %p43 = por %p41, %p42
      %p44 = scmp.ne.s32.totalorder %s32, %s33
      %p45 = scmp.eq.s32.totalorder %s28, 1
      %p46 = por %p44, %p45
      %p48 = scmp.ne.s32.totalorder %s33, %s47
      %p49 = scmp.eq.s32.totalorder %s28, 0
      %p50 = por %p48, %p49
      %s51 = ssub.s32 %s22, %s29
      %p52 = scmp.eq.s32.totalorder %s51, 0
      %s54 = sadd.s32 %s53, 1
      %s55 = scalar_select %p52, %s53, %s54
      %p58 = pneg %p52
      %p59 = scmp.eq.s32.totalorder %s22, 1
      %p60 = por %p58, %p59
      %p61 = scmp.ne.s32.totalorder %s53, %s56
      %p62 = scmp.eq.s32.totalorder %s22, 0
      %p63 = por %p61, %p62
      %p64 = scmp.ne.s32.totalorder %s53, %s56
      %p65 = scmp.eq.s32.totalorder %s27, 1
      %p66 = por %p64, %p65
      %p67 = scmp.ne.s32.totalorder %s56, %s57
      %p68 = scmp.eq.s32.totalorder %s27, 0
      %p69 = por %p67, %p68
      %p70 = scmp.ne.s32.totalorder %s56, %s57
      %p71 = scmp.eq.s32.totalorder %s28, 1
      %p72 = por %p70, %p71
      %p74 = scmp.ne.s32.totalorder %s57, %s73
      %p75 = scmp.eq.s32.totalorder %s28, 0
      %p76 = por %p74, %p75
      %s78 = sadd.s32 %s77, 1
      %p81 = scmp.eq.s32.totalorder %s22, 1
      %p82 = scmp.ne.s32.totalorder %s77, %s79
      %p83 = scmp.eq.s32.totalorder %s22, 0
      %p84 = por %p82, %p83
      %p85 = scmp.ne.s32.totalorder %s77, %s79
      %p86 = scmp.eq.s32.totalorder %s27, 1
      %p87 = por %p85, %p86
      %p88 = scmp.ne.s32.totalorder %s79, %s80
      %p89 = scmp.eq.s32.totalorder %s27, 0
      %p90 = por %p88, %p89
      %p91 = scmp.ne.s32.totalorder %s79, %s80
      %p92 = scmp.eq.s32.totalorder %s28, 1
      %p93 = por %p91, %p92
      %p95 = scmp.ne.s32.totalorder %s80, %s94
      %p96 = scmp.eq.s32.totalorder %s28, 0
      %p97 = por %p95, %p96
      %s99 = sadd.s32 %s98, 1
      %p102 = scmp.eq.s32.totalorder %s22, 1
      %p103 = scmp.ne.s32.totalorder %s98, %s100
      %p104 = scmp.eq.s32.totalorder %s22, 0
      %p105 = por %p103, %p104
      %p106 = scmp.ne.s32.totalorder %s98, %s100
      %p107 = scmp.eq.s32.totalorder %s27, 1
      %p108 = por %p106, %p107
      %p109 = scmp.ne.s32.totalorder %s100, %s101
      %p110 = scmp.eq.s32.totalorder %s27, 0
      %p111 = por %p109, %p110
      %p112 = scmp.ne.s32.totalorder %s100, %s101
      %p113 = scmp.eq.s32.totalorder %s28, 1
      %p114 = por %p112, %p113
      %p116 = scmp.ne.s32.totalorder %s101, %s115
      %p117 = scmp.eq.s32.totalorder %s28, 0
      %p118 = por %p116, %p117
      %s120 = sadd.s32 %s119, 1
      %p123 = scmp.eq.s32.totalorder %s22, 1
      %p124 = scmp.ne.s32.totalorder %s119, %s121
      %p125 = scmp.eq.s32.totalorder %s22, 0
      %p126 = por %p124, %p125
      %p127 = scmp.ne.s32.totalorder %s119, %s121
      %p128 = scmp.eq.s32.totalorder %s27, 1
      %p129 = por %p127, %p128
      %p130 = scmp.ne.s32.totalorder %s121, %s122
      %p131 = scmp.eq.s32.totalorder %s27, 0
      %p132 = por %p130, %p131
      %p133 = scmp.ne.s32.totalorder %s121, %s122
      %p134 = scmp.eq.s32.totalorder %s28, 1
      %p135 = por %p133, %p134
      %p137 = scmp.ne.s32.totalorder %s122, %s136
      %p138 = scmp.eq.s32.totalorder %s28, 0
      %p139 = por %p137, %p138
      %s141 = sadd.s32 %s140, 1
      %p144 = scmp.eq.s32.totalorder %s22, 1
      %p145 = scmp.ne.s32.totalorder %s140, %s142
      %p146 = scmp.eq.s32.totalorder %s22, 0
      %p147 = por %p145, %p146
      %p148 = scmp.ne.s32.totalorder %s140, %s142
      %p149 = scmp.eq.s32.totalorder %s27, 1
      %p150 = por %p148, %p149
      %p151 = scmp.ne.s32.totalorder %s142, %s143
      %p152 = scmp.eq.s32.totalorder %s27, 0
      %p153 = por %p151, %p152
      %p154 = scmp.ne.s32.totalorder %s142, %s143
      %p155 = scmp.eq.s32.totalorder %s28, 1
      %p156 = por %p154, %p155
      %p158 = scmp.ne.s32.totalorder %s143, %s157
      %p159 = scmp.eq.s32.totalorder %s28, 0
      %p160 = por %p158, %p159
      %s162 = sadd.s32 %s161, 1
      %p165 = scmp.eq.s32.totalorder %s22, 1
      %p166 = scmp.ne.s32.totalorder %s161, %s163
      %p167 = scmp.eq.s32.totalorder %s22, 0
      %p168 = por %p166, %p167
      %p169 = scmp.ne.s32.totalorder %s161, %s163
      %p170 = scmp.eq.s32.totalorder %s27, 1
      %p171 = por %p169, %p170
      %p172 = scmp.ne.s32.totalorder %s163, %s164
      %p173 = scmp.eq.s32.totalorder %s27, 0
      %p174 = por %p172, %p173
      %p175 = scmp.ne.s32.totalorder %s163, %s164
      %p176 = scmp.eq.s32.totalorder %s28, 1
      %p177 = por %p175, %p176
      %p179 = scmp.ne.s32.totalorder %s164, %s178
      %p180 = scmp.eq.s32.totalorder %s28, 0
      %p181 = por %p179, %p180
      %s183 = sadd.s32 %s182, 1
      %p186 = scmp.eq.s32.totalorder %s22, 1
      %p187 = scmp.ne.s32.totalorder %s182, %s184
      %p188 = scmp.eq.s32.totalorder %s22, 0
      %p189 = por %p187, %p188
      %p190 = scmp.ne.s32.totalorder %s182, %s184
      %p191 = scmp.eq.s32.totalorder %s27, 1
      %p192 = por %p190, %p191
      %p193 = scmp.ne.s32.totalorder %s184, %s185
      %p194 = scmp.eq.s32.totalorder %s27, 0
      %p195 = por %p193, %p194
      %p196 = scmp.ne.s32.totalorder %s184, %s185
      %p197 = scmp.eq.s32.totalorder %s28, 1
      %p198 = por %p196, %p197
      %p200 = scmp.ne.s32.totalorder %s185, %s199
      %p201 = scmp.eq.s32.totalorder %s28, 0
      %p202 = por %p200, %p201
      %s203 = ssub.s32 %s22, %s29
      %p204 = scmp.eq.s32.totalorder %s203, 0
      %s206 = sadd.s32 %s205, 1
      %s207 = scalar_select %p204, %s205, %s206
      %p210 = pneg %p204
      %p211 = scmp.eq.s32.totalorder %s22, 1
      %p212 = por %p210, %p211
      %p213 = scmp.ne.s32.totalorder %s205, %s208
      %p214 = scmp.eq.s32.totalorder %s22, 0
      %p215 = por %p213, %p214
      %p216 = scmp.ne.s32.totalorder %s205, %s208
      %p217 = scmp.eq.s32.totalorder %s27, 1
      %p218 = por %p216, %p217
      %p219 = scmp.ne.s32.totalorder %s208, %s209
      %p220 = scmp.eq.s32.totalorder %s27, 0
      %p221 = por %p219, %p220
      %p222 = scmp.ne.s32.totalorder %s208, %s209
      %p223 = scmp.eq.s32.totalorder %s28, 1
      %p224 = por %p222, %p223
      %p226 = scmp.ne.s32.totalorder %s209, %s225
      %p227 = scmp.eq.s32.totalorder %s28, 0
      %p228 = por %p226, %p227
      %p229 = scmp.le.s32.totalorder 1, %s22
      %p230 = scmp.lt.s32.totalorder %s22, 3
      %p231 = pnand %p229, %p230
      %p232 = pneg %p231
      // Predicated region
      $region9: #{tpu_custom_call.1} parent=5 // pred_check
        _
      $region10: #{tpu_custom_call.1} parent=5 // pred_check_branch
        %234 = sbr.rel (%p231) target = $region12
      $region11: #{tpu_custom_call.1} parent=5 // pred_region
        %s235 = ssub.s32 %s22, 1
        // Predicated region
        $region13: #{tpu_custom_call.1} parent=11 // pred_check
          %p236 = pneg %p43
        $region14: #{tpu_custom_call.1} parent=11 // pred_check_branch
          %238 = sbr.rel (%p236) target = $region16
        $region15: #{tpu_custom_call.1} parent=11 // pred_region
          %s240 = ssub.s32 128, 128
          %241 = vsyncadd [#allocation3], %s240
          %s243 = sshll.u32 [#allocation2], 4
          %s244 = int_to_ptr.vmem [resolvable:$true] %s243
          %246 = dma.hbm_to_vmem [thread:$0]  %s0, 128, %s244, [#allocation3]
        $region16: #{tpu_custom_call.1} parent=11 // pred_fallthru
          _
        // Predicated region
        $region17: #{tpu_custom_call.1} parent=11 // pred_check
          %p247 = pneg %p90
        $region18: #{tpu_custom_call.1} parent=11 // pred_check_branch
          %249 = sbr.rel (%p247) target = $region20
        $region19: #{tpu_custom_call.1} parent=11 // pred_region
          %s251 = ssub.s32 512, 512
          %252 = vsyncadd [#allocation6], %s251
          %s253 = sshll.u32 [#allocation7], 4
          %s254 = int_to_ptr.vmem [resolvable:$true] %s253
          %259 = dma.hbm_to_vmem [thread:$0]  %s2, 512, %s254, [#allocation6], 128, 128, 8
        $region20: #{tpu_custom_call.1} parent=11 // pred_fallthru
          _
        // Predicated region
        $region21: #{tpu_custom_call.1} parent=11 // pred_check
          %p260 = pneg %p111
        $region22: #{tpu_custom_call.1} parent=11 // pred_check_branch
          %262 = sbr.rel (%p260) target = $region24
        $region23: #{tpu_custom_call.1} parent=11 // pred_region
          _
        $region24: #{tpu_custom_call.1} parent=11 // pred_fallthru
          _
        // Predicated region
        $region25: #{tpu_custom_call.1} parent=11 // pred_check
          %p263 = pneg %p132
        $region26: #{tpu_custom_call.1} parent=11 // pred_check_branch
          %265 = sbr.rel (%p263) target = $region28
        $region27: #{tpu_custom_call.1} parent=11 // pred_region
          %s267 = ssub.s32 512, 512
          %268 = vsyncadd [#allocation9], %s267
          %s269 = sshll.u32 [#allocation8], 4
          %s270 = int_to_ptr.vmem [resolvable:$true] %s269
          %275 = dma.hbm_to_vmem [thread:$0]  %s4, 512, %s270, [#allocation9], 128, 128, 8
        $region28: #{tpu_custom_call.1} parent=11 // pred_fallthru
          _
        // Predicated region
        $region29: #{tpu_custom_call.1} parent=11 // pred_check
          %p276 = pneg %p153
        $region30: #{tpu_custom_call.1} parent=11 // pred_check_branch
          %278 = sbr.rel (%p276) target = $region32
        $region31: #{tpu_custom_call.1} parent=11 // pred_region
          _
        $region32: #{tpu_custom_call.1} parent=11 // pred_fallthru
          _
        // Predicated region
        $region33: #{tpu_custom_call.1} parent=11 // pred_check
          %p279 = pneg %p174
        $region34: #{tpu_custom_call.1} parent=11 // pred_check_branch
          %281 = sbr.rel (%p279) target = $region36
        $region35: #{tpu_custom_call.1} parent=11 // pred_region
          %s283 = ssub.s32 512, 512
          %284 = vsyncadd [#allocation9], %s283
          %s285 = sshll.u32 [#allocation10], 4
          %s286 = int_to_ptr.vmem [resolvable:$true] %s285
          %291 = dma.hbm_to_vmem [thread:$0]  %s6, 512, %s286, [#allocation9], 128, 128, 8
        $region36: #{tpu_custom_call.1} parent=11 // pred_fallthru
          _
        // Predicated region
        $region37: #{tpu_custom_call.1} parent=11 // pred_check
          %p292 = pneg %p195
        $region38: #{tpu_custom_call.1} parent=11 // pred_check_branch
          %294 = sbr.rel (%p292) target = $region40
        $region39: #{tpu_custom_call.1} parent=11 // pred_region
          _
        $region40: #{tpu_custom_call.1} parent=11 // pred_fallthru
          _
      $region12: #{tpu_custom_call.1} parent=5 // pred_fallthru
        _
      %p295 = scmp.lt.s32.totalorder %s22, 2
      // Predicated region
      $region41: #{tpu_custom_call.1} parent=5 // pred_check
        %p296 = pneg %p295
      $region42: #{tpu_custom_call.1} parent=5 // pred_check_branch
        %298 = sbr.rel (%p296) target = $region44
      $region43: #{tpu_custom_call.1} parent=5 // pred_region
        // Predicated region
        $region45: #{tpu_custom_call.1} parent=43 // pred_check
          %p299 = pneg %p63
        $region46: #{tpu_custom_call.1} parent=43 // pred_check_branch
          %301 = sbr.rel (%p299) target = $region48
        $region47: #{tpu_custom_call.1} parent=43 // pred_region
          %s302 = sand.u32 %s22, 1
          %s303 = scalar_lea.sflag [#allocation6], %s302
          %s304 = sand.u32 %s53, 1
          %s305 = smul.addr %s304, 64
          %s306 = scalar_lea.vmem [#allocation5], %s305
          %s307 = smul.u32 4, %s22
          %s309 = ssub.s32 1024, 1024
          %310 = vsyncadd %s303, %s309
          %s311 = smul.addr %s307, 2
          %s312 = smul.addr %s311, 128
          %s313 = scalar_lea.hbm %s1, %s312
          %s314 = sshll.u32 %s306, 4
          %s315 = int_to_ptr.vmem [resolvable:$true] %s314
          %320 = dma.hbm_to_vmem [thread:$0]  %s313, 1024, %s315, %s303, 128, 128, 8
        $region48: #{tpu_custom_call.1} parent=43 // pred_fallthru
          _
      $region44: #{tpu_custom_call.1} parent=5 // pred_fallthru
        _
      %p321 = scmp.le.s32.totalorder 1, %s22
      %p322 = scmp.lt.s32.totalorder %s22, 3
      %p323 = pnand %p321, %p322
      %p324 = pneg %p323
      // Predicated region
      $region49: #{tpu_custom_call.1} parent=5 // pred_check
        _
      $region50: #{tpu_custom_call.1} parent=5 // pred_check_branch
        %326 = sbr.rel (%p323) target = $region52
      $region51: #{tpu_custom_call.1} parent=5 // pred_region
        %s327 = ssub.s32 %s22, 1
        // Predicated region
        $region53: #{tpu_custom_call.1} parent=51 // pred_check
          %p328 = pneg %p43
        $region54: #{tpu_custom_call.1} parent=51 // pred_check_branch
          %330 = sbr.rel (%p328) target = $region56
        $region55: #{tpu_custom_call.1} parent=51 // pred_region
          %331 = dma.done [#allocation3], 128
        $region56: #{tpu_custom_call.1} parent=51 // pred_fallthru
          _
        %s332 = sand.u32 %s27, 1
        %s333 = scalar_lea.sflag [#allocation6], %s332
        %s334 = sand.u32 %s56, 1
        %s335 = smul.addr %s334, 64
        %s336 = scalar_lea.vmem [#allocation5], %s335
        // Predicated region
        $region57: #{tpu_custom_call.1} parent=51 // pred_check
          %p337 = pneg %p69
        $region58: #{tpu_custom_call.1} parent=51 // pred_check_branch
          %339 = sbr.rel (%p337) target = $region60
        $region59: #{tpu_custom_call.1} parent=51 // pred_region
          %340 = dma.done %s333, 1024
        $region60: #{tpu_custom_call.1} parent=51 // pred_fallthru
          _
        // Predicated region
        $region61: #{tpu_custom_call.1} parent=51 // pred_check
          %p341 = pneg %p90
        $region62: #{tpu_custom_call.1} parent=51 // pred_check_branch
          %343 = sbr.rel (%p341) target = $region64
        $region63: #{tpu_custom_call.1} parent=51 // pred_region
          %344 = dma.done [#allocation6], 512
        $region64: #{tpu_custom_call.1} parent=51 // pred_fallthru
          _
        // Predicated region
        $region65: #{tpu_custom_call.1} parent=51 // pred_check
          %p345 = pneg %p132
        $region66: #{tpu_custom_call.1} parent=51 // pred_check_branch
          %347 = sbr.rel (%p345) target = $region68
        $region67: #{tpu_custom_call.1} parent=51 // pred_region
          %348 = dma.done [#allocation9], 512
        $region68: #{tpu_custom_call.1} parent=51 // pred_fallthru
          _
        // Predicated region
        $region69: #{tpu_custom_call.1} parent=51 // pred_check
          %p349 = pneg %p174
        $region70: #{tpu_custom_call.1} parent=51 // pred_check_branch
          %351 = sbr.rel (%p349) target = $region72
        $region71: #{tpu_custom_call.1} parent=51 // pred_region
          %352 = dma.done [#allocation9], 512
        $region72: #{tpu_custom_call.1} parent=51 // pred_fallthru
          _
        %p353 = pneg %p43
        %p354 = pneg %p40
        %s355 = sand.u32 %s27, 1
        %s356 = scalar_lea.sflag [#allocation6], %s355
        %s357 = sand.u32 %s56, 1
        %s358 = smul.addr %s357, 64
        %s359 = scalar_lea.vmem [#allocation5], %s358
        %p360 = pneg %p69
        %p361 = pneg %p66
        %p362 = pneg %p90
        %p363 = pneg %p87
        %p364 = pneg %p111
        %p365 = pneg %p108
        %p366 = pneg %p132
        %p367 = pneg %p129
        %p368 = pneg %p153
        %p369 = pneg %p150
        %p370 = pneg %p174
        %p371 = pneg %p171
        %p372 = pneg %p195
        %p373 = pneg %p192
        %p374 = pneg %p221
        %p375 = pneg %p218
        %s376 = sand.u32 %s208, 1
        %s377 = scalar_lea.sflag [#allocation4], %s376
        %s378 = sand.u32 %s208, 1
        %s379 = smul.addr %s378, 32
        %s380 = scalar_lea.vmem [#allocation11], %s379
        %s381 = smul.u32 4, %s27
        %s382 = smul.u32 4, %s27
        %v383 = vld [vmem:[%s336] sm:$0xff]
        %v384 = vld [vmem:[%s336 + $0x8] sm:$0xff]
        %v385 = vld [vmem:[%s336 + $0x10] sm:$0xff]
        %v386 = vld [vmem:[%s336 + $0x18] sm:$0xff]
        %v387 = vld [vmem:[%s336 + $0x20] sm:$0xff]
        %v388 = vld [vmem:[%s336 + $0x28] sm:$0xff]
        %v389 = vld [vmem:[%s336 + $0x30] sm:$0xff]
        %v390 = vld [vmem:[%s336 + $0x38] sm:$0xff]
        %v391 = vld [vmem:[#allocation7] sm:$0xff]
        %v392 = vld [vmem:[#allocation7 + $0x8] sm:$0xff]
        %v393 = vld [vmem:[#allocation7 + $0x10] sm:$0xff]
        %v394 = vld [vmem:[#allocation7 + $0x18] sm:$0xff]
        %v395 = vld [vmem:[%s3] sm:$0x1]
        %v397 = vlaneseq
        %v398 = vshrl.u32 %v397, 7
        %v399 = vsub.s32 0, %v398
        %v400 = vrot.slane %v395, %v399
        %vm402 = vcmask 261120
        %v404 = vsel %vm402, %v383, 0
        %v407 = vsel %vm402, %v384, 0
        %v410 = vsel %vm402, %v385, 0
        %v413 = vsel %vm402, %v386, 0
        %v416 = vsel %vm402, %v387, 0
        %v419 = vsel %vm402, %v388, 0
        %v422 = vsel %vm402, %v389, 0
        %v425 = vsel %vm402, %v390, 0
        %427 = vmatprep.subr.mxu0 0.0
        %428 = vmatpush1.msra.mxu0 0.0
        %429 = vmatprep.subr.mxu0 0.0
        %430 = vmatpush1.msra.mxu0 0.0
        %431 = vmatprep.subr.mxu0 0.0
        %432 = vmatpush1.msra.mxu0 0.0
        %433 = vmatprep.subr.mxu0 0.0
        %434 = vmatpush1.msra.mxu0 0.0
        %435 = vmatprep.subr.mxu0 0.0
        %436 = vmatpush1.msra.mxu0 0.0
        %437 = vmatprep.subr.mxu0 0.0
        %438 = vmatpush1.msra.mxu0 0.0
        %439 = vmatprep.subr.mxu0 0.0
        %440 = vmatpush1.msra.mxu0 0.0
        %441 = vmatprep.subr.mxu0 0.0
        %442 = vmatpush1.msra.mxu0 0.0
        %443 = vmatprep.subr.mxu0 0.0
        %444 = vmatpush1.msra.mxu0 0.0
        %445 = vmatprep.subr.mxu0 0.0
        %446 = vmatpush1.msra.mxu0 0.0
        %447 = vmatprep.subr.mxu0 0.0
        %448 = vmatpush1.msra.mxu0 0.0
        %449 = vmatprep.subr.mxu0 0.0
        %450 = vmatpush1.msra.mxu0 0.0
        %451 = vmatprep.subr.mxu0 0.0
        %452 = vmatpush1.msra.mxu0 %v394
        %453 = vmatprep.subr.mxu0 0.0
        %454 = vmatpush1.msra.mxu0 %v393
        %455 = vmatprep.subr.mxu0 0.0
        %456 = vmatpush1.msra.mxu0 %v392
        %457 = vmatprep.subr.mxu0 0.0
        %458 = vmatpush1.msra.mxu0 %v391
        %459 = vmatprep.subr.mxu0 0.0
        %460 = vmatpush2.msra.mxu0 0.0
        %461 = vmatprep.subr.mxu0 0.0
        %462 = vmatpush2.msra.mxu0 0.0
        %463 = vmatprep.subr.mxu0 0.0
        %464 = vmatpush2.msra.mxu0 0.0
        %465 = vmatprep.subr.mxu0 0.0
        %466 = vmatpush2.msra.mxu0 0.0
        %467 = vmatprep.subr.mxu0 0.0
        %468 = vmatpush2.msra.mxu0 0.0
        %469 = vmatprep.subr.mxu0 0.0
        %470 = vmatpush2.msra.mxu0 0.0
        %471 = vmatprep.subr.mxu0 0.0
        %472 = vmatpush2.msra.mxu0 0.0
        %473 = vmatprep.subr.mxu0 0.0
        %474 = vmatpush2.msra.mxu0 0.0
        %475 = vmatprep.subr.mxu0 0.0
        %476 = vmatpush2.msra.mxu0 0.0
        %477 = vmatprep.subr.mxu0 0.0
        %478 = vmatpush2.msra.mxu0 0.0
        %479 = vmatprep.subr.mxu0 0.0
        %480 = vmatpush2.msra.mxu0 0.0
        %481 = vmatprep.subr.mxu0 0.0
        %482 = vmatpush2.msra.mxu0 0.0
        %483 = vmatprep.subr.mxu0 0.0
        %484 = vmatpush2.msra.mxu0 0.0
        %485 = vmatprep.subr.mxu0 0.0
        %486 = vmatpush2.msra.mxu0 0.0
        %487 = vmatprep.subr.mxu0 0.0
        %488 = vmatpush2.msra.mxu0 0.0
        %489 = vmatprep.subr.mxu0 0.0
        %490 = vmatpush2.msra.mxu0 0.0
        %491 = vmatprep.mubr.f32.mxu0 0.0
        %492 = vmatmul.mubr.f32.gmra.mxu0 %v404
        %v493 = vpop.f32.mrf.mxu0
        %v494 = vadd.f32 %v400, %v493
        %v495 = vpop.f32.mrf.mxu0
        %496 = vmatprep.mubr.f32.mxu0 0.0
        %497 = vmatmul.mubr.f32.gmra.mxu0 %v407
        %v498 = vpop.f32.mrf.mxu0
        %v499 = vadd.f32 %v400, %v498
        %v500 = vpop.f32.mrf.mxu0
        %501 = vmatprep.mubr.f32.mxu0 0.0
        %502 = vmatmul.mubr.f32.gmra.mxu0 %v410
        %v503 = vpop.f32.mrf.mxu0
        %v504 = vadd.f32 %v400, %v503
        %v505 = vpop.f32.mrf.mxu0
        %506 = vmatprep.mubr.f32.mxu0 0.0
        %507 = vmatmul.mubr.f32.gmra.mxu0 %v413
        %v508 = vpop.f32.mrf.mxu0
        %v509 = vadd.f32 %v400, %v508
        %v510 = vpop.f32.mrf.mxu0
        %511 = vmatprep.mubr.f32.mxu0 0.0
        %512 = vmatmul.mubr.f32.gmra.mxu0 %v416
        %v513 = vpop.f32.mrf.mxu0
        %v514 = vadd.f32 %v400, %v513
        %v515 = vpop.f32.mrf.mxu0
        %516 = vmatprep.mubr.f32.mxu0 0.0
        %517 = vmatmul.mubr.f32.gmra.mxu0 %v419
        %v518 = vpop.f32.mrf.mxu0
        %v519 = vadd.f32 %v400, %v518
        %v520 = vpop.f32.mrf.mxu0
        %521 = vmatprep.mubr.f32.mxu0 0.0
        %522 = vmatmul.mubr.f32.gmra.mxu0 %v422
        %v523 = vpop.f32.mrf.mxu0
        %v524 = vadd.f32 %v400, %v523
        %v525 = vpop.f32.mrf.mxu0
        %526 = vmatprep.mubr.f32.mxu0 0.0
        %527 = vmatmul.mubr.f32.gmra.mxu0 %v425
        %v528 = vpop.f32.mrf.mxu0
        %v529 = vadd.f32 %v400, %v528
        %v530 = vpop.f32.mrf.mxu0
        %531 = vdwg.mxu0
        %v532 = vld [vmem:[#allocation8] sm:$0xff]
        %v533 = vld [vmem:[#allocation8 + $0x8] sm:$0xff]
        %v534 = vld [vmem:[#allocation8 + $0x10] sm:$0xff]
        %v535 = vld [vmem:[#allocation8 + $0x18] sm:$0xff]
        %v536 = vld [vmem:[%s5] sm:$0x1]
        %v538 = vlaneseq
        %v539 = vshrl.u32 %v538, 7
        %v540 = vsub.s32 0, %v539
        %v541 = vrot.slane %v536, %v540
        %543 = vmatprep.subr.mxu0 0.0
        %544 = vmatpush1.msra.mxu0 0.0
        %545 = vmatprep.subr.mxu0 0.0
        %546 = vmatpush1.msra.mxu0 0.0
        %547 = vmatprep.subr.mxu0 0.0
        %548 = vmatpush1.msra.mxu0 0.0
        %549 = vmatprep.subr.mxu0 0.0
        %550 = vmatpush1.msra.mxu0 0.0
        %551 = vmatprep.subr.mxu0 0.0
        %552 = vmatpush1.msra.mxu0 0.0
        %553 = vmatprep.subr.mxu0 0.0
        %554 = vmatpush1.msra.mxu0 0.0
        %555 = vmatprep.subr.mxu0 0.0
        %556 = vmatpush1.msra.mxu0 0.0
        %557 = vmatprep.subr.mxu0 0.0
        %558 = vmatpush1.msra.mxu0 0.0
        %559 = vmatprep.subr.mxu0 0.0
        %560 = vmatpush1.msra.mxu0 0.0
        %561 = vmatprep.subr.mxu0 0.0
        %562 = vmatpush1.msra.mxu0 0.0
        %563 = vmatprep.subr.mxu0 0.0
        %564 = vmatpush1.msra.mxu0 0.0
        %565 = vmatprep.subr.mxu0 0.0
        %566 = vmatpush1.msra.mxu0 0.0
        %567 = vmatprep.subr.mxu0 0.0
        %568 = vmatpush1.msra.mxu0 %v535
        %569 = vmatprep.subr.mxu0 0.0
        %570 = vmatpush1.msra.mxu0 %v534
        %571 = vmatprep.subr.mxu0 0.0
        %572 = vmatpush1.msra.mxu0 %v533
        %573 = vmatprep.subr.mxu0 0.0
        %574 = vmatpush1.msra.mxu0 %v532
        %575 = vmatprep.subr.mxu0 0.0
        %576 = vmatpush2.msra.mxu0 0.0
        %577 = vmatprep.subr.mxu0 0.0
        %578 = vmatpush2.msra.mxu0 0.0
        %579 = vmatprep.subr.mxu0 0.0
        %580 = vmatpush2.msra.mxu0 0.0
        %581 = vmatprep.subr.mxu0 0.0
        %582 = vmatpush2.msra.mxu0 0.0
        %583 = vmatprep.subr.mxu0 0.0
        %584 = vmatpush2.msra.mxu0 0.0
        %585 = vmatprep.subr.mxu0 0.0
        %586 = vmatpush2.msra.mxu0 0.0
        %587 = vmatprep.subr.mxu0 0.0
        %588 = vmatpush2.msra.mxu0 0.0
        %589 = vmatprep.subr.mxu0 0.0
        %590 = vmatpush2.msra.mxu0 0.0
        %591 = vmatprep.subr.mxu0 0.0
        %592 = vmatpush2.msra.mxu0 0.0
        %593 = vmatprep.subr.mxu0 0.0
        %594 = vmatpush2.msra.mxu0 0.0
        %595 = vmatprep.subr.mxu0 0.0
        %596 = vmatpush2.msra.mxu0 0.0
        %597 = vmatprep.subr.mxu0 0.0
        %598 = vmatpush2.msra.mxu0 0.0
        %599 = vmatprep.subr.mxu0 0.0
        %600 = vmatpush2.msra.mxu0 0.0
        %601 = vmatprep.subr.mxu0 0.0
        %602 = vmatpush2.msra.mxu0 0.0
        %603 = vmatprep.subr.mxu0 0.0
        %604 = vmatpush2.msra.mxu0 0.0
        %605 = vmatprep.subr.mxu0 0.0
        %606 = vmatpush2.msra.mxu0 0.0
        %607 = vmatprep.mubr.f32.mxu0 0.0
        %608 = vmatmul.mubr.f32.gmra.mxu0 %v404
        %v609 = vpop.f32.mrf.mxu0
        %v610 = vadd.f32 %v541, %v609
        %v611 = vpop.f32.mrf.mxu0
        %612 = vmatprep.mubr.f32.mxu0 0.0
        %613 = vmatmul.mubr.f32.gmra.mxu0 %v407
        %v614 = vpop.f32.mrf.mxu0
        %v615 = vadd.f32 %v541, %v614
        %v616 = vpop.f32.mrf.mxu0
        %617 = vmatprep.mubr.f32.mxu0 0.0
        %618 = vmatmul.mubr.f32.gmra.mxu0 %v410
        %v619 = vpop.f32.mrf.mxu0
        %v620 = vadd.f32 %v541, %v619
        %v621 = vpop.f32.mrf.mxu0
        %622 = vmatprep.mubr.f32.mxu0 0.0
        %623 = vmatmul.mubr.f32.gmra.mxu0 %v413
        %v624 = vpop.f32.mrf.mxu0
        %v625 = vadd.f32 %v541, %v624
        %v626 = vpop.f32.mrf.mxu0
        %627 = vmatprep.mubr.f32.mxu0 0.0
        %628 = vmatmul.mubr.f32.gmra.mxu0 %v416
        %v629 = vpop.f32.mrf.mxu0
        %v630 = vadd.f32 %v541, %v629
        %v631 = vpop.f32.mrf.mxu0
        %632 = vmatprep.mubr.f32.mxu0 0.0
        %633 = vmatmul.mubr.f32.gmra.mxu0 %v419
        %v634 = vpop.f32.mrf.mxu0
        %v635 = vadd.f32 %v541, %v634
        %v636 = vpop.f32.mrf.mxu0
        %637 = vmatprep.mubr.f32.mxu0 0.0
        %638 = vmatmul.mubr.f32.gmra.mxu0 %v422
        %v639 = vpop.f32.mrf.mxu0
        %v640 = vadd.f32 %v541, %v639
        %v641 = vpop.f32.mrf.mxu0
        %642 = vmatprep.mubr.f32.mxu0 0.0
        %643 = vmatmul.mubr.f32.gmra.mxu0 %v425
        %v644 = vpop.f32.mrf.mxu0
        %v645 = vadd.f32 %v541, %v644
        %v646 = vpop.f32.mrf.mxu0
        %647 = vdwg.mxu0
        %v648 = vld [vmem:[#allocation2] sm:$0xff]
        %vm649 = vcmask 64512
        %v651 = vsel %vm649, %v648, 0
        %v654 = vsel %vm649, %v494, 0
        %v657 = vsel %vm649, %v499, 0
        %659 = vmatprep.subr.mxu0 0.0
        %660 = vmatpush1.xpose.msra.mxu0 0.0
        %661 = vmatprep.subr.mxu0 0.0
        %662 = vmatpush1.xpose.msra.mxu0 0.0
        %663 = vmatprep.subr.mxu0 0.0
        %664 = vmatpush1.xpose.msra.mxu0 0.0
        %665 = vmatprep.subr.mxu0 0.0
        %666 = vmatpush1.xpose.msra.mxu0 0.0
        %667 = vmatprep.subr.mxu0 0.0
        %668 = vmatpush1.xpose.msra.mxu0 0.0
        %669 = vmatprep.subr.mxu0 0.0
        %670 = vmatpush1.xpose.msra.mxu0 0.0
        %671 = vmatprep.subr.mxu0 0.0
        %672 = vmatpush1.xpose.msra.mxu0 0.0
        %673 = vmatprep.subr.mxu0 0.0
        %674 = vmatpush1.xpose.msra.mxu0 0.0
        %675 = vmatprep.subr.mxu0 0.0
        %676 = vmatpush1.xpose.msra.mxu0 0.0
        %677 = vmatprep.subr.mxu0 0.0
        %678 = vmatpush1.xpose.msra.mxu0 0.0
        %679 = vmatprep.subr.mxu0 0.0
        %680 = vmatpush1.xpose.msra.mxu0 0.0
        %681 = vmatprep.subr.mxu0 0.0
        %682 = vmatpush1.xpose.msra.mxu0 0.0
        %683 = vmatprep.subr.mxu0 0.0
        %684 = vmatpush1.xpose.msra.mxu0 0.0
        %685 = vmatprep.subr.mxu0 0.0
        %686 = vmatpush1.xpose.msra.mxu0 0.0
        %687 = vmatprep.subr.mxu0 0.0
        %688 = vmatpush1.xpose.msra.mxu0 %v657
        %689 = vmatprep.subr.mxu0 0.0
        %690 = vmatpush1.xpose.msra.mxu0 %v654
        %691 = vmatprep.subr.mxu0 0.0
        %692 = vmatpush2.xpose.msra.mxu0 0.0
        %693 = vmatprep.subr.mxu0 0.0
        %694 = vmatpush2.xpose.msra.mxu0 0.0
        %695 = vmatprep.subr.mxu0 0.0
        %696 = vmatpush2.xpose.msra.mxu0 0.0
        %697 = vmatprep.subr.mxu0 0.0
        %698 = vmatpush2.xpose.msra.mxu0 0.0
        %699 = vmatprep.subr.mxu0 0.0
        %700 = vmatpush2.xpose.msra.mxu0 0.0
        %701 = vmatprep.subr.mxu0 0.0
        %702 = vmatpush2.xpose.msra.mxu0 0.0
        %703 = vmatprep.subr.mxu0 0.0
        %704 = vmatpush2.xpose.msra.mxu0 0.0
        %705 = vmatprep.subr.mxu0 0.0
        %706 = vmatpush2.xpose.msra.mxu0 0.0
        %707 = vmatprep.subr.mxu0 0.0
        %708 = vmatpush2.xpose.msra.mxu0 0.0
        %709 = vmatprep.subr.mxu0 0.0
        %710 = vmatpush2.xpose.msra.mxu0 0.0
        %711 = vmatprep.subr.mxu0 0.0
        %712 = vmatpush2.xpose.msra.mxu0 0.0
        %713 = vmatprep.subr.mxu0 0.0
        %714 = vmatpush2.xpose.msra.mxu0 0.0
        %715 = vmatprep.subr.mxu0 0.0
        %716 = vmatpush2.xpose.msra.mxu0 0.0
        %717 = vmatprep.subr.mxu0 0.0
        %718 = vmatpush2.xpose.msra.mxu0 0.0
        %719 = vmatprep.subr.mxu0 0.0
        %720 = vmatpush2.xpose.msra.mxu0 0.0
        %721 = vmatprep.subr.mxu0 0.0
        %722 = vmatpush2.xpose.msra.mxu0 0.0
        %723 = vmatprep.mubr.f32.mxu0 0.0
        %724 = vmatmul.mubr.f32.gmra.mxu0 %v651
        %v725 = vpop.f32.mrf.mxu0
        %v726 = vadd.f32 0.0, %v725
        %v727 = vpop.f32.mrf.mxu0
        %728 = vdwg.mxu0
        %v730 = vsel %vm649, %v504, 0
        %v733 = vsel %vm649, %v509, 0
        %735 = vmatprep.subr.mxu0 0.0
        %736 = vmatpush1.xpose.msra.mxu0 0.0
        %737 = vmatprep.subr.mxu0 0.0
        %738 = vmatpush1.xpose.msra.mxu0 0.0
        %739 = vmatprep.subr.mxu0 0.0
        %740 = vmatpush1.xpose.msra.mxu0 0.0
        %741 = vmatprep.subr.mxu0 0.0
        %742 = vmatpush1.xpose.msra.mxu0 0.0
        %743 = vmatprep.subr.mxu0 0.0
        %744 = vmatpush1.xpose.msra.mxu0 0.0
        %745 = vmatprep.subr.mxu0 0.0
        %746 = vmatpush1.xpose.msra.mxu0 0.0
        %747 = vmatprep.subr.mxu0 0.0
        %748 = vmatpush1.xpose.msra.mxu0 0.0
        %749 = vmatprep.subr.mxu0 0.0
        %750 = vmatpush1.xpose.msra.mxu0 0.0
        %751 = vmatprep.subr.mxu0 0.0
        %752 = vmatpush1.xpose.msra.mxu0 0.0
        %753 = vmatprep.subr.mxu0 0.0
        %754 = vmatpush1.xpose.msra.mxu0 0.0
        %755 = vmatprep.subr.mxu0 0.0
        %756 = vmatpush1.xpose.msra.mxu0 0.0
        %757 = vmatprep.subr.mxu0 0.0
        %758 = vmatpush1.xpose.msra.mxu0 0.0
        %759 = vmatprep.subr.mxu0 0.0
        %760 = vmatpush1.xpose.msra.mxu0 0.0
        %761 = vmatprep.subr.mxu0 0.0
        %762 = vmatpush1.xpose.msra.mxu0 0.0
        %763 = vmatprep.subr.mxu0 0.0
        %764 = vmatpush1.xpose.msra.mxu0 %v733
        %765 = vmatprep.subr.mxu0 0.0
        %766 = vmatpush1.xpose.msra.mxu0 %v730
        %767 = vmatprep.subr.mxu0 0.0
        %768 = vmatpush2.xpose.msra.mxu0 0.0
        %769 = vmatprep.subr.mxu0 0.0
        %770 = vmatpush2.xpose.msra.mxu0 0.0
        %771 = vmatprep.subr.mxu0 0.0
        %772 = vmatpush2.xpose.msra.mxu0 0.0
        %773 = vmatprep.subr.mxu0 0.0
        %774 = vmatpush2.xpose.msra.mxu0 0.0
        %775 = vmatprep.subr.mxu0 0.0
        %776 = vmatpush2.xpose.msra.mxu0 0.0
        %777 = vmatprep.subr.mxu0 0.0
        %778 = vmatpush2.xpose.msra.mxu0 0.0
        %779 = vmatprep.subr.mxu0 0.0
        %780 = vmatpush2.xpose.msra.mxu0 0.0
        %781 = vmatprep.subr.mxu0 0.0
        %782 = vmatpush2.xpose.msra.mxu0 0.0
        %783 = vmatprep.subr.mxu0 0.0
        %784 = vmatpush2.xpose.msra.mxu0 0.0
        %785 = vmatprep.subr.mxu0 0.0
        %786 = vmatpush2.xpose.msra.mxu0 0.0
        %787 = vmatprep.subr.mxu0 0.0
        %788 = vmatpush2.xpose.msra.mxu0 0.0
        %789 = vmatprep.subr.mxu0 0.0
        %790 = vmatpush2.xpose.msra.mxu0 0.0
        %791 = vmatprep.subr.mxu0 0.0
        %792 = vmatpush2.xpose.msra.mxu0 0.0
        %793 = vmatprep.subr.mxu0 0.0
        %794 = vmatpush2.xpose.msra.mxu0 0.0
        %795 = vmatprep.subr.mxu0 0.0
        %796 = vmatpush2.xpose.msra.mxu0 0.0
        %797 = vmatprep.subr.mxu0 0.0
        %798 = vmatpush2.xpose.msra.mxu0 0.0
        %799 = vmatprep.mubr.f32.mxu0 0.0
        %800 = vmatmul.mubr.f32.gmra.mxu0 %v651
        %v801 = vpop.f32.mrf.mxu0
        %v802 = vadd.f32 0.0, %v801
        %v803 = vpop.f32.mrf.mxu0
        %804 = vdwg.mxu0
        %v806 = vsel %vm649, %v514, 0
        %v809 = vsel %vm649, %v519, 0
        %811 = vmatprep.subr.mxu0 0.0
        %812 = vmatpush1.xpose.msra.mxu0 0.0
        %813 = vmatprep.subr.mxu0 0.0
        %814 = vmatpush1.xpose.msra.mxu0 0.0
        %815 = vmatprep.subr.mxu0 0.0
        %816 = vmatpush1.xpose.msra.mxu0 0.0
        %817 = vmatprep.subr.mxu0 0.0
        %818 = vmatpush1.xpose.msra.mxu0 0.0
        %819 = vmatprep.subr.mxu0 0.0
        %820 = vmatpush1.xpose.msra.mxu0 0.0
        %821 = vmatprep.subr.mxu0 0.0
        %822 = vmatpush1.xpose.msra.mxu0 0.0
        %823 = vmatprep.subr.mxu0 0.0
        %824 = vmatpush1.xpose.msra.mxu0 0.0
        %825 = vmatprep.subr.mxu0 0.0
        %826 = vmatpush1.xpose.msra.mxu0 0.0
        %827 = vmatprep.subr.mxu0 0.0
        %828 = vmatpush1.xpose.msra.mxu0 0.0
        %829 = vmatprep.subr.mxu0 0.0
        %830 = vmatpush1.xpose.msra.mxu0 0.0
        %831 = vmatprep.subr.mxu0 0.0
        %832 = vmatpush1.xpose.msra.mxu0 0.0
        %833 = vmatprep.subr.mxu0 0.0
        %834 = vmatpush1.xpose.msra.mxu0 0.0
        %835 = vmatprep.subr.mxu0 0.0
        %836 = vmatpush1.xpose.msra.mxu0 0.0
        %837 = vmatprep.subr.mxu0 0.0
        %838 = vmatpush1.xpose.msra.mxu0 0.0
        %839 = vmatprep.subr.mxu0 0.0
        %840 = vmatpush1.xpose.msra.mxu0 %v809
        %841 = vmatprep.subr.mxu0 0.0
        %842 = vmatpush1.xpose.msra.mxu0 %v806
        %843 = vmatprep.subr.mxu0 0.0
        %844 = vmatpush2.xpose.msra.mxu0 0.0
        %845 = vmatprep.subr.mxu0 0.0
        %846 = vmatpush2.xpose.msra.mxu0 0.0
        %847 = vmatprep.subr.mxu0 0.0
        %848 = vmatpush2.xpose.msra.mxu0 0.0
        %849 = vmatprep.subr.mxu0 0.0
        %850 = vmatpush2.xpose.msra.mxu0 0.0
        %851 = vmatprep.subr.mxu0 0.0
        %852 = vmatpush2.xpose.msra.mxu0 0.0
        %853 = vmatprep.subr.mxu0 0.0
        %854 = vmatpush2.xpose.msra.mxu0 0.0
        %855 = vmatprep.subr.mxu0 0.0
        %856 = vmatpush2.xpose.msra.mxu0 0.0
        %857 = vmatprep.subr.mxu0 0.0
        %858 = vmatpush2.xpose.msra.mxu0 0.0
        %859 = vmatprep.subr.mxu0 0.0
        %860 = vmatpush2.xpose.msra.mxu0 0.0
        %861 = vmatprep.subr.mxu0 0.0
        %862 = vmatpush2.xpose.msra.mxu0 0.0
        %863 = vmatprep.subr.mxu0 0.0
        %864 = vmatpush2.xpose.msra.mxu0 0.0
        %865 = vmatprep.subr.mxu0 0.0
        %866 = vmatpush2.xpose.msra.mxu0 0.0
        %867 = vmatprep.subr.mxu0 0.0
        %868 = vmatpush2.xpose.msra.mxu0 0.0
        %869 = vmatprep.subr.mxu0 0.0
        %870 = vmatpush2.xpose.msra.mxu0 0.0
        %871 = vmatprep.subr.mxu0 0.0
        %872 = vmatpush2.xpose.msra.mxu0 0.0
        %873 = vmatprep.subr.mxu0 0.0
        %874 = vmatpush2.xpose.msra.mxu0 0.0
        %875 = vmatprep.mubr.f32.mxu0 0.0
        %876 = vmatmul.mubr.f32.gmra.mxu0 %v651
        %v877 = vpop.f32.mrf.mxu0
        %v878 = vadd.f32 0.0, %v877
        %v879 = vpop.f32.mrf.mxu0
        %880 = vdwg.mxu0
        %v882 = vsel %vm649, %v524, 0
        %v885 = vsel %vm649, %v529, 0
        %887 = vmatprep.subr.mxu0 0.0
        %888 = vmatpush1.xpose.msra.mxu0 0.0
        %889 = vmatprep.subr.mxu0 0.0
        %890 = vmatpush1.xpose.msra.mxu0 0.0
        %891 = vmatprep.subr.mxu0 0.0
        %892 = vmatpush1.xpose.msra.mxu0 0.0
        %893 = vmatprep.subr.mxu0 0.0
        %894 = vmatpush1.xpose.msra.mxu0 0.0
        %895 = vmatprep.subr.mxu0 0.0
        %896 = vmatpush1.xpose.msra.mxu0 0.0
        %897 = vmatprep.subr.mxu0 0.0
        %898 = vmatpush1.xpose.msra.mxu0 0.0
        %899 = vmatprep.subr.mxu0 0.0
        %900 = vmatpush1.xpose.msra.mxu0 0.0
        %901 = vmatprep.subr.mxu0 0.0
        %902 = vmatpush1.xpose.msra.mxu0 0.0
        %903 = vmatprep.subr.mxu0 0.0
        %904 = vmatpush1.xpose.msra.mxu0 0.0
        %905 = vmatprep.subr.mxu0 0.0
        %906 = vmatpush1.xpose.msra.mxu0 0.0
        %907 = vmatprep.subr.mxu0 0.0
        %908 = vmatpush1.xpose.msra.mxu0 0.0
        %909 = vmatprep.subr.mxu0 0.0
        %910 = vmatpush1.xpose.msra.mxu0 0.0
        %911 = vmatprep.subr.mxu0 0.0
        %912 = vmatpush1.xpose.msra.mxu0 0.0
        %913 = vmatprep.subr.mxu0 0.0
        %914 = vmatpush1.xpose.msra.mxu0 0.0
        %915 = vmatprep.subr.mxu0 0.0
        %916 = vmatpush1.xpose.msra.mxu0 %v885
        %917 = vmatprep.subr.mxu0 0.0
        %918 = vmatpush1.xpose.msra.mxu0 %v882
        %919 = vmatprep.subr.mxu0 0.0
        %920 = vmatpush2.xpose.msra.mxu0 0.0
        %921 = vmatprep.subr.mxu0 0.0
        %922 = vmatpush2.xpose.msra.mxu0 0.0
        %923 = vmatprep.subr.mxu0 0.0
        %924 = vmatpush2.xpose.msra.mxu0 0.0
        %925 = vmatprep.subr.mxu0 0.0
        %926 = vmatpush2.xpose.msra.mxu0 0.0
        %927 = vmatprep.subr.mxu0 0.0
        %928 = vmatpush2.xpose.msra.mxu0 0.0
        %929 = vmatprep.subr.mxu0 0.0
        %930 = vmatpush2.xpose.msra.mxu0 0.0
        %931 = vmatprep.subr.mxu0 0.0
        %932 = vmatpush2.xpose.msra.mxu0 0.0
        %933 = vmatprep.subr.mxu0 0.0
        %934 = vmatpush2.xpose.msra.mxu0 0.0
        %935 = vmatprep.subr.mxu0 0.0
        %936 = vmatpush2.xpose.msra.mxu0 0.0
        %937 = vmatprep.subr.mxu0 0.0
        %938 = vmatpush2.xpose.msra.mxu0 0.0
        %939 = vmatprep.subr.mxu0 0.0
        %940 = vmatpush2.xpose.msra.mxu0 0.0
        %941 = vmatprep.subr.mxu0 0.0
        %942 = vmatpush2.xpose.msra.mxu0 0.0
        %943 = vmatprep.subr.mxu0 0.0
        %944 = vmatpush2.xpose.msra.mxu0 0.0
        %945 = vmatprep.subr.mxu0 0.0
        %946 = vmatpush2.xpose.msra.mxu0 0.0
        %947 = vmatprep.subr.mxu0 0.0
        %948 = vmatpush2.xpose.msra.mxu0 0.0
        %949 = vmatprep.subr.mxu0 0.0
        %950 = vmatpush2.xpose.msra.mxu0 0.0
        %951 = vmatprep.mubr.f32.mxu0 0.0
        %952 = vmatmul.mubr.f32.gmra.mxu0 %v651
        %v953 = vpop.f32.mrf.mxu0
        %v954 = vadd.f32 0.0, %v953
        %v955 = vpop.f32.mrf.mxu0
        %956 = vdwg.mxu0
        %vm957 = vcmask 130048
        %v958 = vsel %vm957, %v726, -inf
        %959 = vmax.xlane.f32.xlu0 %v958
        %v960 = vpop.xlane.xlu0 %959
        %v961 = vsel %vm957, %v802, -inf
        %962 = vmax.xlane.f32.xlu0 %v961
        %v963 = vpop.xlane.xlu0 %962
        %v964 = vsel %vm957, %v878, -inf
        %965 = vmax.xlane.f32.xlu0 %v964
        %v966 = vpop.xlane.xlu0 %965
        %v967 = vsel %vm957, %v954, -inf
        %968 = vmax.xlane.f32.xlu0 %v967
        %v969 = vpop.xlane.xlu0 %968
        %v970 = vsub.f32 %v726, %v960
        %v971 = vsub.f32 %v802, %v963
        %v972 = vsub.f32 %v878, %v966
        %v973 = vsub.f32 %v954, %v969
        %v974 = vmul.f32 %v970, 1.442695
        %v975 = vpow.pop %v974
        %v976 = vmul.f32 %v971, 1.442695
        %v977 = vpow.pop %v976
        %v978 = vmul.f32 %v972, 1.442695
        %v979 = vpow.pop %v978
        %v980 = vmul.f32 %v973, 1.442695
        %v981 = vpow.pop %v980
        %v982 = vsel %vm957, %v975, 0.0
        %983 = vadd.xlane.f32.xlu0 %v982
        %v984 = vpop.xlane.xlu0 %983
        %v985 = vsel %vm957, %v977, 0.0
        %986 = vadd.xlane.f32.xlu0 %v985
        %v987 = vpop.xlane.xlu0 %986
        %v988 = vsel %vm957, %v979, 0.0
        %989 = vadd.xlane.f32.xlu0 %v988
        %v990 = vpop.xlane.xlu0 %989
        %v991 = vsel %vm957, %v981, 0.0
        %992 = vadd.xlane.f32.xlu0 %v991
        %v993 = vpop.xlane.xlu0 %992
        %v994 = vrcp.pop %v984
        %v995 = vrcp.pop %v987
        %v996 = vrcp.pop %v990
        %v997 = vrcp.pop %v993
        %v998 = vmul.f32 %v975, %v994
        %v999 = vmul.f32 %v977, %v995
        %v1000 = vmul.f32 %v979, %v996
        %v1001 = vmul.f32 %v981, %v997
        %v1003 = vsel %vm957, %v998, 0
        %1005 = vmatprep.subr.mxu0 0.0
        %1006 = vmatpush1.msra.mxu0 0.0
        %1007 = vmatprep.subr.mxu0 0.0
        %1008 = vmatpush1.msra.mxu0 0.0
        %1009 = vmatprep.subr.mxu0 0.0
        %1010 = vmatpush1.msra.mxu0 0.0
        %1011 = vmatprep.subr.mxu0 0.0
        %1012 = vmatpush1.msra.mxu0 0.0
        %1013 = vmatprep.subr.mxu0 0.0
        %1014 = vmatpush1.msra.mxu0 0.0
        %1015 = vmatprep.subr.mxu0 0.0
        %1016 = vmatpush1.msra.mxu0 0.0
        %1017 = vmatprep.subr.mxu0 0.0
        %1018 = vmatpush1.msra.mxu0 0.0
        %1019 = vmatprep.subr.mxu0 0.0
        %1020 = vmatpush1.msra.mxu0 0.0
        %1021 = vmatprep.subr.mxu0 0.0
        %1022 = vmatpush1.msra.mxu0 0.0
        %1023 = vmatprep.subr.mxu0 0.0
        %1024 = vmatpush1.msra.mxu0 0.0
        %1025 = vmatprep.subr.mxu0 0.0
        %1026 = vmatpush1.msra.mxu0 0.0
        %1027 = vmatprep.subr.mxu0 0.0
        %1028 = vmatpush1.msra.mxu0 0.0
        %1029 = vmatprep.subr.mxu0 0.0
        %1030 = vmatpush1.msra.mxu0 0.0
        %1031 = vmatprep.subr.mxu0 0.0
        %1032 = vmatpush1.msra.mxu0 0.0
        %1033 = vmatprep.subr.mxu0 0.0
        %1034 = vmatpush1.msra.mxu0 %v615
        %1035 = vmatprep.subr.mxu0 0.0
        %1036 = vmatpush1.msra.mxu0 %v610
        %1037 = vmatprep.subr.mxu0 0.0
        %1038 = vmatpush2.msra.mxu0 0.0
        %1039 = vmatprep.subr.mxu0 0.0
        %1040 = vmatpush2.msra.mxu0 0.0
        %1041 = vmatprep.subr.mxu0 0.0
        %1042 = vmatpush2.msra.mxu0 0.0
        %1043 = vmatprep.subr.mxu0 0.0
        %1044 = vmatpush2.msra.mxu0 0.0
        %1045 = vmatprep.subr.mxu0 0.0
        %1046 = vmatpush2.msra.mxu0 0.0
        %1047 = vmatprep.subr.mxu0 0.0
        %1048 = vmatpush2.msra.mxu0 0.0
        %1049 = vmatprep.subr.mxu0 0.0
        %1050 = vmatpush2.msra.mxu0 0.0
        %1051 = vmatprep.subr.mxu0 0.0
        %1052 = vmatpush2.msra.mxu0 0.0
        %1053 = vmatprep.subr.mxu0 0.0
        %1054 = vmatpush2.msra.mxu0 0.0
        %1055 = vmatprep.subr.mxu0 0.0
        %1056 = vmatpush2.msra.mxu0 0.0
        %1057 = vmatprep.subr.mxu0 0.0
        %1058 = vmatpush2.msra.mxu0 0.0
        %1059 = vmatprep.subr.mxu0 0.0
        %1060 = vmatpush2.msra.mxu0 0.0
        %1061 = vmatprep.subr.mxu0 0.0
        %1062 = vmatpush2.msra.mxu0 0.0
        %1063 = vmatprep.subr.mxu0 0.0
        %1064 = vmatpush2.msra.mxu0 0.0
        %1065 = vmatprep.subr.mxu0 0.0
        %1066 = vmatpush2.msra.mxu0 0.0
        %1067 = vmatprep.subr.mxu0 0.0
        %1068 = vmatpush2.msra.mxu0 0.0
        %1069 = vmatprep.mubr.f32.mxu0 0.0
        %1070 = vmatmul.mubr.f32.gmra.mxu0 %v1003
        %v1071 = vpop.f32.mrf.mxu0
        %v1072 = vadd.f32 0.0, %v1071
        %v1073 = vpop.f32.mrf.mxu0
        %1074 = vdwg.mxu0
        %v1076 = vsel %vm957, %v999, 0
        %1078 = vmatprep.subr.mxu0 0.0
        %1079 = vmatpush1.msra.mxu0 0.0
        %1080 = vmatprep.subr.mxu0 0.0
        %1081 = vmatpush1.msra.mxu0 0.0
        %1082 = vmatprep.subr.mxu0 0.0
        %1083 = vmatpush1.msra.mxu0 0.0
        %1084 = vmatprep.subr.mxu0 0.0
        %1085 = vmatpush1.msra.mxu0 0.0
        %1086 = vmatprep.subr.mxu0 0.0
        %1087 = vmatpush1.msra.mxu0 0.0
        %1088 = vmatprep.subr.mxu0 0.0
        %1089 = vmatpush1.msra.mxu0 0.0
        %1090 = vmatprep.subr.mxu0 0.0
        %1091 = vmatpush1.msra.mxu0 0.0
        %1092 = vmatprep.subr.mxu0 0.0
        %1093 = vmatpush1.msra.mxu0 0.0
        %1094 = vmatprep.subr.mxu0 0.0
        %1095 = vmatpush1.msra.mxu0 0.0
        %1096 = vmatprep.subr.mxu0 0.0
        %1097 = vmatpush1.msra.mxu0 0.0
        %1098 = vmatprep.subr.mxu0 0.0
        %1099 = vmatpush1.msra.mxu0 0.0
        %1100 = vmatprep.subr.mxu0 0.0
        %1101 = vmatpush1.msra.mxu0 0.0
        %1102 = vmatprep.subr.mxu0 0.0
        %1103 = vmatpush1.msra.mxu0 0.0
        %1104 = vmatprep.subr.mxu0 0.0
        %1105 = vmatpush1.msra.mxu0 0.0
        %1106 = vmatprep.subr.mxu0 0.0
        %1107 = vmatpush1.msra.mxu0 %v625
        %1108 = vmatprep.subr.mxu0 0.0
        %1109 = vmatpush1.msra.mxu0 %v620
        %1110 = vmatprep.subr.mxu0 0.0
        %1111 = vmatpush2.msra.mxu0 0.0
        %1112 = vmatprep.subr.mxu0 0.0
        %1113 = vmatpush2.msra.mxu0 0.0
        %1114 = vmatprep.subr.mxu0 0.0
        %1115 = vmatpush2.msra.mxu0 0.0
        %1116 = vmatprep.subr.mxu0 0.0
        %1117 = vmatpush2.msra.mxu0 0.0
        %1118 = vmatprep.subr.mxu0 0.0
        %1119 = vmatpush2.msra.mxu0 0.0
        %1120 = vmatprep.subr.mxu0 0.0
        %1121 = vmatpush2.msra.mxu0 0.0
        %1122 = vmatprep.subr.mxu0 0.0
        %1123 = vmatpush2.msra.mxu0 0.0
        %1124 = vmatprep.subr.mxu0 0.0
        %1125 = vmatpush2.msra.mxu0 0.0
        %1126 = vmatprep.subr.mxu0 0.0
        %1127 = vmatpush2.msra.mxu0 0.0
        %1128 = vmatprep.subr.mxu0 0.0
        %1129 = vmatpush2.msra.mxu0 0.0
        %1130 = vmatprep.subr.mxu0 0.0
        %1131 = vmatpush2.msra.mxu0 0.0
        %1132 = vmatprep.subr.mxu0 0.0
        %1133 = vmatpush2.msra.mxu0 0.0
        %1134 = vmatprep.subr.mxu0 0.0
        %1135 = vmatpush2.msra.mxu0 0.0
        %1136 = vmatprep.subr.mxu0 0.0
        %1137 = vmatpush2.msra.mxu0 0.0
        %1138 = vmatprep.subr.mxu0 0.0
        %1139 = vmatpush2.msra.mxu0 0.0
        %1140 = vmatprep.subr.mxu0 0.0
        %1141 = vmatpush2.msra.mxu0 0.0
        %1142 = vmatprep.mubr.f32.mxu0 0.0
        %1143 = vmatmul.mubr.f32.gmra.mxu0 %v1076
        %v1144 = vpop.f32.mrf.mxu0
        %v1145 = vadd.f32 0.0, %v1144
        %v1146 = vpop.f32.mrf.mxu0
        %1147 = vdwg.mxu0
        %v1149 = vsel %vm957, %v1000, 0
        %1151 = vmatprep.subr.mxu0 0.0
        %1152 = vmatpush1.msra.mxu0 0.0
        %1153 = vmatprep.subr.mxu0 0.0
        %1154 = vmatpush1.msra.mxu0 0.0
        %1155 = vmatprep.subr.mxu0 0.0
        %1156 = vmatpush1.msra.mxu0 0.0
        %1157 = vmatprep.subr.mxu0 0.0
        %1158 = vmatpush1.msra.mxu0 0.0
        %1159 = vmatprep.subr.mxu0 0.0
        %1160 = vmatpush1.msra.mxu0 0.0
        %1161 = vmatprep.subr.mxu0 0.0
        %1162 = vmatpush1.msra.mxu0 0.0
        %1163 = vmatprep.subr.mxu0 0.0
        %1164 = vmatpush1.msra.mxu0 0.0
        %1165 = vmatprep.subr.mxu0 0.0
        %1166 = vmatpush1.msra.mxu0 0.0
        %1167 = vmatprep.subr.mxu0 0.0
        %1168 = vmatpush1.msra.mxu0 0.0
        %1169 = vmatprep.subr.mxu0 0.0
        %1170 = vmatpush1.msra.mxu0 0.0
        %1171 = vmatprep.subr.mxu0 0.0
        %1172 = vmatpush1.msra.mxu0 0.0
        %1173 = vmatprep.subr.mxu0 0.0
        %1174 = vmatpush1.msra.mxu0 0.0
        %1175 = vmatprep.subr.mxu0 0.0
        %1176 = vmatpush1.msra.mxu0 0.0
        %1177 = vmatprep.subr.mxu0 0.0
        %1178 = vmatpush1.msra.mxu0 0.0
        %1179 = vmatprep.subr.mxu0 0.0
        %1180 = vmatpush1.msra.mxu0 %v635
        %1181 = vmatprep.subr.mxu0 0.0
        %1182 = vmatpush1.msra.mxu0 %v630
        %1183 = vmatprep.subr.mxu0 0.0
        %1184 = vmatpush2.msra.mxu0 0.0
        %1185 = vmatprep.subr.mxu0 0.0
        %1186 = vmatpush2.msra.mxu0 0.0
        %1187 = vmatprep.subr.mxu0 0.0
        %1188 = vmatpush2.msra.mxu0 0.0
        %1189 = vmatprep.subr.mxu0 0.0
        %1190 = vmatpush2.msra.mxu0 0.0
        %1191 = vmatprep.subr.mxu0 0.0
        %1192 = vmatpush2.msra.mxu0 0.0
        %1193 = vmatprep.subr.mxu0 0.0
        %1194 = vmatpush2.msra.mxu0 0.0
        %1195 = vmatprep.subr.mxu0 0.0
        %1196 = vmatpush2.msra.mxu0 0.0
        %1197 = vmatprep.subr.mxu0 0.0
        %1198 = vmatpush2.msra.mxu0 0.0
        %1199 = vmatprep.subr.mxu0 0.0
        %1200 = vmatpush2.msra.mxu0 0.0
        %1201 = vmatprep.subr.mxu0 0.0
        %1202 = vmatpush2.msra.mxu0 0.0
        %1203 = vmatprep.subr.mxu0 0.0
        %1204 = vmatpush2.msra.mxu0 0.0
        %1205 = vmatprep.subr.mxu0 0.0
        %1206 = vmatpush2.msra.mxu0 0.0
        %1207 = vmatprep.subr.mxu0 0.0
        %1208 = vmatpush2.msra.mxu0 0.0
        %1209 = vmatprep.subr.mxu0 0.0
        %1210 = vmatpush2.msra.mxu0 0.0
        %1211 = vmatprep.subr.mxu0 0.0
        %1212 = vmatpush2.msra.mxu0 0.0
        %1213 = vmatprep.subr.mxu0 0.0
        %1214 = vmatpush2.msra.mxu0 0.0
        %1215 = vmatprep.mubr.f32.mxu0 0.0
        %1216 = vmatmul.mubr.f32.gmra.mxu0 %v1149
        %v1217 = vpop.f32.mrf.mxu0
        %v1218 = vadd.f32 0.0, %v1217
        %v1219 = vpop.f32.mrf.mxu0
        %1220 = vdwg.mxu0
        %v1222 = vsel %vm957, %v1001, 0
        %1224 = vmatprep.subr.mxu0 0.0
        %1225 = vmatpush1.msra.mxu0 0.0
        %1226 = vmatprep.subr.mxu0 0.0
        %1227 = vmatpush1.msra.mxu0 0.0
        %1228 = vmatprep.subr.mxu0 0.0
        %1229 = vmatpush1.msra.mxu0 0.0
        %1230 = vmatprep.subr.mxu0 0.0
        %1231 = vmatpush1.msra.mxu0 0.0
        %1232 = vmatprep.subr.mxu0 0.0
        %1233 = vmatpush1.msra.mxu0 0.0
        %1234 = vmatprep.subr.mxu0 0.0
        %1235 = vmatpush1.msra.mxu0 0.0
        %1236 = vmatprep.subr.mxu0 0.0
        %1237 = vmatpush1.msra.mxu0 0.0
        %1238 = vmatprep.subr.mxu0 0.0
        %1239 = vmatpush1.msra.mxu0 0.0
        %1240 = vmatprep.subr.mxu0 0.0
        %1241 = vmatpush1.msra.mxu0 0.0
        %1242 = vmatprep.subr.mxu0 0.0
        %1243 = vmatpush1.msra.mxu0 0.0
        %1244 = vmatprep.subr.mxu0 0.0
        %1245 = vmatpush1.msra.mxu0 0.0
        %1246 = vmatprep.subr.mxu0 0.0
        %1247 = vmatpush1.msra.mxu0 0.0
        %1248 = vmatprep.subr.mxu0 0.0
        %1249 = vmatpush1.msra.mxu0 0.0
        %1250 = vmatprep.subr.mxu0 0.0
        %1251 = vmatpush1.msra.mxu0 0.0
        %1252 = vmatprep.subr.mxu0 0.0
        %1253 = vmatpush1.msra.mxu0 %v645
        %1254 = vmatprep.subr.mxu0 0.0
        %1255 = vmatpush1.msra.mxu0 %v640
        %1256 = vmatprep.subr.mxu0 0.0
        %1257 = vmatpush2.msra.mxu0 0.0
        %1258 = vmatprep.subr.mxu0 0.0
        %1259 = vmatpush2.msra.mxu0 0.0
        %1260 = vmatprep.subr.mxu0 0.0
        %1261 = vmatpush2.msra.mxu0 0.0
        %1262 = vmatprep.subr.mxu0 0.0
        %1263 = vmatpush2.msra.mxu0 0.0
        %1264 = vmatprep.subr.mxu0 0.0
        %1265 = vmatpush2.msra.mxu0 0.0
        %1266 = vmatprep.subr.mxu0 0.0
        %1267 = vmatpush2.msra.mxu0 0.0
        %1268 = vmatprep.subr.mxu0 0.0
        %1269 = vmatpush2.msra.mxu0 0.0
        %1270 = vmatprep.subr.mxu0 0.0
        %1271 = vmatpush2.msra.mxu0 0.0
        %1272 = vmatprep.subr.mxu0 0.0
        %1273 = vmatpush2.msra.mxu0 0.0
        %1274 = vmatprep.subr.mxu0 0.0
        %1275 = vmatpush2.msra.mxu0 0.0
        %1276 = vmatprep.subr.mxu0 0.0
        %1277 = vmatpush2.msra.mxu0 0.0
        %1278 = vmatprep.subr.mxu0 0.0
        %1279 = vmatpush2.msra.mxu0 0.0
        %1280 = vmatprep.subr.mxu0 0.0
        %1281 = vmatpush2.msra.mxu0 0.0
        %1282 = vmatprep.subr.mxu0 0.0
        %1283 = vmatpush2.msra.mxu0 0.0
        %1284 = vmatprep.subr.mxu0 0.0
        %1285 = vmatpush2.msra.mxu0 0.0
        %1286 = vmatprep.subr.mxu0 0.0
        %1287 = vmatpush2.msra.mxu0 0.0
        %1288 = vmatprep.mubr.f32.mxu0 0.0
        %1289 = vmatmul.mubr.f32.gmra.mxu0 %v1222
        %v1290 = vpop.f32.mrf.mxu0
        %v1291 = vadd.f32 0.0, %v1290
        %v1292 = vpop.f32.mrf.mxu0
        %1293 = vdwg.mxu0
        %v1294 = vadd.f32 %v648, %v1072
        %v1295 = vadd.f32 %v648, %v1145
        %v1296 = vadd.f32 %v648, %v1218
        %v1297 = vadd.f32 %v648, %v1291
        %1298 = vrot.lane.b32.xlu0 %v648, 120
        %v1299 = vpop.permute.xlu0 %1298
        %1300 = vrot.lane.b32.xlu0 %v494, 120
        %v1301 = vpop.permute.xlu0 %1300
        %1302 = vrot.lane.b32.xlu0 %v499, 120
        %v1303 = vpop.permute.xlu0 %1302
        %v1304 = vsel %vm649, %v1299, 0
        %v1306 = vsel %vm649, %v1301, 0
        %v1308 = vsel %vm649, %v1303, 0
        %1310 = vmatprep.subr.mxu0 0.0
        %1311 = vmatpush1.xpose.msra.mxu0 0.0
        %1312 = vmatprep.subr.mxu0 0.0
        %1313 = vmatpush1.xpose.msra.mxu0 0.0
        %1314 = vmatprep.subr.mxu0 0.0
        %1315 = vmatpush1.xpose.msra.mxu0 0.0
        %1316 = vmatprep.subr.mxu0 0.0
        %1317 = vmatpush1.xpose.msra.mxu0 0.0
        %1318 = vmatprep.subr.mxu0 0.0
        %1319 = vmatpush1.xpose.msra.mxu0 0.0
        %1320 = vmatprep.subr.mxu0 0.0
        %1321 = vmatpush1.xpose.msra.mxu0 0.0
        %1322 = vmatprep.subr.mxu0 0.0
        %1323 = vmatpush1.xpose.msra.mxu0 0.0
        %1324 = vmatprep.subr.mxu0 0.0
        %1325 = vmatpush1.xpose.msra.mxu0 0.0
        %1326 = vmatprep.subr.mxu0 0.0
        %1327 = vmatpush1.xpose.msra.mxu0 0.0
        %1328 = vmatprep.subr.mxu0 0.0
        %1329 = vmatpush1.xpose.msra.mxu0 0.0
        %1330 = vmatprep.subr.mxu0 0.0
        %1331 = vmatpush1.xpose.msra.mxu0 0.0
        %1332 = vmatprep.subr.mxu0 0.0
        %1333 = vmatpush1.xpose.msra.mxu0 0.0
        %1334 = vmatprep.subr.mxu0 0.0
        %1335 = vmatpush1.xpose.msra.mxu0 0.0
        %1336 = vmatprep.subr.mxu0 0.0
        %1337 = vmatpush1.xpose.msra.mxu0 0.0
        %1338 = vmatprep.subr.mxu0 0.0
        %1339 = vmatpush1.xpose.msra.mxu0 %v1308
        %1340 = vmatprep.subr.mxu0 0.0
        %1341 = vmatpush1.xpose.msra.mxu0 %v1306
        %1342 = vmatprep.subr.mxu0 0.0
        %1343 = vmatpush2.xpose.msra.mxu0 0.0
        %1344 = vmatprep.subr.mxu0 0.0
        %1345 = vmatpush2.xpose.msra.mxu0 0.0
        %1346 = vmatprep.subr.mxu0 0.0
        %1347 = vmatpush2.xpose.msra.mxu0 0.0
        %1348 = vmatprep.subr.mxu0 0.0
        %1349 = vmatpush2.xpose.msra.mxu0 0.0
        %1350 = vmatprep.subr.mxu0 0.0
        %1351 = vmatpush2.xpose.msra.mxu0 0.0
        %1352 = vmatprep.subr.mxu0 0.0
        %1353 = vmatpush2.xpose.msra.mxu0 0.0
        %1354 = vmatprep.subr.mxu0 0.0
        %1355 = vmatpush2.xpose.msra.mxu0 0.0
        %1356 = vmatprep.subr.mxu0 0.0
        %1357 = vmatpush2.xpose.msra.mxu0 0.0
        %1358 = vmatprep.subr.mxu0 0.0
        %1359 = vmatpush2.xpose.msra.mxu0 0.0
        %1360 = vmatprep.subr.mxu0 0.0
        %1361 = vmatpush2.xpose.msra.mxu0 0.0
        %1362 = vmatprep.subr.mxu0 0.0
        %1363 = vmatpush2.xpose.msra.mxu0 0.0
        %1364 = vmatprep.subr.mxu0 0.0
        %1365 = vmatpush2.xpose.msra.mxu0 0.0
        %1366 = vmatprep.subr.mxu0 0.0
        %1367 = vmatpush2.xpose.msra.mxu0 0.0
        %1368 = vmatprep.subr.mxu0 0.0
        %1369 = vmatpush2.xpose.msra.mxu0 0.0
        %1370 = vmatprep.subr.mxu0 0.0
        %1371 = vmatpush2.xpose.msra.mxu0 0.0
        %1372 = vmatprep.subr.mxu0 0.0
        %1373 = vmatpush2.xpose.msra.mxu0 0.0
        %1374 = vmatprep.mubr.f32.mxu0 0.0
        %1375 = vmatmul.mubr.f32.gmra.mxu0 %v1304
        %v1376 = vpop.f32.mrf.mxu0
        %v1377 = vadd.f32 0.0, %v1376
        %v1378 = vpop.f32.mrf.mxu0
        %1379 = vdwg.mxu0
        %1380 = vrot.lane.b32.xlu0 %v504, 120
        %v1381 = vpop.permute.xlu0 %1380
        %1382 = vrot.lane.b32.xlu0 %v509, 120
        %v1383 = vpop.permute.xlu0 %1382
        %v1384 = vsel %vm649, %v1381, 0
        %v1386 = vsel %vm649, %v1383, 0
        %1388 = vmatprep.subr.mxu0 0.0
        %1389 = vmatpush1.xpose.msra.mxu0 0.0
        %1390 = vmatprep.subr.mxu0 0.0
        %1391 = vmatpush1.xpose.msra.mxu0 0.0
        %1392 = vmatprep.subr.mxu0 0.0
        %1393 = vmatpush1.xpose.msra.mxu0 0.0
        %1394 = vmatprep.subr.mxu0 0.0
        %1395 = vmatpush1.xpose.msra.mxu0 0.0
        %1396 = vmatprep.subr.mxu0 0.0
        %1397 = vmatpush1.xpose.msra.mxu0 0.0
        %1398 = vmatprep.subr.mxu0 0.0
        %1399 = vmatpush1.xpose.msra.mxu0 0.0
        %1400 = vmatprep.subr.mxu0 0.0
        %1401 = vmatpush1.xpose.msra.mxu0 0.0
        %1402 = vmatprep.subr.mxu0 0.0
        %1403 = vmatpush1.xpose.msra.mxu0 0.0
        %1404 = vmatprep.subr.mxu0 0.0
        %1405 = vmatpush1.xpose.msra.mxu0 0.0
        %1406 = vmatprep.subr.mxu0 0.0
        %1407 = vmatpush1.xpose.msra.mxu0 0.0
        %1408 = vmatprep.subr.mxu0 0.0
        %1409 = vmatpush1.xpose.msra.mxu0 0.0
        %1410 = vmatprep.subr.mxu0 0.0
        %1411 = vmatpush1.xpose.msra.mxu0 0.0
        %1412 = vmatprep.subr.mxu0 0.0
        %1413 = vmatpush1.xpose.msra.mxu0 0.0
        %1414 = vmatprep.subr.mxu0 0.0
        %1415 = vmatpush1.xpose.msra.mxu0 0.0
        %1416 = vmatprep.subr.mxu0 0.0
        %1417 = vmatpush1.xpose.msra.mxu0 %v1386
        %1418 = vmatprep.subr.mxu0 0.0
        %1419 = vmatpush1.xpose.msra.mxu0 %v1384
        %1420 = vmatprep.subr.mxu0 0.0
        %1421 = vmatpush2.xpose.msra.mxu0 0.0
        %1422 = vmatprep.subr.mxu0 0.0
        %1423 = vmatpush2.xpose.msra.mxu0 0.0
        %1424 = vmatprep.subr.mxu0 0.0
        %1425 = vmatpush2.xpose.msra.mxu0 0.0
        %1426 = vmatprep.subr.mxu0 0.0
        %1427 = vmatpush2.xpose.msra.mxu0 0.0
        %1428 = vmatprep.subr.mxu0 0.0
        %1429 = vmatpush2.xpose.msra.mxu0 0.0
        %1430 = vmatprep.subr.mxu0 0.0
        %1431 = vmatpush2.xpose.msra.mxu0 0.0
        %1432 = vmatprep.subr.mxu0 0.0
        %1433 = vmatpush2.xpose.msra.mxu0 0.0
        %1434 = vmatprep.subr.mxu0 0.0
        %1435 = vmatpush2.xpose.msra.mxu0 0.0
        %1436 = vmatprep.subr.mxu0 0.0
        %1437 = vmatpush2.xpose.msra.mxu0 0.0
        %1438 = vmatprep.subr.mxu0 0.0
        %1439 = vmatpush2.xpose.msra.mxu0 0.0
        %1440 = vmatprep.subr.mxu0 0.0
        %1441 = vmatpush2.xpose.msra.mxu0 0.0
        %1442 = vmatprep.subr.mxu0 0.0
        %1443 = vmatpush2.xpose.msra.mxu0 0.0
        %1444 = vmatprep.subr.mxu0 0.0
        %1445 = vmatpush2.xpose.msra.mxu0 0.0
        %1446 = vmatprep.subr.mxu0 0.0
        %1447 = vmatpush2.xpose.msra.mxu0 0.0
        %1448 = vmatprep.subr.mxu0 0.0
        %1449 = vmatpush2.xpose.msra.mxu0 0.0
        %1450 = vmatprep.subr.mxu0 0.0
        %1451 = vmatpush2.xpose.msra.mxu0 0.0
        %1452 = vmatprep.mubr.f32.mxu0 0.0
        %1453 = vmatmul.mubr.f32.gmra.mxu0 %v1304
        %v1454 = vpop.f32.mrf.mxu0
        %v1455 = vadd.f32 0.0, %v1454
        %v1456 = vpop.f32.mrf.mxu0
        %1457 = vdwg.mxu0
        %1458 = vrot.lane.b32.xlu0 %v514, 120
        %v1459 = vpop.permute.xlu0 %1458
        %1460 = vrot.lane.b32.xlu0 %v519, 120
        %v1461 = vpop.permute.xlu0 %1460
        %v1462 = vsel %vm649, %v1459, 0
        %v1464 = vsel %vm649, %v1461, 0
        %1466 = vmatprep.subr.mxu0 0.0
        %1467 = vmatpush1.xpose.msra.mxu0 0.0
        %1468 = vmatprep.subr.mxu0 0.0
        %1469 = vmatpush1.xpose.msra.mxu0 0.0
        %1470 = vmatprep.subr.mxu0 0.0
        %1471 = vmatpush1.xpose.msra.mxu0 0.0
        %1472 = vmatprep.subr.mxu0 0.0
        %1473 = vmatpush1.xpose.msra.mxu0 0.0
        %1474 = vmatprep.subr.mxu0 0.0
        %1475 = vmatpush1.xpose.msra.mxu0 0.0
        %1476 = vmatprep.subr.mxu0 0.0
        %1477 = vmatpush1.xpose.msra.mxu0 0.0
        %1478 = vmatprep.subr.mxu0 0.0
        %1479 = vmatpush1.xpose.msra.mxu0 0.0
        %1480 = vmatprep.subr.mxu0 0.0
        %1481 = vmatpush1.xpose.msra.mxu0 0.0
        %1482 = vmatprep.subr.mxu0 0.0
        %1483 = vmatpush1.xpose.msra.mxu0 0.0
        %1484 = vmatprep.subr.mxu0 0.0
        %1485 = vmatpush1.xpose.msra.mxu0 0.0
        %1486 = vmatprep.subr.mxu0 0.0
        %1487 = vmatpush1.xpose.msra.mxu0 0.0
        %1488 = vmatprep.subr.mxu0 0.0
        %1489 = vmatpush1.xpose.msra.mxu0 0.0
        %1490 = vmatprep.subr.mxu0 0.0
        %1491 = vmatpush1.xpose.msra.mxu0 0.0
        %1492 = vmatprep.subr.mxu0 0.0
        %1493 = vmatpush1.xpose.msra.mxu0 0.0
        %1494 = vmatprep.subr.mxu0 0.0
        %1495 = vmatpush1.xpose.msra.mxu0 %v1464
        %1496 = vmatprep.subr.mxu0 0.0
        %1497 = vmatpush1.xpose.msra.mxu0 %v1462
        %1498 = vmatprep.subr.mxu0 0.0
        %1499 = vmatpush2.xpose.msra.mxu0 0.0
        %1500 = vmatprep.subr.mxu0 0.0
        %1501 = vmatpush2.xpose.msra.mxu0 0.0
        %1502 = vmatprep.subr.mxu0 0.0
        %1503 = vmatpush2.xpose.msra.mxu0 0.0
        %1504 = vmatprep.subr.mxu0 0.0
        %1505 = vmatpush2.xpose.msra.mxu0 0.0
        %1506 = vmatprep.subr.mxu0 0.0
        %1507 = vmatpush2.xpose.msra.mxu0 0.0
        %1508 = vmatprep.subr.mxu0 0.0
        %1509 = vmatpush2.xpose.msra.mxu0 0.0
        %1510 = vmatprep.subr.mxu0 0.0
        %1511 = vmatpush2.xpose.msra.mxu0 0.0
        %1512 = vmatprep.subr.mxu0 0.0
        %1513 = vmatpush2.xpose.msra.mxu0 0.0
        %1514 = vmatprep.subr.mxu0 0.0
        %1515 = vmatpush2.xpose.msra.mxu0 0.0
        %1516 = vmatprep.subr.mxu0 0.0
        %1517 = vmatpush2.xpose.msra.mxu0 0.0
        %1518 = vmatprep.subr.mxu0 0.0
        %1519 = vmatpush2.xpose.msra.mxu0 0.0
        %1520 = vmatprep.subr.mxu0 0.0
        %1521 = vmatpush2.xpose.msra.mxu0 0.0
        %1522 = vmatprep.subr.mxu0 0.0
        %1523 = vmatpush2.xpose.msra.mxu0 0.0
        %1524 = vmatprep.subr.mxu0 0.0
        %1525 = vmatpush2.xpose.msra.mxu0 0.0
        %1526 = vmatprep.subr.mxu0 0.0
        %1527 = vmatpush2.xpose.msra.mxu0 0.0
        %1528 = vmatprep.subr.mxu0 0.0
        %1529 = vmatpush2.xpose.msra.mxu0 0.0
        %1530 = vmatprep.mubr.f32.mxu0 0.0
        %1531 = vmatmul.mubr.f32.gmra.mxu0 %v1304
        %v1532 = vpop.f32.mrf.mxu0
        %v1533 = vadd.f32 0.0, %v1532
        %v1534 = vpop.f32.mrf.mxu0
        %1535 = vdwg.mxu0
        %1536 = vrot.lane.b32.xlu0 %v524, 120
        %v1537 = vpop.permute.xlu0 %1536
        %1538 = vrot.lane.b32.xlu0 %v529, 120
        %v1539 = vpop.permute.xlu0 %1538
        %v1540 = vsel %vm649, %v1537, 0
        %v1542 = vsel %vm649, %v1539, 0
        %1544 = vmatprep.subr.mxu0 0.0
        %1545 = vmatpush1.xpose.msra.mxu0 0.0
        %1546 = vmatprep.subr.mxu0 0.0
        %1547 = vmatpush1.xpose.msra.mxu0 0.0
        %1548 = vmatprep.subr.mxu0 0.0
        %1549 = vmatpush1.xpose.msra.mxu0 0.0
        %1550 = vmatprep.subr.mxu0 0.0
        %1551 = vmatpush1.xpose.msra.mxu0 0.0
        %1552 = vmatprep.subr.mxu0 0.0
        %1553 = vmatpush1.xpose.msra.mxu0 0.0
        %1554 = vmatprep.subr.mxu0 0.0
        %1555 = vmatpush1.xpose.msra.mxu0 0.0
        %1556 = vmatprep.subr.mxu0 0.0
        %1557 = vmatpush1.xpose.msra.mxu0 0.0
        %1558 = vmatprep.subr.mxu0 0.0
        %1559 = vmatpush1.xpose.msra.mxu0 0.0
        %1560 = vmatprep.subr.mxu0 0.0
        %1561 = vmatpush1.xpose.msra.mxu0 0.0
        %1562 = vmatprep.subr.mxu0 0.0
        %1563 = vmatpush1.xpose.msra.mxu0 0.0
        %1564 = vmatprep.subr.mxu0 0.0
        %1565 = vmatpush1.xpose.msra.mxu0 0.0
        %1566 = vmatprep.subr.mxu0 0.0
        %1567 = vmatpush1.xpose.msra.mxu0 0.0
        %1568 = vmatprep.subr.mxu0 0.0
        %1569 = vmatpush1.xpose.msra.mxu0 0.0
        %1570 = vmatprep.subr.mxu0 0.0
        %1571 = vmatpush1.xpose.msra.mxu0 0.0
        %1572 = vmatprep.subr.mxu0 0.0
        %1573 = vmatpush1.xpose.msra.mxu0 %v1542
        %1574 = vmatprep.subr.mxu0 0.0
        %1575 = vmatpush1.xpose.msra.mxu0 %v1540
        %1576 = vmatprep.subr.mxu0 0.0
        %1577 = vmatpush2.xpose.msra.mxu0 0.0
        %1578 = vmatprep.subr.mxu0 0.0
        %1579 = vmatpush2.xpose.msra.mxu0 0.0
        %1580 = vmatprep.subr.mxu0 0.0
        %1581 = vmatpush2.xpose.msra.mxu0 0.0
        %1582 = vmatprep.subr.mxu0 0.0
        %1583 = vmatpush2.xpose.msra.mxu0 0.0
        %1584 = vmatprep.subr.mxu0 0.0
        %1585 = vmatpush2.xpose.msra.mxu0 0.0
        %1586 = vmatprep.subr.mxu0 0.0
        %1587 = vmatpush2.xpose.msra.mxu0 0.0
        %1588 = vmatprep.subr.mxu0 0.0
        %1589 = vmatpush2.xpose.msra.mxu0 0.0
        %1590 = vmatprep.subr.mxu0 0.0
        %1591 = vmatpush2.xpose.msra.mxu0 0.0
        %1592 = vmatprep.subr.mxu0 0.0
        %1593 = vmatpush2.xpose.msra.mxu0 0.0
        %1594 = vmatprep.subr.mxu0 0.0
        %1595 = vmatpush2.xpose.msra.mxu0 0.0
        %1596 = vmatprep.subr.mxu0 0.0
        %1597 = vmatpush2.xpose.msra.mxu0 0.0
        %1598 = vmatprep.subr.mxu0 0.0
        %1599 = vmatpush2.xpose.msra.mxu0 0.0
        %1600 = vmatprep.subr.mxu0 0.0
        %1601 = vmatpush2.xpose.msra.mxu0 0.0
        %1602 = vmatprep.subr.mxu0 0.0
        %1603 = vmatpush2.xpose.msra.mxu0 0.0
        %1604 = vmatprep.subr.mxu0 0.0
        %1605 = vmatpush2.xpose.msra.mxu0 0.0
        %1606 = vmatprep.subr.mxu0 0.0
        %1607 = vmatpush2.xpose.msra.mxu0 0.0
        %1608 = vmatprep.mubr.f32.mxu0 0.0
        %1609 = vmatmul.mubr.f32.gmra.mxu0 %v1304
        %v1610 = vpop.f32.mrf.mxu0
        %v1611 = vadd.f32 0.0, %v1610
        %v1612 = vpop.f32.mrf.mxu0
        %1613 = vdwg.mxu0
        %v1614 = vsel %vm957, %v1377, -inf
        %1615 = vmax.xlane.f32.xlu0 %v1614
        %v1616 = vpop.xlane.xlu0 %1615
        %v1617 = vsel %vm957, %v1455, -inf
        %1618 = vmax.xlane.f32.xlu0 %v1617
        %v1619 = vpop.xlane.xlu0 %1618
        %v1620 = vsel %vm957, %v1533, -inf
        %1621 = vmax.xlane.f32.xlu0 %v1620
        %v1622 = vpop.xlane.xlu0 %1621
        %v1623 = vsel %vm957, %v1611, -inf
        %1624 = vmax.xlane.f32.xlu0 %v1623
        %v1625 = vpop.xlane.xlu0 %1624
        %v1626 = vsub.f32 %v1377, %v1616
        %v1627 = vsub.f32 %v1455, %v1619
        %v1628 = vsub.f32 %v1533, %v1622
        %v1629 = vsub.f32 %v1611, %v1625
        %v1630 = vmul.f32 %v1626, 1.442695
        %v1631 = vpow.pop %v1630
        %v1632 = vmul.f32 %v1627, 1.442695
        %v1633 = vpow.pop %v1632
        %v1634 = vmul.f32 %v1628, 1.442695
        %v1635 = vpow.pop %v1634
        %v1636 = vmul.f32 %v1629, 1.442695
        %v1637 = vpow.pop %v1636
        %v1638 = vsel %vm957, %v1631, 0.0
        %1639 = vadd.xlane.f32.xlu0 %v1638
        %v1640 = vpop.xlane.xlu0 %1639
        %v1641 = vsel %vm957, %v1633, 0.0
        %1642 = vadd.xlane.f32.xlu0 %v1641
        %v1643 = vpop.xlane.xlu0 %1642
        %v1644 = vsel %vm957, %v1635, 0.0
        %1645 = vadd.xlane.f32.xlu0 %v1644
        %v1646 = vpop.xlane.xlu0 %1645
        %v1647 = vsel %vm957, %v1637, 0.0
        %1648 = vadd.xlane.f32.xlu0 %v1647
        %v1649 = vpop.xlane.xlu0 %1648
        %v1650 = vrcp.pop %v1640
        %v1651 = vrcp.pop %v1643
        %v1652 = vrcp.pop %v1646
        %v1653 = vrcp.pop %v1649
        %v1654 = vmul.f32 %v1631, %v1650
        %v1655 = vmul.f32 %v1633, %v1651
        %v1656 = vmul.f32 %v1635, %v1652
        %v1657 = vmul.f32 %v1637, %v1653
        %1660 = vrot.lane.b32.xlu0 %v610, 120
        %v1661 = vpop.permute.xlu0 %1660
        %1662 = vrot.lane.b32.xlu0 %v615, 120
        %v1663 = vpop.permute.xlu0 %1662
        %v1667 = vsel %vm957, %v1654, 0
        %1669 = vmatprep.subr.mxu0 0.0
        %1670 = vmatpush1.msra.mxu0 0.0
        %1671 = vmatprep.subr.mxu0 0.0
        %1672 = vmatpush1.msra.mxu0 0.0
        %1673 = vmatprep.subr.mxu0 0.0
        %1674 = vmatpush1.msra.mxu0 0.0
        %1675 = vmatprep.subr.mxu0 0.0
        %1676 = vmatpush1.msra.mxu0 0.0
        %1677 = vmatprep.subr.mxu0 0.0
        %1678 = vmatpush1.msra.mxu0 0.0
        %1679 = vmatprep.subr.mxu0 0.0
        %1680 = vmatpush1.msra.mxu0 0.0
        %1681 = vmatprep.subr.mxu0 0.0
        %1682 = vmatpush1.msra.mxu0 0.0
        %1683 = vmatprep.subr.mxu0 0.0
        %1684 = vmatpush1.msra.mxu0 0.0
        %1685 = vmatprep.subr.mxu0 0.0
        %1686 = vmatpush1.msra.mxu0 0.0
        %1687 = vmatprep.subr.mxu0 0.0
        %1688 = vmatpush1.msra.mxu0 0.0
        %1689 = vmatprep.subr.mxu0 0.0
        %1690 = vmatpush1.msra.mxu0 0.0
        %1691 = vmatprep.subr.mxu0 0.0
        %1692 = vmatpush1.msra.mxu0 0.0
        %1693 = vmatprep.subr.mxu0 0.0
        %1694 = vmatpush1.msra.mxu0 0.0
        %1695 = vmatprep.subr.mxu0 0.0
        %1696 = vmatpush1.msra.mxu0 0.0
        %1697 = vmatprep.subr.mxu0 0.0
        %1698 = vmatpush1.msra.mxu0 %v1663
        %1699 = vmatprep.subr.mxu0 0.0
        %1700 = vmatpush1.msra.mxu0 %v1661
        %1701 = vmatprep.subr.mxu0 0.0
        %1702 = vmatpush2.msra.mxu0 0.0
        %1703 = vmatprep.subr.mxu0 0.0
        %1704 = vmatpush2.msra.mxu0 0.0
        %1705 = vmatprep.subr.mxu0 0.0
        %1706 = vmatpush2.msra.mxu0 0.0
        %1707 = vmatprep.subr.mxu0 0.0
        %1708 = vmatpush2.msra.mxu0 0.0
        %1709 = vmatprep.subr.mxu0 0.0
        %1710 = vmatpush2.msra.mxu0 0.0
        %1711 = vmatprep.subr.mxu0 0.0
        %1712 = vmatpush2.msra.mxu0 0.0
        %1713 = vmatprep.subr.mxu0 0.0
        %1714 = vmatpush2.msra.mxu0 0.0
        %1715 = vmatprep.subr.mxu0 0.0
        %1716 = vmatpush2.msra.mxu0 0.0
        %1717 = vmatprep.subr.mxu0 0.0
        %1718 = vmatpush2.msra.mxu0 0.0
        %1719 = vmatprep.subr.mxu0 0.0
        %1720 = vmatpush2.msra.mxu0 0.0
        %1721 = vmatprep.subr.mxu0 0.0
        %1722 = vmatpush2.msra.mxu0 0.0
        %1723 = vmatprep.subr.mxu0 0.0
        %1724 = vmatpush2.msra.mxu0 0.0
        %1725 = vmatprep.subr.mxu0 0.0
        %1726 = vmatpush2.msra.mxu0 0.0
        %1727 = vmatprep.subr.mxu0 0.0
        %1728 = vmatpush2.msra.mxu0 0.0
        %1729 = vmatprep.subr.mxu0 0.0
        %1730 = vmatpush2.msra.mxu0 0.0
        %1731 = vmatprep.subr.mxu0 0.0
        %1732 = vmatpush2.msra.mxu0 0.0
        %1733 = vmatprep.mubr.f32.mxu0 0.0
        %1734 = vmatmul.mubr.f32.gmra.mxu0 %v1667
        %v1735 = vpop.f32.mrf.mxu0
        %v1736 = vadd.f32 0.0, %v1735
        %v1737 = vpop.f32.mrf.mxu0
        %1738 = vdwg.mxu0
        %1741 = vrot.lane.b32.xlu0 %v620, 120
        %v1742 = vpop.permute.xlu0 %1741
        %1743 = vrot.lane.b32.xlu0 %v625, 120
        %v1744 = vpop.permute.xlu0 %1743
        %v1748 = vsel %vm957, %v1655, 0
        %1750 = vmatprep.subr.mxu0 0.0
        %1751 = vmatpush1.msra.mxu0 0.0
        %1752 = vmatprep.subr.mxu0 0.0
        %1753 = vmatpush1.msra.mxu0 0.0
        %1754 = vmatprep.subr.mxu0 0.0
        %1755 = vmatpush1.msra.mxu0 0.0
        %1756 = vmatprep.subr.mxu0 0.0
        %1757 = vmatpush1.msra.mxu0 0.0
        %1758 = vmatprep.subr.mxu0 0.0
        %1759 = vmatpush1.msra.mxu0 0.0
        %1760 = vmatprep.subr.mxu0 0.0
        %1761 = vmatpush1.msra.mxu0 0.0
        %1762 = vmatprep.subr.mxu0 0.0
        %1763 = vmatpush1.msra.mxu0 0.0
        %1764 = vmatprep.subr.mxu0 0.0
        %1765 = vmatpush1.msra.mxu0 0.0
        %1766 = vmatprep.subr.mxu0 0.0
        %1767 = vmatpush1.msra.mxu0 0.0
        %1768 = vmatprep.subr.mxu0 0.0
        %1769 = vmatpush1.msra.mxu0 0.0
        %1770 = vmatprep.subr.mxu0 0.0
        %1771 = vmatpush1.msra.mxu0 0.0
        %1772 = vmatprep.subr.mxu0 0.0
        %1773 = vmatpush1.msra.mxu0 0.0
        %1774 = vmatprep.subr.mxu0 0.0
        %1775 = vmatpush1.msra.mxu0 0.0
        %1776 = vmatprep.subr.mxu0 0.0
        %1777 = vmatpush1.msra.mxu0 0.0
        %1778 = vmatprep.subr.mxu0 0.0
        %1779 = vmatpush1.msra.mxu0 %v1744
        %1780 = vmatprep.subr.mxu0 0.0
        %1781 = vmatpush1.msra.mxu0 %v1742
        %1782 = vmatprep.subr.mxu0 0.0
        %1783 = vmatpush2.msra.mxu0 0.0
        %1784 = vmatprep.subr.mxu0 0.0
        %1785 = vmatpush2.msra.mxu0 0.0
        %1786 = vmatprep.subr.mxu0 0.0
        %1787 = vmatpush2.msra.mxu0 0.0
        %1788 = vmatprep.subr.mxu0 0.0
        %1789 = vmatpush2.msra.mxu0 0.0
        %1790 = vmatprep.subr.mxu0 0.0
        %1791 = vmatpush2.msra.mxu0 0.0
        %1792 = vmatprep.subr.mxu0 0.0
        %1793 = vmatpush2.msra.mxu0 0.0
        %1794 = vmatprep.subr.mxu0 0.0
        %1795 = vmatpush2.msra.mxu0 0.0
        %1796 = vmatprep.subr.mxu0 0.0
        %1797 = vmatpush2.msra.mxu0 0.0
        %1798 = vmatprep.subr.mxu0 0.0
        %1799 = vmatpush2.msra.mxu0 0.0
        %1800 = vmatprep.subr.mxu0 0.0
        %1801 = vmatpush2.msra.mxu0 0.0
        %1802 = vmatprep.subr.mxu0 0.0
        %1803 = vmatpush2.msra.mxu0 0.0
        %1804 = vmatprep.subr.mxu0 0.0
        %1805 = vmatpush2.msra.mxu0 0.0
        %1806 = vmatprep.subr.mxu0 0.0
        %1807 = vmatpush2.msra.mxu0 0.0
        %1808 = vmatprep.subr.mxu0 0.0
        %1809 = vmatpush2.msra.mxu0 0.0
        %1810 = vmatprep.subr.mxu0 0.0
        %1811 = vmatpush2.msra.mxu0 0.0
        %1812 = vmatprep.subr.mxu0 0.0
        %1813 = vmatpush2.msra.mxu0 0.0
        %1814 = vmatprep.mubr.f32.mxu0 0.0
        %1815 = vmatmul.mubr.f32.gmra.mxu0 %v1748
        %v1816 = vpop.f32.mrf.mxu0
        %v1817 = vadd.f32 0.0, %v1816
        %v1818 = vpop.f32.mrf.mxu0
        %1819 = vdwg.mxu0
        %1822 = vrot.lane.b32.xlu0 %v630, 120
        %v1823 = vpop.permute.xlu0 %1822
        %1824 = vrot.lane.b32.xlu0 %v635, 120
        %v1825 = vpop.permute.xlu0 %1824
        %v1829 = vsel %vm957, %v1656, 0
        %1831 = vmatprep.subr.mxu0 0.0
        %1832 = vmatpush1.msra.mxu0 0.0
        %1833 = vmatprep.subr.mxu0 0.0
        %1834 = vmatpush1.msra.mxu0 0.0
        %1835 = vmatprep.subr.mxu0 0.0
        %1836 = vmatpush1.msra.mxu0 0.0
        %1837 = vmatprep.subr.mxu0 0.0
        %1838 = vmatpush1.msra.mxu0 0.0
        %1839 = vmatprep.subr.mxu0 0.0
        %1840 = vmatpush1.msra.mxu0 0.0
        %1841 = vmatprep.subr.mxu0 0.0
        %1842 = vmatpush1.msra.mxu0 0.0
        %1843 = vmatprep.subr.mxu0 0.0
        %1844 = vmatpush1.msra.mxu0 0.0
        %1845 = vmatprep.subr.mxu0 0.0
        %1846 = vmatpush1.msra.mxu0 0.0
        %1847 = vmatprep.subr.mxu0 0.0
        %1848 = vmatpush1.msra.mxu0 0.0
        %1849 = vmatprep.subr.mxu0 0.0
        %1850 = vmatpush1.msra.mxu0 0.0
        %1851 = vmatprep.subr.mxu0 0.0
        %1852 = vmatpush1.msra.mxu0 0.0
        %1853 = vmatprep.subr.mxu0 0.0
        %1854 = vmatpush1.msra.mxu0 0.0
        %1855 = vmatprep.subr.mxu0 0.0
        %1856 = vmatpush1.msra.mxu0 0.0
        %1857 = vmatprep.subr.mxu0 0.0
        %1858 = vmatpush1.msra.mxu0 0.0
        %1859 = vmatprep.subr.mxu0 0.0
        %1860 = vmatpush1.msra.mxu0 %v1825
        %1861 = vmatprep.subr.mxu0 0.0
        %1862 = vmatpush1.msra.mxu0 %v1823
        %1863 = vmatprep.subr.mxu0 0.0
        %1864 = vmatpush2.msra.mxu0 0.0
        %1865 = vmatprep.subr.mxu0 0.0
        %1866 = vmatpush2.msra.mxu0 0.0
        %1867 = vmatprep.subr.mxu0 0.0
        %1868 = vmatpush2.msra.mxu0 0.0
        %1869 = vmatprep.subr.mxu0 0.0
        %1870 = vmatpush2.msra.mxu0 0.0
        %1871 = vmatprep.subr.mxu0 0.0
        %1872 = vmatpush2.msra.mxu0 0.0
        %1873 = vmatprep.subr.mxu0 0.0
        %1874 = vmatpush2.msra.mxu0 0.0
        %1875 = vmatprep.subr.mxu0 0.0
        %1876 = vmatpush2.msra.mxu0 0.0
        %1877 = vmatprep.subr.mxu0 0.0
        %1878 = vmatpush2.msra.mxu0 0.0
        %1879 = vmatprep.subr.mxu0 0.0
        %1880 = vmatpush2.msra.mxu0 0.0
        %1881 = vmatprep.subr.mxu0 0.0
        %1882 = vmatpush2.msra.mxu0 0.0
        %1883 = vmatprep.subr.mxu0 0.0
        %1884 = vmatpush2.msra.mxu0 0.0
        %1885 = vmatprep.subr.mxu0 0.0
        %1886 = vmatpush2.msra.mxu0 0.0
        %1887 = vmatprep.subr.mxu0 0.0
        %1888 = vmatpush2.msra.mxu0 0.0
        %1889 = vmatprep.subr.mxu0 0.0
        %1890 = vmatpush2.msra.mxu0 0.0
        %1891 = vmatprep.subr.mxu0 0.0
        %1892 = vmatpush2.msra.mxu0 0.0
        %1893 = vmatprep.subr.mxu0 0.0
        %1894 = vmatpush2.msra.mxu0 0.0
        %1895 = vmatprep.mubr.f32.mxu0 0.0
        %1896 = vmatmul.mubr.f32.gmra.mxu0 %v1829
        %v1897 = vpop.f32.mrf.mxu0
        %v1898 = vadd.f32 0.0, %v1897
        %v1899 = vpop.f32.mrf.mxu0
        %1900 = vdwg.mxu0
        %1903 = vrot.lane.b32.xlu0 %v640, 120
        %v1904 = vpop.permute.xlu0 %1903
        %1905 = vrot.lane.b32.xlu0 %v645, 120
        %v1906 = vpop.permute.xlu0 %1905
        %v1910 = vsel %vm957, %v1657, 0
        %1912 = vmatprep.subr.mxu0 0.0
        %1913 = vmatpush1.msra.mxu0 0.0
        %1914 = vmatprep.subr.mxu0 0.0
        %1915 = vmatpush1.msra.mxu0 0.0
        %1916 = vmatprep.subr.mxu0 0.0
        %1917 = vmatpush1.msra.mxu0 0.0
        %1918 = vmatprep.subr.mxu0 0.0
        %1919 = vmatpush1.msra.mxu0 0.0
        %1920 = vmatprep.subr.mxu0 0.0
        %1921 = vmatpush1.msra.mxu0 0.0
        %1922 = vmatprep.subr.mxu0 0.0
        %1923 = vmatpush1.msra.mxu0 0.0
        %1924 = vmatprep.subr.mxu0 0.0
        %1925 = vmatpush1.msra.mxu0 0.0
        %1926 = vmatprep.subr.mxu0 0.0
        %1927 = vmatpush1.msra.mxu0 0.0
        %1928 = vmatprep.subr.mxu0 0.0
        %1929 = vmatpush1.msra.mxu0 0.0
        %1930 = vmatprep.subr.mxu0 0.0
        %1931 = vmatpush1.msra.mxu0 0.0
        %1932 = vmatprep.subr.mxu0 0.0
        %1933 = vmatpush1.msra.mxu0 0.0
        %1934 = vmatprep.subr.mxu0 0.0
        %1935 = vmatpush1.msra.mxu0 0.0
        %1936 = vmatprep.subr.mxu0 0.0
        %1937 = vmatpush1.msra.mxu0 0.0
        %1938 = vmatprep.subr.mxu0 0.0
        %1939 = vmatpush1.msra.mxu0 0.0
        %1940 = vmatprep.subr.mxu0 0.0
        %1941 = vmatpush1.msra.mxu0 %v1906
        %1942 = vmatprep.subr.mxu0 0.0
        %1943 = vmatpush1.msra.mxu0 %v1904
        %1944 = vmatprep.subr.mxu0 0.0
        %1945 = vmatpush2.msra.mxu0 0.0
        %1946 = vmatprep.subr.mxu0 0.0
        %1947 = vmatpush2.msra.mxu0 0.0
        %1948 = vmatprep.subr.mxu0 0.0
        %1949 = vmatpush2.msra.mxu0 0.0
        %1950 = vmatprep.subr.mxu0 0.0
        %1951 = vmatpush2.msra.mxu0 0.0
        %1952 = vmatprep.subr.mxu0 0.0
        %1953 = vmatpush2.msra.mxu0 0.0
        %1954 = vmatprep.subr.mxu0 0.0
        %1955 = vmatpush2.msra.mxu0 0.0
        %1956 = vmatprep.subr.mxu0 0.0
        %1957 = vmatpush2.msra.mxu0 0.0
        %1958 = vmatprep.subr.mxu0 0.0
        %1959 = vmatpush2.msra.mxu0 0.0
        %1960 = vmatprep.subr.mxu0 0.0
        %1961 = vmatpush2.msra.mxu0 0.0
        %1962 = vmatprep.subr.mxu0 0.0
        %1963 = vmatpush2.msra.mxu0 0.0
        %1964 = vmatprep.subr.mxu0 0.0
        %1965 = vmatpush2.msra.mxu0 0.0
        %1966 = vmatprep.subr.mxu0 0.0
        %1967 = vmatpush2.msra.mxu0 0.0
        %1968 = vmatprep.subr.mxu0 0.0
        %1969 = vmatpush2.msra.mxu0 0.0
        %1970 = vmatprep.subr.mxu0 0.0
        %1971 = vmatpush2.msra.mxu0 0.0
        %1972 = vmatprep.subr.mxu0 0.0
        %1973 = vmatpush2.msra.mxu0 0.0
        %1974 = vmatprep.subr.mxu0 0.0
        %1975 = vmatpush2.msra.mxu0 0.0
        %1976 = vmatprep.mubr.f32.mxu0 0.0
        %1977 = vmatmul.mubr.f32.gmra.mxu0 %v1910
        %v1978 = vpop.f32.mrf.mxu0
        %v1979 = vadd.f32 0.0, %v1978
        %v1980 = vpop.f32.mrf.mxu0
        %1981 = vdwg.mxu0
        %1986 = vrot.lane.b32.xlu0 %v1736, 8
        %v1987 = vpop.permute.xlu0 %1986
        %1988 = vrot.lane.b32.xlu0 %v1817, 8
        %v1989 = vpop.permute.xlu0 %1988
        %1990 = vrot.lane.b32.xlu0 %v1898, 8
        %v1991 = vpop.permute.xlu0 %1990
        %1992 = vrot.lane.b32.xlu0 %v1979, 8
        %v1993 = vpop.permute.xlu0 %1992
        %v1998 = vadd.f32 %v648, %v1987
        %v1999 = vadd.f32 %v648, %v1989
        %v2000 = vadd.f32 %v648, %v1991
        %v2001 = vadd.f32 %v648, %v1993
        %2002 = vrot.lane.b32.xlu0 %v648, 112
        %v2003 = vpop.permute.xlu0 %2002
        %2004 = vrot.lane.b32.xlu0 %v494, 112
        %v2005 = vpop.permute.xlu0 %2004
        %2006 = vrot.lane.b32.xlu0 %v499, 112
        %v2007 = vpop.permute.xlu0 %2006
        %v2008 = vsel %vm649, %v2003, 0
        %v2010 = vsel %vm649, %v2005, 0
        %v2012 = vsel %vm649, %v2007, 0
        %2014 = vmatprep.subr.mxu0 0.0
        %2015 = vmatpush1.xpose.msra.mxu0 0.0
        %2016 = vmatprep.subr.mxu0 0.0
        %2017 = vmatpush1.xpose.msra.mxu0 0.0
        %2018 = vmatprep.subr.mxu0 0.0
        %2019 = vmatpush1.xpose.msra.mxu0 0.0
        %2020 = vmatprep.subr.mxu0 0.0
        %2021 = vmatpush1.xpose.msra.mxu0 0.0
        %2022 = vmatprep.subr.mxu0 0.0
        %2023 = vmatpush1.xpose.msra.mxu0 0.0
        %2024 = vmatprep.subr.mxu0 0.0
        %2025 = vmatpush1.xpose.msra.mxu0 0.0
        %2026 = vmatprep.subr.mxu0 0.0
        %2027 = vmatpush1.xpose.msra.mxu0 0.0
        %2028 = vmatprep.subr.mxu0 0.0
        %2029 = vmatpush1.xpose.msra.mxu0 0.0
        %2030 = vmatprep.subr.mxu0 0.0
        %2031 = vmatpush1.xpose.msra.mxu0 0.0
        %2032 = vmatprep.subr.mxu0 0.0
        %2033 = vmatpush1.xpose.msra.mxu0 0.0
        %2034 = vmatprep.subr.mxu0 0.0
        %2035 = vmatpush1.xpose.msra.mxu0 0.0
        %2036 = vmatprep.subr.mxu0 0.0
        %2037 = vmatpush1.xpose.msra.mxu0 0.0
        %2038 = vmatprep.subr.mxu0 0.0
        %2039 = vmatpush1.xpose.msra.mxu0 0.0
        %2040 = vmatprep.subr.mxu0 0.0
        %2041 = vmatpush1.xpose.msra.mxu0 0.0
        %2042 = vmatprep.subr.mxu0 0.0
        %2043 = vmatpush1.xpose.msra.mxu0 %v2012
        %2044 = vmatprep.subr.mxu0 0.0
        %2045 = vmatpush1.xpose.msra.mxu0 %v2010
        %2046 = vmatprep.subr.mxu0 0.0
        %2047 = vmatpush2.xpose.msra.mxu0 0.0
        %2048 = vmatprep.subr.mxu0 0.0
        %2049 = vmatpush2.xpose.msra.mxu0 0.0
        %2050 = vmatprep.subr.mxu0 0.0
        %2051 = vmatpush2.xpose.msra.mxu0 0.0
        %2052 = vmatprep.subr.mxu0 0.0
        %2053 = vmatpush2.xpose.msra.mxu0 0.0
        %2054 = vmatprep.subr.mxu0 0.0
        %2055 = vmatpush2.xpose.msra.mxu0 0.0
        %2056 = vmatprep.subr.mxu0 0.0
        %2057 = vmatpush2.xpose.msra.mxu0 0.0
        %2058 = vmatprep.subr.mxu0 0.0
        %2059 = vmatpush2.xpose.msra.mxu0 0.0
        %2060 = vmatprep.subr.mxu0 0.0
        %2061 = vmatpush2.xpose.msra.mxu0 0.0
        %2062 = vmatprep.subr.mxu0 0.0
        %2063 = vmatpush2.xpose.msra.mxu0 0.0
        %2064 = vmatprep.subr.mxu0 0.0
        %2065 = vmatpush2.xpose.msra.mxu0 0.0
        %2066 = vmatprep.subr.mxu0 0.0
        %2067 = vmatpush2.xpose.msra.mxu0 0.0
        %2068 = vmatprep.subr.mxu0 0.0
        %2069 = vmatpush2.xpose.msra.mxu0 0.0
        %2070 = vmatprep.subr.mxu0 0.0
        %2071 = vmatpush2.xpose.msra.mxu0 0.0
        %2072 = vmatprep.subr.mxu0 0.0
        %2073 = vmatpush2.xpose.msra.mxu0 0.0
        %2074 = vmatprep.subr.mxu0 0.0
        %2075 = vmatpush2.xpose.msra.mxu0 0.0
        %2076 = vmatprep.subr.mxu0 0.0
        %2077 = vmatpush2.xpose.msra.mxu0 0.0
        %2078 = vmatprep.mubr.f32.mxu0 0.0
        %2079 = vmatmul.mubr.f32.gmra.mxu0 %v2008
        %v2080 = vpop.f32.mrf.mxu0
        %v2081 = vadd.f32 0.0, %v2080
        %v2082 = vpop.f32.mrf.mxu0
        %2083 = vdwg.mxu0
        %2084 = vrot.lane.b32.xlu0 %v504, 112
        %v2085 = vpop.permute.xlu0 %2084
        %2086 = vrot.lane.b32.xlu0 %v509, 112
        %v2087 = vpop.permute.xlu0 %2086
        %v2088 = vsel %vm649, %v2085, 0
        %v2090 = vsel %vm649, %v2087, 0
        %2092 = vmatprep.subr.mxu0 0.0
        %2093 = vmatpush1.xpose.msra.mxu0 0.0
        %2094 = vmatprep.subr.mxu0 0.0
        %2095 = vmatpush1.xpose.msra.mxu0 0.0
        %2096 = vmatprep.subr.mxu0 0.0
        %2097 = vmatpush1.xpose.msra.mxu0 0.0
        %2098 = vmatprep.subr.mxu0 0.0
        %2099 = vmatpush1.xpose.msra.mxu0 0.0
        %2100 = vmatprep.subr.mxu0 0.0
        %2101 = vmatpush1.xpose.msra.mxu0 0.0
        %2102 = vmatprep.subr.mxu0 0.0
        %2103 = vmatpush1.xpose.msra.mxu0 0.0
        %2104 = vmatprep.subr.mxu0 0.0
        %2105 = vmatpush1.xpose.msra.mxu0 0.0
        %2106 = vmatprep.subr.mxu0 0.0
        %2107 = vmatpush1.xpose.msra.mxu0 0.0
        %2108 = vmatprep.subr.mxu0 0.0
        %2109 = vmatpush1.xpose.msra.mxu0 0.0
        %2110 = vmatprep.subr.mxu0 0.0
        %2111 = vmatpush1.xpose.msra.mxu0 0.0
        %2112 = vmatprep.subr.mxu0 0.0
        %2113 = vmatpush1.xpose.msra.mxu0 0.0
        %2114 = vmatprep.subr.mxu0 0.0
        %2115 = vmatpush1.xpose.msra.mxu0 0.0
        %2116 = vmatprep.subr.mxu0 0.0
        %2117 = vmatpush1.xpose.msra.mxu0 0.0
        %2118 = vmatprep.subr.mxu0 0.0
        %2119 = vmatpush1.xpose.msra.mxu0 0.0
        %2120 = vmatprep.subr.mxu0 0.0
        %2121 = vmatpush1.xpose.msra.mxu0 %v2090
        %2122 = vmatprep.subr.mxu0 0.0
        %2123 = vmatpush1.xpose.msra.mxu0 %v2088
        %2124 = vmatprep.subr.mxu0 0.0
        %2125 = vmatpush2.xpose.msra.mxu0 0.0
        %2126 = vmatprep.subr.mxu0 0.0
        %2127 = vmatpush2.xpose.msra.mxu0 0.0
        %2128 = vmatprep.subr.mxu0 0.0
        %2129 = vmatpush2.xpose.msra.mxu0 0.0
        %2130 = vmatprep.subr.mxu0 0.0
        %2131 = vmatpush2.xpose.msra.mxu0 0.0
        %2132 = vmatprep.subr.mxu0 0.0
        %2133 = vmatpush2.xpose.msra.mxu0 0.0
        %2134 = vmatprep.subr.mxu0 0.0
        %2135 = vmatpush2.xpose.msra.mxu0 0.0
        %2136 = vmatprep.subr.mxu0 0.0
        %2137 = vmatpush2.xpose.msra.mxu0 0.0
        %2138 = vmatprep.subr.mxu0 0.0
        %2139 = vmatpush2.xpose.msra.mxu0 0.0
        %2140 = vmatprep.subr.mxu0 0.0
        %2141 = vmatpush2.xpose.msra.mxu0 0.0
        %2142 = vmatprep.subr.mxu0 0.0
        %2143 = vmatpush2.xpose.msra.mxu0 0.0
        %2144 = vmatprep.subr.mxu0 0.0
        %2145 = vmatpush2.xpose.msra.mxu0 0.0
        %2146 = vmatprep.subr.mxu0 0.0
        %2147 = vmatpush2.xpose.msra.mxu0 0.0
        %2148 = vmatprep.subr.mxu0 0.0
        %2149 = vmatpush2.xpose.msra.mxu0 0.0
        %2150 = vmatprep.subr.mxu0 0.0
        %2151 = vmatpush2.xpose.msra.mxu0 0.0
        %2152 = vmatprep.subr.mxu0 0.0
        %2153 = vmatpush2.xpose.msra.mxu0 0.0
        %2154 = vmatprep.subr.mxu0 0.0
        %2155 = vmatpush2.xpose.msra.mxu0 0.0
        %2156 = vmatprep.mubr.f32.mxu0 0.0
        %2157 = vmatmul.mubr.f32.gmra.mxu0 %v2008
        %v2158 = vpop.f32.mrf.mxu0
        %v2159 = vadd.f32 0.0, %v2158
        %v2160 = vpop.f32.mrf.mxu0
        %2161 = vdwg.mxu0
        %2162 = vrot.lane.b32.xlu0 %v514, 112
        %v2163 = vpop.permute.xlu0 %2162
        %2164 = vrot.lane.b32.xlu0 %v519, 112
        %v2165 = vpop.permute.xlu0 %2164
        %v2166 = vsel %vm649, %v2163, 0
        %v2168 = vsel %vm649, %v2165, 0
        %2170 = vmatprep.subr.mxu0 0.0
        %2171 = vmatpush1.xpose.msra.mxu0 0.0
        %2172 = vmatprep.subr.mxu0 0.0
        %2173 = vmatpush1.xpose.msra.mxu0 0.0
        %2174 = vmatprep.subr.mxu0 0.0
        %2175 = vmatpush1.xpose.msra.mxu0 0.0
        %2176 = vmatprep.subr.mxu0 0.0
        %2177 = vmatpush1.xpose.msra.mxu0 0.0
        %2178 = vmatprep.subr.mxu0 0.0
        %2179 = vmatpush1.xpose.msra.mxu0 0.0
        %2180 = vmatprep.subr.mxu0 0.0
        %2181 = vmatpush1.xpose.msra.mxu0 0.0
        %2182 = vmatprep.subr.mxu0 0.0
        %2183 = vmatpush1.xpose.msra.mxu0 0.0
        %2184 = vmatprep.subr.mxu0 0.0
        %2185 = vmatpush1.xpose.msra.mxu0 0.0
        %2186 = vmatprep.subr.mxu0 0.0
        %2187 = vmatpush1.xpose.msra.mxu0 0.0
        %2188 = vmatprep.subr.mxu0 0.0
        %2189 = vmatpush1.xpose.msra.mxu0 0.0
        %2190 = vmatprep.subr.mxu0 0.0
        %2191 = vmatpush1.xpose.msra.mxu0 0.0
        %2192 = vmatprep.subr.mxu0 0.0
        %2193 = vmatpush1.xpose.msra.mxu0 0.0
        %2194 = vmatprep.subr.mxu0 0.0
        %2195 = vmatpush1.xpose.msra.mxu0 0.0
        %2196 = vmatprep.subr.mxu0 0.0
        %2197 = vmatpush1.xpose.msra.mxu0 0.0
        %2198 = vmatprep.subr.mxu0 0.0
        %2199 = vmatpush1.xpose.msra.mxu0 %v2168
        %2200 = vmatprep.subr.mxu0 0.0
        %2201 = vmatpush1.xpose.msra.mxu0 %v2166
        %2202 = vmatprep.subr.mxu0 0.0
        %2203 = vmatpush2.xpose.msra.mxu0 0.0
        %2204 = vmatprep.subr.mxu0 0.0
        %2205 = vmatpush2.xpose.msra.mxu0 0.0
        %2206 = vmatprep.subr.mxu0 0.0
        %2207 = vmatpush2.xpose.msra.mxu0 0.0
        %2208 = vmatprep.subr.mxu0 0.0
        %2209 = vmatpush2.xpose.msra.mxu0 0.0
        %2210 = vmatprep.subr.mxu0 0.0
        %2211 = vmatpush2.xpose.msra.mxu0 0.0
        %2212 = vmatprep.subr.mxu0 0.0
        %2213 = vmatpush2.xpose.msra.mxu0 0.0
        %2214 = vmatprep.subr.mxu0 0.0
        %2215 = vmatpush2.xpose.msra.mxu0 0.0
        %2216 = vmatprep.subr.mxu0 0.0
        %2217 = vmatpush2.xpose.msra.mxu0 0.0
        %2218 = vmatprep.subr.mxu0 0.0
        %2219 = vmatpush2.xpose.msra.mxu0 0.0
        %2220 = vmatprep.subr.mxu0 0.0
        %2221 = vmatpush2.xpose.msra.mxu0 0.0
        %2222 = vmatprep.subr.mxu0 0.0
        %2223 = vmatpush2.xpose.msra.mxu0 0.0
        %2224 = vmatprep.subr.mxu0 0.0
        %2225 = vmatpush2.xpose.msra.mxu0 0.0
        %2226 = vmatprep.subr.mxu0 0.0
        %2227 = vmatpush2.xpose.msra.mxu0 0.0
        %2228 = vmatprep.subr.mxu0 0.0
        %2229 = vmatpush2.xpose.msra.mxu0 0.0
        %2230 = vmatprep.subr.mxu0 0.0
        %2231 = vmatpush2.xpose.msra.mxu0 0.0
        %2232 = vmatprep.subr.mxu0 0.0
        %2233 = vmatpush2.xpose.msra.mxu0 0.0
        %2234 = vmatprep.mubr.f32.mxu0 0.0
        %2235 = vmatmul.mubr.f32.gmra.mxu0 %v2008
        %v2236 = vpop.f32.mrf.mxu0
        %v2237 = vadd.f32 0.0, %v2236
        %v2238 = vpop.f32.mrf.mxu0
        %2239 = vdwg.mxu0
        %2240 = vrot.lane.b32.xlu0 %v524, 112
        %v2241 = vpop.permute.xlu0 %2240
        %2242 = vrot.lane.b32.xlu0 %v529, 112
        %v2243 = vpop.permute.xlu0 %2242
        %v2244 = vsel %vm649, %v2241, 0
        %v2246 = vsel %vm649, %v2243, 0
        %2248 = vmatprep.subr.mxu0 0.0
        %2249 = vmatpush1.xpose.msra.mxu0 0.0
        %2250 = vmatprep.subr.mxu0 0.0
        %2251 = vmatpush1.xpose.msra.mxu0 0.0
        %2252 = vmatprep.subr.mxu0 0.0
        %2253 = vmatpush1.xpose.msra.mxu0 0.0
        %2254 = vmatprep.subr.mxu0 0.0
        %2255 = vmatpush1.xpose.msra.mxu0 0.0
        %2256 = vmatprep.subr.mxu0 0.0
        %2257 = vmatpush1.xpose.msra.mxu0 0.0
        %2258 = vmatprep.subr.mxu0 0.0
        %2259 = vmatpush1.xpose.msra.mxu0 0.0
        %2260 = vmatprep.subr.mxu0 0.0
        %2261 = vmatpush1.xpose.msra.mxu0 0.0
        %2262 = vmatprep.subr.mxu0 0.0
        %2263 = vmatpush1.xpose.msra.mxu0 0.0
        %2264 = vmatprep.subr.mxu0 0.0
        %2265 = vmatpush1.xpose.msra.mxu0 0.0
        %2266 = vmatprep.subr.mxu0 0.0
        %2267 = vmatpush1.xpose.msra.mxu0 0.0
        %2268 = vmatprep.subr.mxu0 0.0
        %2269 = vmatpush1.xpose.msra.mxu0 0.0
        %2270 = vmatprep.subr.mxu0 0.0
        %2271 = vmatpush1.xpose.msra.mxu0 0.0
        %2272 = vmatprep.subr.mxu0 0.0
        %2273 = vmatpush1.xpose.msra.mxu0 0.0
        %2274 = vmatprep.subr.mxu0 0.0
        %2275 = vmatpush1.xpose.msra.mxu0 0.0
        %2276 = vmatprep.subr.mxu0 0.0
        %2277 = vmatpush1.xpose.msra.mxu0 %v2246
        %2278 = vmatprep.subr.mxu0 0.0
        %2279 = vmatpush1.xpose.msra.mxu0 %v2244
        %2280 = vmatprep.subr.mxu0 0.0
        %2281 = vmatpush2.xpose.msra.mxu0 0.0
        %2282 = vmatprep.subr.mxu0 0.0
        %2283 = vmatpush2.xpose.msra.mxu0 0.0
        %2284 = vmatprep.subr.mxu0 0.0
        %2285 = vmatpush2.xpose.msra.mxu0 0.0
        %2286 = vmatprep.subr.mxu0 0.0
        %2287 = vmatpush2.xpose.msra.mxu0 0.0
        %2288 = vmatprep.subr.mxu0 0.0
        %2289 = vmatpush2.xpose.msra.mxu0 0.0
        %2290 = vmatprep.subr.mxu0 0.0
        %2291 = vmatpush2.xpose.msra.mxu0 0.0
        %2292 = vmatprep.subr.mxu0 0.0
        %2293 = vmatpush2.xpose.msra.mxu0 0.0
        %2294 = vmatprep.subr.mxu0 0.0
        %2295 = vmatpush2.xpose.msra.mxu0 0.0
        %2296 = vmatprep.subr.mxu0 0.0
        %2297 = vmatpush2.xpose.msra.mxu0 0.0
        %2298 = vmatprep.subr.mxu0 0.0
        %2299 = vmatpush2.xpose.msra.mxu0 0.0
        %2300 = vmatprep.subr.mxu0 0.0
        %2301 = vmatpush2.xpose.msra.mxu0 0.0
        %2302 = vmatprep.subr.mxu0 0.0
        %2303 = vmatpush2.xpose.msra.mxu0 0.0
        %2304 = vmatprep.subr.mxu0 0.0
        %2305 = vmatpush2.xpose.msra.mxu0 0.0
        %2306 = vmatprep.subr.mxu0 0.0
        %2307 = vmatpush2.xpose.msra.mxu0 0.0
        %2308 = vmatprep.subr.mxu0 0.0
        %2309 = vmatpush2.xpose.msra.mxu0 0.0
        %2310 = vmatprep.subr.mxu0 0.0
        %2311 = vmatpush2.xpose.msra.mxu0 0.0
        %2312 = vmatprep.mubr.f32.mxu0 0.0
        %2313 = vmatmul.mubr.f32.gmra.mxu0 %v2008
        %v2314 = vpop.f32.mrf.mxu0
        %v2315 = vadd.f32 0.0, %v2314
        %v2316 = vpop.f32.mrf.mxu0
        %2317 = vdwg.mxu0
        %v2318 = vsel %vm957, %v2081, -inf
        %2319 = vmax.xlane.f32.xlu0 %v2318
        %v2320 = vpop.xlane.xlu0 %2319
        %v2321 = vsel %vm957, %v2159, -inf
        %2322 = vmax.xlane.f32.xlu0 %v2321
        %v2323 = vpop.xlane.xlu0 %2322
        %v2324 = vsel %vm957, %v2237, -inf
        %2325 = vmax.xlane.f32.xlu0 %v2324
        %v2326 = vpop.xlane.xlu0 %2325
        %v2327 = vsel %vm957, %v2315, -inf
        %2328 = vmax.xlane.f32.xlu0 %v2327
        %v2329 = vpop.xlane.xlu0 %2328
        %v2330 = vsub.f32 %v2081, %v2320
        %v2331 = vsub.f32 %v2159, %v2323
        %v2332 = vsub.f32 %v2237, %v2326
        %v2333 = vsub.f32 %v2315, %v2329
        %v2334 = vmul.f32 %v2330, 1.442695
        %v2335 = vpow.pop %v2334
        %v2336 = vmul.f32 %v2331, 1.442695
        %v2337 = vpow.pop %v2336
        %v2338 = vmul.f32 %v2332, 1.442695
        %v2339 = vpow.pop %v2338
        %v2340 = vmul.f32 %v2333, 1.442695
        %v2341 = vpow.pop %v2340
        %v2342 = vsel %vm957, %v2335, 0.0
        %2343 = vadd.xlane.f32.xlu0 %v2342
        %v2344 = vpop.xlane.xlu0 %2343
        %v2345 = vsel %vm957, %v2337, 0.0
        %2346 = vadd.xlane.f32.xlu0 %v2345
        %v2347 = vpop.xlane.xlu0 %2346
        %v2348 = vsel %vm957, %v2339, 0.0
        %2349 = vadd.xlane.f32.xlu0 %v2348
        %v2350 = vpop.xlane.xlu0 %2349
        %v2351 = vsel %vm957, %v2341, 0.0
        %2352 = vadd.xlane.f32.xlu0 %v2351
        %v2353 = vpop.xlane.xlu0 %2352
        %v2354 = vrcp.pop %v2344
        %v2355 = vrcp.pop %v2347
        %v2356 = vrcp.pop %v2350
        %v2357 = vrcp.pop %v2353
        %v2358 = vmul.f32 %v2335, %v2354
        %v2359 = vmul.f32 %v2337, %v2355
        %v2360 = vmul.f32 %v2339, %v2356
        %v2361 = vmul.f32 %v2341, %v2357
        %2362 = vrot.lane.b32.xlu0 %v610, 112
        %v2363 = vpop.permute.xlu0 %2362
        %2364 = vrot.lane.b32.xlu0 %v615, 112
        %v2365 = vpop.permute.xlu0 %2364
        %v2369 = vsel %vm957, %v2358, 0
        %2371 = vmatprep.subr.mxu0 0.0
        %2372 = vmatpush1.msra.mxu0 0.0
        %2373 = vmatprep.subr.mxu0 0.0
        %2374 = vmatpush1.msra.mxu0 0.0
        %2375 = vmatprep.subr.mxu0 0.0
        %2376 = vmatpush1.msra.mxu0 0.0
        %2377 = vmatprep.subr.mxu0 0.0
        %2378 = vmatpush1.msra.mxu0 0.0
        %2379 = vmatprep.subr.mxu0 0.0
        %2380 = vmatpush1.msra.mxu0 0.0
        %2381 = vmatprep.subr.mxu0 0.0
        %2382 = vmatpush1.msra.mxu0 0.0
        %2383 = vmatprep.subr.mxu0 0.0
        %2384 = vmatpush1.msra.mxu0 0.0
        %2385 = vmatprep.subr.mxu0 0.0
        %2386 = vmatpush1.msra.mxu0 0.0
        %2387 = vmatprep.subr.mxu0 0.0
        %2388 = vmatpush1.msra.mxu0 0.0
        %2389 = vmatprep.subr.mxu0 0.0
        %2390 = vmatpush1.msra.mxu0 0.0
        %2391 = vmatprep.subr.mxu0 0.0
        %2392 = vmatpush1.msra.mxu0 0.0
        %2393 = vmatprep.subr.mxu0 0.0
        %2394 = vmatpush1.msra.mxu0 0.0
        %2395 = vmatprep.subr.mxu0 0.0
        %2396 = vmatpush1.msra.mxu0 0.0
        %2397 = vmatprep.subr.mxu0 0.0
        %2398 = vmatpush1.msra.mxu0 0.0
        %2399 = vmatprep.subr.mxu0 0.0
        %2400 = vmatpush1.msra.mxu0 %v2365
        %2401 = vmatprep.subr.mxu0 0.0
        %2402 = vmatpush1.msra.mxu0 %v2363
        %2403 = vmatprep.subr.mxu0 0.0
        %2404 = vmatpush2.msra.mxu0 0.0
        %2405 = vmatprep.subr.mxu0 0.0
        %2406 = vmatpush2.msra.mxu0 0.0
        %2407 = vmatprep.subr.mxu0 0.0
        %2408 = vmatpush2.msra.mxu0 0.0
        %2409 = vmatprep.subr.mxu0 0.0
        %2410 = vmatpush2.msra.mxu0 0.0
        %2411 = vmatprep.subr.mxu0 0.0
        %2412 = vmatpush2.msra.mxu0 0.0
        %2413 = vmatprep.subr.mxu0 0.0
        %2414 = vmatpush2.msra.mxu0 0.0
        %2415 = vmatprep.subr.mxu0 0.0
        %2416 = vmatpush2.msra.mxu0 0.0
        %2417 = vmatprep.subr.mxu0 0.0
        %2418 = vmatpush2.msra.mxu0 0.0
        %2419 = vmatprep.subr.mxu0 0.0
        %2420 = vmatpush2.msra.mxu0 0.0
        %2421 = vmatprep.subr.mxu0 0.0
        %2422 = vmatpush2.msra.mxu0 0.0
        %2423 = vmatprep.subr.mxu0 0.0
        %2424 = vmatpush2.msra.mxu0 0.0
        %2425 = vmatprep.subr.mxu0 0.0
        %2426 = vmatpush2.msra.mxu0 0.0
        %2427 = vmatprep.subr.mxu0 0.0
        %2428 = vmatpush2.msra.mxu0 0.0
        %2429 = vmatprep.subr.mxu0 0.0
        %2430 = vmatpush2.msra.mxu0 0.0
        %2431 = vmatprep.subr.mxu0 0.0
        %2432 = vmatpush2.msra.mxu0 0.0
        %2433 = vmatprep.subr.mxu0 0.0
        %2434 = vmatpush2.msra.mxu0 0.0
        %2435 = vmatprep.mubr.f32.mxu0 0.0
        %2436 = vmatmul.mubr.f32.gmra.mxu0 %v2369
        %v2437 = vpop.f32.mrf.mxu0
        %v2438 = vadd.f32 0.0, %v2437
        %v2439 = vpop.f32.mrf.mxu0
        %2440 = vdwg.mxu0
        %2441 = vrot.lane.b32.xlu0 %v620, 112
        %v2442 = vpop.permute.xlu0 %2441
        %2443 = vrot.lane.b32.xlu0 %v625, 112
        %v2444 = vpop.permute.xlu0 %2443
        %v2448 = vsel %vm957, %v2359, 0
        %2450 = vmatprep.subr.mxu0 0.0
        %2451 = vmatpush1.msra.mxu0 0.0
        %2452 = vmatprep.subr.mxu0 0.0
        %2453 = vmatpush1.msra.mxu0 0.0
        %2454 = vmatprep.subr.mxu0 0.0
        %2455 = vmatpush1.msra.mxu0 0.0
        %2456 = vmatprep.subr.mxu0 0.0
        %2457 = vmatpush1.msra.mxu0 0.0
        %2458 = vmatprep.subr.mxu0 0.0
        %2459 = vmatpush1.msra.mxu0 0.0
        %2460 = vmatprep.subr.mxu0 0.0
        %2461 = vmatpush1.msra.mxu0 0.0
        %2462 = vmatprep.subr.mxu0 0.0
        %2463 = vmatpush1.msra.mxu0 0.0
        %2464 = vmatprep.subr.mxu0 0.0
        %2465 = vmatpush1.msra.mxu0 0.0
        %2466 = vmatprep.subr.mxu0 0.0
        %2467 = vmatpush1.msra.mxu0 0.0
        %2468 = vmatprep.subr.mxu0 0.0
        %2469 = vmatpush1.msra.mxu0 0.0
        %2470 = vmatprep.subr.mxu0 0.0
        %2471 = vmatpush1.msra.mxu0 0.0
        %2472 = vmatprep.subr.mxu0 0.0
        %2473 = vmatpush1.msra.mxu0 0.0
        %2474 = vmatprep.subr.mxu0 0.0
        %2475 = vmatpush1.msra.mxu0 0.0
        %2476 = vmatprep.subr.mxu0 0.0
        %2477 = vmatpush1.msra.mxu0 0.0
        %2478 = vmatprep.subr.mxu0 0.0
        %2479 = vmatpush1.msra.mxu0 %v2444
        %2480 = vmatprep.subr.mxu0 0.0
        %2481 = vmatpush1.msra.mxu0 %v2442
        %2482 = vmatprep.subr.mxu0 0.0
        %2483 = vmatpush2.msra.mxu0 0.0
        %2484 = vmatprep.subr.mxu0 0.0
        %2485 = vmatpush2.msra.mxu0 0.0
        %2486 = vmatprep.subr.mxu0 0.0
        %2487 = vmatpush2.msra.mxu0 0.0
        %2488 = vmatprep.subr.mxu0 0.0
        %2489 = vmatpush2.msra.mxu0 0.0
        %2490 = vmatprep.subr.mxu0 0.0
        %2491 = vmatpush2.msra.mxu0 0.0
        %2492 = vmatprep.subr.mxu0 0.0
        %2493 = vmatpush2.msra.mxu0 0.0
        %2494 = vmatprep.subr.mxu0 0.0
        %2495 = vmatpush2.msra.mxu0 0.0
        %2496 = vmatprep.subr.mxu0 0.0
        %2497 = vmatpush2.msra.mxu0 0.0
        %2498 = vmatprep.subr.mxu0 0.0
        %2499 = vmatpush2.msra.mxu0 0.0
        %2500 = vmatprep.subr.mxu0 0.0
        %2501 = vmatpush2.msra.mxu0 0.0
        %2502 = vmatprep.subr.mxu0 0.0
        %2503 = vmatpush2.msra.mxu0 0.0
        %2504 = vmatprep.subr.mxu0 0.0
        %2505 = vmatpush2.msra.mxu0 0.0
        %2506 = vmatprep.subr.mxu0 0.0
        %2507 = vmatpush2.msra.mxu0 0.0
        %2508 = vmatprep.subr.mxu0 0.0
        %2509 = vmatpush2.msra.mxu0 0.0
        %2510 = vmatprep.subr.mxu0 0.0
        %2511 = vmatpush2.msra.mxu0 0.0
        %2512 = vmatprep.subr.mxu0 0.0
        %2513 = vmatpush2.msra.mxu0 0.0
        %2514 = vmatprep.mubr.f32.mxu0 0.0
        %2515 = vmatmul.mubr.f32.gmra.mxu0 %v2448
        %v2516 = vpop.f32.mrf.mxu0
        %v2517 = vadd.f32 0.0, %v2516
        %v2518 = vpop.f32.mrf.mxu0
        %2519 = vdwg.mxu0
        %2520 = vrot.lane.b32.xlu0 %v630, 112
        %v2521 = vpop.permute.xlu0 %2520
        %2522 = vrot.lane.b32.xlu0 %v635, 112
        %v2523 = vpop.permute.xlu0 %2522
        %v2527 = vsel %vm957, %v2360, 0
        %2529 = vmatprep.subr.mxu0 0.0
        %2530 = vmatpush1.msra.mxu0 0.0
        %2531 = vmatprep.subr.mxu0 0.0
        %2532 = vmatpush1.msra.mxu0 0.0
        %2533 = vmatprep.subr.mxu0 0.0
        %2534 = vmatpush1.msra.mxu0 0.0
        %2535 = vmatprep.subr.mxu0 0.0
        %2536 = vmatpush1.msra.mxu0 0.0
        %2537 = vmatprep.subr.mxu0 0.0
        %2538 = vmatpush1.msra.mxu0 0.0
        %2539 = vmatprep.subr.mxu0 0.0
        %2540 = vmatpush1.msra.mxu0 0.0
        %2541 = vmatprep.subr.mxu0 0.0
        %2542 = vmatpush1.msra.mxu0 0.0
        %2543 = vmatprep.subr.mxu0 0.0
        %2544 = vmatpush1.msra.mxu0 0.0
        %2545 = vmatprep.subr.mxu0 0.0
        %2546 = vmatpush1.msra.mxu0 0.0
        %2547 = vmatprep.subr.mxu0 0.0
        %2548 = vmatpush1.msra.mxu0 0.0
        %2549 = vmatprep.subr.mxu0 0.0
        %2550 = vmatpush1.msra.mxu0 0.0
        %2551 = vmatprep.subr.mxu0 0.0
        %2552 = vmatpush1.msra.mxu0 0.0
        %2553 = vmatprep.subr.mxu0 0.0
        %2554 = vmatpush1.msra.mxu0 0.0
        %2555 = vmatprep.subr.mxu0 0.0
        %2556 = vmatpush1.msra.mxu0 0.0
        %2557 = vmatprep.subr.mxu0 0.0
        %2558 = vmatpush1.msra.mxu0 %v2523
        %2559 = vmatprep.subr.mxu0 0.0
        %2560 = vmatpush1.msra.mxu0 %v2521
        %2561 = vmatprep.subr.mxu0 0.0
        %2562 = vmatpush2.msra.mxu0 0.0
        %2563 = vmatprep.subr.mxu0 0.0
        %2564 = vmatpush2.msra.mxu0 0.0
        %2565 = vmatprep.subr.mxu0 0.0
        %2566 = vmatpush2.msra.mxu0 0.0
        %2567 = vmatprep.subr.mxu0 0.0
        %2568 = vmatpush2.msra.mxu0 0.0
        %2569 = vmatprep.subr.mxu0 0.0
        %2570 = vmatpush2.msra.mxu0 0.0
        %2571 = vmatprep.subr.mxu0 0.0
        %2572 = vmatpush2.msra.mxu0 0.0
        %2573 = vmatprep.subr.mxu0 0.0
        %2574 = vmatpush2.msra.mxu0 0.0
        %2575 = vmatprep.subr.mxu0 0.0
        %2576 = vmatpush2.msra.mxu0 0.0
        %2577 = vmatprep.subr.mxu0 0.0
        %2578 = vmatpush2.msra.mxu0 0.0
        %2579 = vmatprep.subr.mxu0 0.0
        %2580 = vmatpush2.msra.mxu0 0.0
        %2581 = vmatprep.subr.mxu0 0.0
        %2582 = vmatpush2.msra.mxu0 0.0
        %2583 = vmatprep.subr.mxu0 0.0
        %2584 = vmatpush2.msra.mxu0 0.0
        %2585 = vmatprep.subr.mxu0 0.0
        %2586 = vmatpush2.msra.mxu0 0.0
        %2587 = vmatprep.subr.mxu0 0.0
        %2588 = vmatpush2.msra.mxu0 0.0
        %2589 = vmatprep.subr.mxu0 0.0
        %2590 = vmatpush2.msra.mxu0 0.0
        %2591 = vmatprep.subr.mxu0 0.0
        %2592 = vmatpush2.msra.mxu0 0.0
        %2593 = vmatprep.mubr.f32.mxu0 0.0
        %2594 = vmatmul.mubr.f32.gmra.mxu0 %v2527
        %v2595 = vpop.f32.mrf.mxu0
        %v2596 = vadd.f32 0.0, %v2595
        %v2597 = vpop.f32.mrf.mxu0
        %2598 = vdwg.mxu0
        %2599 = vrot.lane.b32.xlu0 %v640, 112
        %v2600 = vpop.permute.xlu0 %2599
        %2601 = vrot.lane.b32.xlu0 %v645, 112
        %v2602 = vpop.permute.xlu0 %2601
        %v2606 = vsel %vm957, %v2361, 0
        %2608 = vmatprep.subr.mxu0 0.0
        %2609 = vmatpush1.msra.mxu0 0.0
        %2610 = vmatprep.subr.mxu0 0.0
        %2611 = vmatpush1.msra.mxu0 0.0
        %2612 = vmatprep.subr.mxu0 0.0
        %2613 = vmatpush1.msra.mxu0 0.0
        %2614 = vmatprep.subr.mxu0 0.0
        %2615 = vmatpush1.msra.mxu0 0.0
        %2616 = vmatprep.subr.mxu0 0.0
        %2617 = vmatpush1.msra.mxu0 0.0
        %2618 = vmatprep.subr.mxu0 0.0
        %2619 = vmatpush1.msra.mxu0 0.0
        %2620 = vmatprep.subr.mxu0 0.0
        %2621 = vmatpush1.msra.mxu0 0.0
        %2622 = vmatprep.subr.mxu0 0.0
        %2623 = vmatpush1.msra.mxu0 0.0
        %2624 = vmatprep.subr.mxu0 0.0
        %2625 = vmatpush1.msra.mxu0 0.0
        %2626 = vmatprep.subr.mxu0 0.0
        %2627 = vmatpush1.msra.mxu0 0.0
        %2628 = vmatprep.subr.mxu0 0.0
        %2629 = vmatpush1.msra.mxu0 0.0
        %2630 = vmatprep.subr.mxu0 0.0
        %2631 = vmatpush1.msra.mxu0 0.0
        %2632 = vmatprep.subr.mxu0 0.0
        %2633 = vmatpush1.msra.mxu0 0.0
        %2634 = vmatprep.subr.mxu0 0.0
        %2635 = vmatpush1.msra.mxu0 0.0
        %2636 = vmatprep.subr.mxu0 0.0
        %2637 = vmatpush1.msra.mxu0 %v2602
        %2638 = vmatprep.subr.mxu0 0.0
        %2639 = vmatpush1.msra.mxu0 %v2600
        %2640 = vmatprep.subr.mxu0 0.0
        %2641 = vmatpush2.msra.mxu0 0.0
        %2642 = vmatprep.subr.mxu0 0.0
        %2643 = vmatpush2.msra.mxu0 0.0
        %2644 = vmatprep.subr.mxu0 0.0
        %2645 = vmatpush2.msra.mxu0 0.0
        %2646 = vmatprep.subr.mxu0 0.0
        %2647 = vmatpush2.msra.mxu0 0.0
        %2648 = vmatprep.subr.mxu0 0.0
        %2649 = vmatpush2.msra.mxu0 0.0
        %2650 = vmatprep.subr.mxu0 0.0
        %2651 = vmatpush2.msra.mxu0 0.0
        %2652 = vmatprep.subr.mxu0 0.0
        %2653 = vmatpush2.msra.mxu0 0.0
        %2654 = vmatprep.subr.mxu0 0.0
        %2655 = vmatpush2.msra.mxu0 0.0
        %2656 = vmatprep.subr.mxu0 0.0
        %2657 = vmatpush2.msra.mxu0 0.0
        %2658 = vmatprep.subr.mxu0 0.0
        %2659 = vmatpush2.msra.mxu0 0.0
        %2660 = vmatprep.subr.mxu0 0.0
        %2661 = vmatpush2.msra.mxu0 0.0
        %2662 = vmatprep.subr.mxu0 0.0
        %2663 = vmatpush2.msra.mxu0 0.0
        %2664 = vmatprep.subr.mxu0 0.0
        %2665 = vmatpush2.msra.mxu0 0.0
        %2666 = vmatprep.subr.mxu0 0.0
        %2667 = vmatpush2.msra.mxu0 0.0
        %2668 = vmatprep.subr.mxu0 0.0
        %2669 = vmatpush2.msra.mxu0 0.0
        %2670 = vmatprep.subr.mxu0 0.0
        %2671 = vmatpush2.msra.mxu0 0.0
        %2672 = vmatprep.mubr.f32.mxu0 0.0
        %2673 = vmatmul.mubr.f32.gmra.mxu0 %v2606
        %v2674 = vpop.f32.mrf.mxu0
        %v2675 = vadd.f32 0.0, %v2674
        %v2676 = vpop.f32.mrf.mxu0
        %2677 = vdwg.mxu0
        %2682 = vrot.lane.b32.xlu0 %v2438, 16
        %v2683 = vpop.permute.xlu0 %2682
        %2684 = vrot.lane.b32.xlu0 %v2517, 16
        %v2685 = vpop.permute.xlu0 %2684
        %2686 = vrot.lane.b32.xlu0 %v2596, 16
        %v2687 = vpop.permute.xlu0 %2686
        %2688 = vrot.lane.b32.xlu0 %v2675, 16
        %v2689 = vpop.permute.xlu0 %2688
        %v2694 = vadd.f32 %v648, %v2683
        %v2695 = vadd.f32 %v648, %v2685
        %v2696 = vadd.f32 %v648, %v2687
        %v2697 = vadd.f32 %v648, %v2689
        %2698 = vrot.lane.b32.xlu0 %v648, 104
        %v2699 = vpop.permute.xlu0 %2698
        %2700 = vrot.lane.b32.xlu0 %v494, 104
        %v2701 = vpop.permute.xlu0 %2700
        %2702 = vrot.lane.b32.xlu0 %v499, 104
        %v2703 = vpop.permute.xlu0 %2702
        %v2704 = vsel %vm649, %v2699, 0
        %v2706 = vsel %vm649, %v2701, 0
        %v2708 = vsel %vm649, %v2703, 0
        %2710 = vmatprep.subr.mxu0 0.0
        %2711 = vmatpush1.xpose.msra.mxu0 0.0
        %2712 = vmatprep.subr.mxu0 0.0
        %2713 = vmatpush1.xpose.msra.mxu0 0.0
        %2714 = vmatprep.subr.mxu0 0.0
        %2715 = vmatpush1.xpose.msra.mxu0 0.0
        %2716 = vmatprep.subr.mxu0 0.0
        %2717 = vmatpush1.xpose.msra.mxu0 0.0
        %2718 = vmatprep.subr.mxu0 0.0
        %2719 = vmatpush1.xpose.msra.mxu0 0.0
        %2720 = vmatprep.subr.mxu0 0.0
        %2721 = vmatpush1.xpose.msra.mxu0 0.0
        %2722 = vmatprep.subr.mxu0 0.0
        %2723 = vmatpush1.xpose.msra.mxu0 0.0
        %2724 = vmatprep.subr.mxu0 0.0
        %2725 = vmatpush1.xpose.msra.mxu0 0.0
        %2726 = vmatprep.subr.mxu0 0.0
        %2727 = vmatpush1.xpose.msra.mxu0 0.0
        %2728 = vmatprep.subr.mxu0 0.0
        %2729 = vmatpush1.xpose.msra.mxu0 0.0
        %2730 = vmatprep.subr.mxu0 0.0
        %2731 = vmatpush1.xpose.msra.mxu0 0.0
        %2732 = vmatprep.subr.mxu0 0.0
        %2733 = vmatpush1.xpose.msra.mxu0 0.0
        %2734 = vmatprep.subr.mxu0 0.0
        %2735 = vmatpush1.xpose.msra.mxu0 0.0
        %2736 = vmatprep.subr.mxu0 0.0
        %2737 = vmatpush1.xpose.msra.mxu0 0.0
        %2738 = vmatprep.subr.mxu0 0.0
        %2739 = vmatpush1.xpose.msra.mxu0 %v2708
        %2740 = vmatprep.subr.mxu0 0.0
        %2741 = vmatpush1.xpose.msra.mxu0 %v2706
        %2742 = vmatprep.subr.mxu0 0.0
        %2743 = vmatpush2.xpose.msra.mxu0 0.0
        %2744 = vmatprep.subr.mxu0 0.0
        %2745 = vmatpush2.xpose.msra.mxu0 0.0
        %2746 = vmatprep.subr.mxu0 0.0
        %2747 = vmatpush2.xpose.msra.mxu0 0.0
        %2748 = vmatprep.subr.mxu0 0.0
        %2749 = vmatpush2.xpose.msra.mxu0 0.0
        %2750 = vmatprep.subr.mxu0 0.0
        %2751 = vmatpush2.xpose.msra.mxu0 0.0
        %2752 = vmatprep.subr.mxu0 0.0
        %2753 = vmatpush2.xpose.msra.mxu0 0.0
        %2754 = vmatprep.subr.mxu0 0.0
        %2755 = vmatpush2.xpose.msra.mxu0 0.0
        %2756 = vmatprep.subr.mxu0 0.0
        %2757 = vmatpush2.xpose.msra.mxu0 0.0
        %2758 = vmatprep.subr.mxu0 0.0
        %2759 = vmatpush2.xpose.msra.mxu0 0.0
        %2760 = vmatprep.subr.mxu0 0.0
        %2761 = vmatpush2.xpose.msra.mxu0 0.0
        %2762 = vmatprep.subr.mxu0 0.0
        %2763 = vmatpush2.xpose.msra.mxu0 0.0
        %2764 = vmatprep.subr.mxu0 0.0
        %2765 = vmatpush2.xpose.msra.mxu0 0.0
        %2766 = vmatprep.subr.mxu0 0.0
        %2767 = vmatpush2.xpose.msra.mxu0 0.0
        %2768 = vmatprep.subr.mxu0 0.0
        %2769 = vmatpush2.xpose.msra.mxu0 0.0
        %2770 = vmatprep.subr.mxu0 0.0
        %2771 = vmatpush2.xpose.msra.mxu0 0.0
        %2772 = vmatprep.subr.mxu0 0.0
        %2773 = vmatpush2.xpose.msra.mxu0 0.0
        %2774 = vmatprep.mubr.f32.mxu0 0.0
        %2775 = vmatmul.mubr.f32.gmra.mxu0 %v2704
        %v2776 = vpop.f32.mrf.mxu0
        %v2777 = vadd.f32 0.0, %v2776
        %v2778 = vpop.f32.mrf.mxu0
        %2779 = vdwg.mxu0
        %2780 = vrot.lane.b32.xlu0 %v504, 104
        %v2781 = vpop.permute.xlu0 %2780
        %2782 = vrot.lane.b32.xlu0 %v509, 104
        %v2783 = vpop.permute.xlu0 %2782
        %v2784 = vsel %vm649, %v2781, 0
        %v2786 = vsel %vm649, %v2783, 0
        %2788 = vmatprep.subr.mxu0 0.0
        %2789 = vmatpush1.xpose.msra.mxu0 0.0
        %2790 = vmatprep.subr.mxu0 0.0
        %2791 = vmatpush1.xpose.msra.mxu0 0.0
        %2792 = vmatprep.subr.mxu0 0.0
        %2793 = vmatpush1.xpose.msra.mxu0 0.0
        %2794 = vmatprep.subr.mxu0 0.0
        %2795 = vmatpush1.xpose.msra.mxu0 0.0
        %2796 = vmatprep.subr.mxu0 0.0
        %2797 = vmatpush1.xpose.msra.mxu0 0.0
        %2798 = vmatprep.subr.mxu0 0.0
        %2799 = vmatpush1.xpose.msra.mxu0 0.0
        %2800 = vmatprep.subr.mxu0 0.0
        %2801 = vmatpush1.xpose.msra.mxu0 0.0
        %2802 = vmatprep.subr.mxu0 0.0
        %2803 = vmatpush1.xpose.msra.mxu0 0.0
        %2804 = vmatprep.subr.mxu0 0.0
        %2805 = vmatpush1.xpose.msra.mxu0 0.0
        %2806 = vmatprep.subr.mxu0 0.0
        %2807 = vmatpush1.xpose.msra.mxu0 0.0
        %2808 = vmatprep.subr.mxu0 0.0
        %2809 = vmatpush1.xpose.msra.mxu0 0.0
        %2810 = vmatprep.subr.mxu0 0.0
        %2811 = vmatpush1.xpose.msra.mxu0 0.0
        %2812 = vmatprep.subr.mxu0 0.0
        %2813 = vmatpush1.xpose.msra.mxu0 0.0
        %2814 = vmatprep.subr.mxu0 0.0
        %2815 = vmatpush1.xpose.msra.mxu0 0.0
        %2816 = vmatprep.subr.mxu0 0.0
        %2817 = vmatpush1.xpose.msra.mxu0 %v2786
        %2818 = vmatprep.subr.mxu0 0.0
        %2819 = vmatpush1.xpose.msra.mxu0 %v2784
        %2820 = vmatprep.subr.mxu0 0.0
        %2821 = vmatpush2.xpose.msra.mxu0 0.0
        %2822 = vmatprep.subr.mxu0 0.0
        %2823 = vmatpush2.xpose.msra.mxu0 0.0
        %2824 = vmatprep.subr.mxu0 0.0
        %2825 = vmatpush2.xpose.msra.mxu0 0.0
        %2826 = vmatprep.subr.mxu0 0.0
        %2827 = vmatpush2.xpose.msra.mxu0 0.0
        %2828 = vmatprep.subr.mxu0 0.0
        %2829 = vmatpush2.xpose.msra.mxu0 0.0
        %2830 = vmatprep.subr.mxu0 0.0
        %2831 = vmatpush2.xpose.msra.mxu0 0.0
        %2832 = vmatprep.subr.mxu0 0.0
        %2833 = vmatpush2.xpose.msra.mxu0 0.0
        %2834 = vmatprep.subr.mxu0 0.0
        %2835 = vmatpush2.xpose.msra.mxu0 0.0
        %2836 = vmatprep.subr.mxu0 0.0
        %2837 = vmatpush2.xpose.msra.mxu0 0.0
        %2838 = vmatprep.subr.mxu0 0.0
        %2839 = vmatpush2.xpose.msra.mxu0 0.0
        %2840 = vmatprep.subr.mxu0 0.0
        %2841 = vmatpush2.xpose.msra.mxu0 0.0
        %2842 = vmatprep.subr.mxu0 0.0
        %2843 = vmatpush2.xpose.msra.mxu0 0.0
        %2844 = vmatprep.subr.mxu0 0.0
        %2845 = vmatpush2.xpose.msra.mxu0 0.0
        %2846 = vmatprep.subr.mxu0 0.0
        %2847 = vmatpush2.xpose.msra.mxu0 0.0
        %2848 = vmatprep.subr.mxu0 0.0
        %2849 = vmatpush2.xpose.msra.mxu0 0.0
        %2850 = vmatprep.subr.mxu0 0.0
        %2851 = vmatpush2.xpose.msra.mxu0 0.0
        %2852 = vmatprep.mubr.f32.mxu0 0.0
        %2853 = vmatmul.mubr.f32.gmra.mxu0 %v2704
        %v2854 = vpop.f32.mrf.mxu0
        %v2855 = vadd.f32 0.0, %v2854
        %v2856 = vpop.f32.mrf.mxu0
        %2857 = vdwg.mxu0
        %2858 = vrot.lane.b32.xlu0 %v514, 104
        %v2859 = vpop.permute.xlu0 %2858
        %2860 = vrot.lane.b32.xlu0 %v519, 104
        %v2861 = vpop.permute.xlu0 %2860
        %v2862 = vsel %vm649, %v2859, 0
        %v2864 = vsel %vm649, %v2861, 0
        %2866 = vmatprep.subr.mxu0 0.0
        %2867 = vmatpush1.xpose.msra.mxu0 0.0
        %2868 = vmatprep.subr.mxu0 0.0
        %2869 = vmatpush1.xpose.msra.mxu0 0.0
        %2870 = vmatprep.subr.mxu0 0.0
        %2871 = vmatpush1.xpose.msra.mxu0 0.0
        %2872 = vmatprep.subr.mxu0 0.0
        %2873 = vmatpush1.xpose.msra.mxu0 0.0
        %2874 = vmatprep.subr.mxu0 0.0
        %2875 = vmatpush1.xpose.msra.mxu0 0.0
        %2876 = vmatprep.subr.mxu0 0.0
        %2877 = vmatpush1.xpose.msra.mxu0 0.0
        %2878 = vmatprep.subr.mxu0 0.0
        %2879 = vmatpush1.xpose.msra.mxu0 0.0
        %2880 = vmatprep.subr.mxu0 0.0
        %2881 = vmatpush1.xpose.msra.mxu0 0.0
        %2882 = vmatprep.subr.mxu0 0.0
        %2883 = vmatpush1.xpose.msra.mxu0 0.0
        %2884 = vmatprep.subr.mxu0 0.0
        %2885 = vmatpush1.xpose.msra.mxu0 0.0
        %2886 = vmatprep.subr.mxu0 0.0
        %2887 = vmatpush1.xpose.msra.mxu0 0.0
        %2888 = vmatprep.subr.mxu0 0.0
        %2889 = vmatpush1.xpose.msra.mxu0 0.0
        %2890 = vmatprep.subr.mxu0 0.0
        %2891 = vmatpush1.xpose.msra.mxu0 0.0
        %2892 = vmatprep.subr.mxu0 0.0
        %2893 = vmatpush1.xpose.msra.mxu0 0.0
        %2894 = vmatprep.subr.mxu0 0.0
        %2895 = vmatpush1.xpose.msra.mxu0 %v2864
        %2896 = vmatprep.subr.mxu0 0.0
        %2897 = vmatpush1.xpose.msra.mxu0 %v2862
        %2898 = vmatprep.subr.mxu0 0.0
        %2899 = vmatpush2.xpose.msra.mxu0 0.0
        %2900 = vmatprep.subr.mxu0 0.0
        %2901 = vmatpush2.xpose.msra.mxu0 0.0
        %2902 = vmatprep.subr.mxu0 0.0
        %2903 = vmatpush2.xpose.msra.mxu0 0.0
        %2904 = vmatprep.subr.mxu0 0.0
        %2905 = vmatpush2.xpose.msra.mxu0 0.0
        %2906 = vmatprep.subr.mxu0 0.0
        %2907 = vmatpush2.xpose.msra.mxu0 0.0
        %2908 = vmatprep.subr.mxu0 0.0
        %2909 = vmatpush2.xpose.msra.mxu0 0.0
        %2910 = vmatprep.subr.mxu0 0.0
        %2911 = vmatpush2.xpose.msra.mxu0 0.0
        %2912 = vmatprep.subr.mxu0 0.0
        %2913 = vmatpush2.xpose.msra.mxu0 0.0
        %2914 = vmatprep.subr.mxu0 0.0
        %2915 = vmatpush2.xpose.msra.mxu0 0.0
        %2916 = vmatprep.subr.mxu0 0.0
        %2917 = vmatpush2.xpose.msra.mxu0 0.0
        %2918 = vmatprep.subr.mxu0 0.0
        %2919 = vmatpush2.xpose.msra.mxu0 0.0
        %2920 = vmatprep.subr.mxu0 0.0
        %2921 = vmatpush2.xpose.msra.mxu0 0.0
        %2922 = vmatprep.subr.mxu0 0.0
        %2923 = vmatpush2.xpose.msra.mxu0 0.0
        %2924 = vmatprep.subr.mxu0 0.0
        %2925 = vmatpush2.xpose.msra.mxu0 0.0
        %2926 = vmatprep.subr.mxu0 0.0
        %2927 = vmatpush2.xpose.msra.mxu0 0.0
        %2928 = vmatprep.subr.mxu0 0.0
        %2929 = vmatpush2.xpose.msra.mxu0 0.0
        %2930 = vmatprep.mubr.f32.mxu0 0.0
        %2931 = vmatmul.mubr.f32.gmra.mxu0 %v2704
        %v2932 = vpop.f32.mrf.mxu0
        %v2933 = vadd.f32 0.0, %v2932
        %v2934 = vpop.f32.mrf.mxu0
        %2935 = vdwg.mxu0
        %2936 = vrot.lane.b32.xlu0 %v524, 104
        %v2937 = vpop.permute.xlu0 %2936
        %2938 = vrot.lane.b32.xlu0 %v529, 104
        %v2939 = vpop.permute.xlu0 %2938
        %v2940 = vsel %vm649, %v2937, 0
        %v2942 = vsel %vm649, %v2939, 0
        %2944 = vmatprep.subr.mxu0 0.0
        %2945 = vmatpush1.xpose.msra.mxu0 0.0
        %2946 = vmatprep.subr.mxu0 0.0
        %2947 = vmatpush1.xpose.msra.mxu0 0.0
        %2948 = vmatprep.subr.mxu0 0.0
        %2949 = vmatpush1.xpose.msra.mxu0 0.0
        %2950 = vmatprep.subr.mxu0 0.0
        %2951 = vmatpush1.xpose.msra.mxu0 0.0
        %2952 = vmatprep.subr.mxu0 0.0
        %2953 = vmatpush1.xpose.msra.mxu0 0.0
        %2954 = vmatprep.subr.mxu0 0.0
        %2955 = vmatpush1.xpose.msra.mxu0 0.0
        %2956 = vmatprep.subr.mxu0 0.0
        %2957 = vmatpush1.xpose.msra.mxu0 0.0
        %2958 = vmatprep.subr.mxu0 0.0
        %2959 = vmatpush1.xpose.msra.mxu0 0.0
        %2960 = vmatprep.subr.mxu0 0.0
        %2961 = vmatpush1.xpose.msra.mxu0 0.0
        %2962 = vmatprep.subr.mxu0 0.0
        %2963 = vmatpush1.xpose.msra.mxu0 0.0
        %2964 = vmatprep.subr.mxu0 0.0
        %2965 = vmatpush1.xpose.msra.mxu0 0.0
        %2966 = vmatprep.subr.mxu0 0.0
        %2967 = vmatpush1.xpose.msra.mxu0 0.0
        %2968 = vmatprep.subr.mxu0 0.0
        %2969 = vmatpush1.xpose.msra.mxu0 0.0
        %2970 = vmatprep.subr.mxu0 0.0
        %2971 = vmatpush1.xpose.msra.mxu0 0.0
        %2972 = vmatprep.subr.mxu0 0.0
        %2973 = vmatpush1.xpose.msra.mxu0 %v2942
        %2974 = vmatprep.subr.mxu0 0.0
        %2975 = vmatpush1.xpose.msra.mxu0 %v2940
        %2976 = vmatprep.subr.mxu0 0.0
        %2977 = vmatpush2.xpose.msra.mxu0 0.0
        %2978 = vmatprep.subr.mxu0 0.0
        %2979 = vmatpush2.xpose.msra.mxu0 0.0
        %2980 = vmatprep.subr.mxu0 0.0
        %2981 = vmatpush2.xpose.msra.mxu0 0.0
        %2982 = vmatprep.subr.mxu0 0.0
        %2983 = vmatpush2.xpose.msra.mxu0 0.0
        %2984 = vmatprep.subr.mxu0 0.0
        %2985 = vmatpush2.xpose.msra.mxu0 0.0
        %2986 = vmatprep.subr.mxu0 0.0
        %2987 = vmatpush2.xpose.msra.mxu0 0.0
        %2988 = vmatprep.subr.mxu0 0.0
        %2989 = vmatpush2.xpose.msra.mxu0 0.0
        %2990 = vmatprep.subr.mxu0 0.0
        %2991 = vmatpush2.xpose.msra.mxu0 0.0
        %2992 = vmatprep.subr.mxu0 0.0
        %2993 = vmatpush2.xpose.msra.mxu0 0.0
        %2994 = vmatprep.subr.mxu0 0.0
        %2995 = vmatpush2.xpose.msra.mxu0 0.0
        %2996 = vmatprep.subr.mxu0 0.0
        %2997 = vmatpush2.xpose.msra.mxu0 0.0
        %2998 = vmatprep.subr.mxu0 0.0
        %2999 = vmatpush2.xpose.msra.mxu0 0.0
        %3000 = vmatprep.subr.mxu0 0.0
        %3001 = vmatpush2.xpose.msra.mxu0 0.0
        %3002 = vmatprep.subr.mxu0 0.0
        %3003 = vmatpush2.xpose.msra.mxu0 0.0
        %3004 = vmatprep.subr.mxu0 0.0
        %3005 = vmatpush2.xpose.msra.mxu0 0.0
        %3006 = vmatprep.subr.mxu0 0.0
        %3007 = vmatpush2.xpose.msra.mxu0 0.0
        %3008 = vmatprep.mubr.f32.mxu0 0.0
        %3009 = vmatmul.mubr.f32.gmra.mxu0 %v2704
        %v3010 = vpop.f32.mrf.mxu0
        %v3011 = vadd.f32 0.0, %v3010
        %v3012 = vpop.f32.mrf.mxu0
        %3013 = vdwg.mxu0
        %v3014 = vsel %vm957, %v2777, -inf
        %3015 = vmax.xlane.f32.xlu0 %v3014
        %v3016 = vpop.xlane.xlu0 %3015
        %v3017 = vsel %vm957, %v2855, -inf
        %3018 = vmax.xlane.f32.xlu0 %v3017
        %v3019 = vpop.xlane.xlu0 %3018
        %v3020 = vsel %vm957, %v2933, -inf
        %3021 = vmax.xlane.f32.xlu0 %v3020
        %v3022 = vpop.xlane.xlu0 %3021
        %v3023 = vsel %vm957, %v3011, -inf
        %3024 = vmax.xlane.f32.xlu0 %v3023
        %v3025 = vpop.xlane.xlu0 %3024
        %v3026 = vsub.f32 %v2777, %v3016
        %v3027 = vsub.f32 %v2855, %v3019
        %v3028 = vsub.f32 %v2933, %v3022
        %v3029 = vsub.f32 %v3011, %v3025
        %v3030 = vmul.f32 %v3026, 1.442695
        %v3031 = vpow.pop %v3030
        %v3032 = vmul.f32 %v3027, 1.442695
        %v3033 = vpow.pop %v3032
        %v3034 = vmul.f32 %v3028, 1.442695
        %v3035 = vpow.pop %v3034
        %v3036 = vmul.f32 %v3029, 1.442695
        %v3037 = vpow.pop %v3036
        %v3038 = vsel %vm957, %v3031, 0.0
        %3039 = vadd.xlane.f32.xlu0 %v3038
        %v3040 = vpop.xlane.xlu0 %3039
        %v3041 = vsel %vm957, %v3033, 0.0
        %3042 = vadd.xlane.f32.xlu0 %v3041
        %v3043 = vpop.xlane.xlu0 %3042
        %v3044 = vsel %vm957, %v3035, 0.0
        %3045 = vadd.xlane.f32.xlu0 %v3044
        %v3046 = vpop.xlane.xlu0 %3045
        %v3047 = vsel %vm957, %v3037, 0.0
        %3048 = vadd.xlane.f32.xlu0 %v3047
        %v3049 = vpop.xlane.xlu0 %3048
        %v3050 = vrcp.pop %v3040
        %v3051 = vrcp.pop %v3043
        %v3052 = vrcp.pop %v3046
        %v3053 = vrcp.pop %v3049
        %v3054 = vmul.f32 %v3031, %v3050
        %v3055 = vmul.f32 %v3033, %v3051
        %v3056 = vmul.f32 %v3035, %v3052
        %v3057 = vmul.f32 %v3037, %v3053
        %3058 = vrot.lane.b32.xlu0 %v610, 104
        %v3059 = vpop.permute.xlu0 %3058
        %3060 = vrot.lane.b32.xlu0 %v615, 104
        %v3061 = vpop.permute.xlu0 %3060
        %v3065 = vsel %vm957, %v3054, 0
        %3067 = vmatprep.subr.mxu0 0.0
        %3068 = vmatpush1.msra.mxu0 0.0
        %3069 = vmatprep.subr.mxu0 0.0
        %3070 = vmatpush1.msra.mxu0 0.0
        %3071 = vmatprep.subr.mxu0 0.0
        %3072 = vmatpush1.msra.mxu0 0.0
        %3073 = vmatprep.subr.mxu0 0.0
        %3074 = vmatpush1.msra.mxu0 0.0
        %3075 = vmatprep.subr.mxu0 0.0
        %3076 = vmatpush1.msra.mxu0 0.0
        %3077 = vmatprep.subr.mxu0 0.0
        %3078 = vmatpush1.msra.mxu0 0.0
        %3079 = vmatprep.subr.mxu0 0.0
        %3080 = vmatpush1.msra.mxu0 0.0
        %3081 = vmatprep.subr.mxu0 0.0
        %3082 = vmatpush1.msra.mxu0 0.0
        %3083 = vmatprep.subr.mxu0 0.0
        %3084 = vmatpush1.msra.mxu0 0.0
        %3085 = vmatprep.subr.mxu0 0.0
        %3086 = vmatpush1.msra.mxu0 0.0
        %3087 = vmatprep.subr.mxu0 0.0
        %3088 = vmatpush1.msra.mxu0 0.0
        %3089 = vmatprep.subr.mxu0 0.0
        %3090 = vmatpush1.msra.mxu0 0.0
        %3091 = vmatprep.subr.mxu0 0.0
        %3092 = vmatpush1.msra.mxu0 0.0
        %3093 = vmatprep.subr.mxu0 0.0
        %3094 = vmatpush1.msra.mxu0 0.0
        %3095 = vmatprep.subr.mxu0 0.0
        %3096 = vmatpush1.msra.mxu0 %v3061
        %3097 = vmatprep.subr.mxu0 0.0
        %3098 = vmatpush1.msra.mxu0 %v3059
        %3099 = vmatprep.subr.mxu0 0.0
        %3100 = vmatpush2.msra.mxu0 0.0
        %3101 = vmatprep.subr.mxu0 0.0
        %3102 = vmatpush2.msra.mxu0 0.0
        %3103 = vmatprep.subr.mxu0 0.0
        %3104 = vmatpush2.msra.mxu0 0.0
        %3105 = vmatprep.subr.mxu0 0.0
        %3106 = vmatpush2.msra.mxu0 0.0
        %3107 = vmatprep.subr.mxu0 0.0
        %3108 = vmatpush2.msra.mxu0 0.0
        %3109 = vmatprep.subr.mxu0 0.0
        %3110 = vmatpush2.msra.mxu0 0.0
        %3111 = vmatprep.subr.mxu0 0.0
        %3112 = vmatpush2.msra.mxu0 0.0
        %3113 = vmatprep.subr.mxu0 0.0
        %3114 = vmatpush2.msra.mxu0 0.0
        %3115 = vmatprep.subr.mxu0 0.0
        %3116 = vmatpush2.msra.mxu0 0.0
        %3117 = vmatprep.subr.mxu0 0.0
        %3118 = vmatpush2.msra.mxu0 0.0
        %3119 = vmatprep.subr.mxu0 0.0
        %3120 = vmatpush2.msra.mxu0 0.0
        %3121 = vmatprep.subr.mxu0 0.0
        %3122 = vmatpush2.msra.mxu0 0.0
        %3123 = vmatprep.subr.mxu0 0.0
        %3124 = vmatpush2.msra.mxu0 0.0
        %3125 = vmatprep.subr.mxu0 0.0
        %3126 = vmatpush2.msra.mxu0 0.0
        %3127 = vmatprep.subr.mxu0 0.0
        %3128 = vmatpush2.msra.mxu0 0.0
        %3129 = vmatprep.subr.mxu0 0.0
        %3130 = vmatpush2.msra.mxu0 0.0
        %3131 = vmatprep.mubr.f32.mxu0 0.0
        %3132 = vmatmul.mubr.f32.gmra.mxu0 %v3065
        %v3133 = vpop.f32.mrf.mxu0
        %v3134 = vadd.f32 0.0, %v3133
        %v3135 = vpop.f32.mrf.mxu0
        %3136 = vdwg.mxu0
        %3137 = vrot.lane.b32.xlu0 %v620, 104
        %v3138 = vpop.permute.xlu0 %3137
        %3139 = vrot.lane.b32.xlu0 %v625, 104
        %v3140 = vpop.permute.xlu0 %3139
        %v3144 = vsel %vm957, %v3055, 0
        %3146 = vmatprep.subr.mxu0 0.0
        %3147 = vmatpush1.msra.mxu0 0.0
        %3148 = vmatprep.subr.mxu0 0.0
        %3149 = vmatpush1.msra.mxu0 0.0
        %3150 = vmatprep.subr.mxu0 0.0
        %3151 = vmatpush1.msra.mxu0 0.0
        %3152 = vmatprep.subr.mxu0 0.0
        %3153 = vmatpush1.msra.mxu0 0.0
        %3154 = vmatprep.subr.mxu0 0.0
        %3155 = vmatpush1.msra.mxu0 0.0
        %3156 = vmatprep.subr.mxu0 0.0
        %3157 = vmatpush1.msra.mxu0 0.0
        %3158 = vmatprep.subr.mxu0 0.0
        %3159 = vmatpush1.msra.mxu0 0.0
        %3160 = vmatprep.subr.mxu0 0.0
        %3161 = vmatpush1.msra.mxu0 0.0
        %3162 = vmatprep.subr.mxu0 0.0
        %3163 = vmatpush1.msra.mxu0 0.0
        %3164 = vmatprep.subr.mxu0 0.0
        %3165 = vmatpush1.msra.mxu0 0.0
        %3166 = vmatprep.subr.mxu0 0.0
        %3167 = vmatpush1.msra.mxu0 0.0
        %3168 = vmatprep.subr.mxu0 0.0
        %3169 = vmatpush1.msra.mxu0 0.0
        %3170 = vmatprep.subr.mxu0 0.0
        %3171 = vmatpush1.msra.mxu0 0.0
        %3172 = vmatprep.subr.mxu0 0.0
        %3173 = vmatpush1.msra.mxu0 0.0
        %3174 = vmatprep.subr.mxu0 0.0
        %3175 = vmatpush1.msra.mxu0 %v3140
        %3176 = vmatprep.subr.mxu0 0.0
        %3177 = vmatpush1.msra.mxu0 %v3138
        %3178 = vmatprep.subr.mxu0 0.0
        %3179 = vmatpush2.msra.mxu0 0.0
        %3180 = vmatprep.subr.mxu0 0.0
        %3181 = vmatpush2.msra.mxu0 0.0
        %3182 = vmatprep.subr.mxu0 0.0
        %3183 = vmatpush2.msra.mxu0 0.0
        %3184 = vmatprep.subr.mxu0 0.0
        %3185 = vmatpush2.msra.mxu0 0.0
        %3186 = vmatprep.subr.mxu0 0.0
        %3187 = vmatpush2.msra.mxu0 0.0
        %3188 = vmatprep.subr.mxu0 0.0
        %3189 = vmatpush2.msra.mxu0 0.0
        %3190 = vmatprep.subr.mxu0 0.0
        %3191 = vmatpush2.msra.mxu0 0.0
        %3192 = vmatprep.subr.mxu0 0.0
        %3193 = vmatpush2.msra.mxu0 0.0
        %3194 = vmatprep.subr.mxu0 0.0
        %3195 = vmatpush2.msra.mxu0 0.0
        %3196 = vmatprep.subr.mxu0 0.0
        %3197 = vmatpush2.msra.mxu0 0.0
        %3198 = vmatprep.subr.mxu0 0.0
        %3199 = vmatpush2.msra.mxu0 0.0
        %3200 = vmatprep.subr.mxu0 0.0
        %3201 = vmatpush2.msra.mxu0 0.0
        %3202 = vmatprep.subr.mxu0 0.0
        %3203 = vmatpush2.msra.mxu0 0.0
        %3204 = vmatprep.subr.mxu0 0.0
        %3205 = vmatpush2.msra.mxu0 0.0
        %3206 = vmatprep.subr.mxu0 0.0
        %3207 = vmatpush2.msra.mxu0 0.0
        %3208 = vmatprep.subr.mxu0 0.0
        %3209 = vmatpush2.msra.mxu0 0.0
        %3210 = vmatprep.mubr.f32.mxu0 0.0
        %3211 = vmatmul.mubr.f32.gmra.mxu0 %v3144
        %v3212 = vpop.f32.mrf.mxu0
        %v3213 = vadd.f32 0.0, %v3212
        %v3214 = vpop.f32.mrf.mxu0
        %3215 = vdwg.mxu0
        %3216 = vrot.lane.b32.xlu0 %v630, 104
        %v3217 = vpop.permute.xlu0 %3216
        %3218 = vrot.lane.b32.xlu0 %v635, 104
        %v3219 = vpop.permute.xlu0 %3218
        %v3223 = vsel %vm957, %v3056, 0
        %3225 = vmatprep.subr.mxu0 0.0
        %3226 = vmatpush1.msra.mxu0 0.0
        %3227 = vmatprep.subr.mxu0 0.0
        %3228 = vmatpush1.msra.mxu0 0.0
        %3229 = vmatprep.subr.mxu0 0.0
        %3230 = vmatpush1.msra.mxu0 0.0
        %3231 = vmatprep.subr.mxu0 0.0
        %3232 = vmatpush1.msra.mxu0 0.0
        %3233 = vmatprep.subr.mxu0 0.0
        %3234 = vmatpush1.msra.mxu0 0.0
        %3235 = vmatprep.subr.mxu0 0.0
        %3236 = vmatpush1.msra.mxu0 0.0
        %3237 = vmatprep.subr.mxu0 0.0
        %3238 = vmatpush1.msra.mxu0 0.0
        %3239 = vmatprep.subr.mxu0 0.0
        %3240 = vmatpush1.msra.mxu0 0.0
        %3241 = vmatprep.subr.mxu0 0.0
        %3242 = vmatpush1.msra.mxu0 0.0
        %3243 = vmatprep.subr.mxu0 0.0
        %3244 = vmatpush1.msra.mxu0 0.0
        %3245 = vmatprep.subr.mxu0 0.0
        %3246 = vmatpush1.msra.mxu0 0.0
        %3247 = vmatprep.subr.mxu0 0.0
        %3248 = vmatpush1.msra.mxu0 0.0
        %3249 = vmatprep.subr.mxu0 0.0
        %3250 = vmatpush1.msra.mxu0 0.0
        %3251 = vmatprep.subr.mxu0 0.0
        %3252 = vmatpush1.msra.mxu0 0.0
        %3253 = vmatprep.subr.mxu0 0.0
        %3254 = vmatpush1.msra.mxu0 %v3219
        %3255 = vmatprep.subr.mxu0 0.0
        %3256 = vmatpush1.msra.mxu0 %v3217
        %3257 = vmatprep.subr.mxu0 0.0
        %3258 = vmatpush2.msra.mxu0 0.0
        %3259 = vmatprep.subr.mxu0 0.0
        %3260 = vmatpush2.msra.mxu0 0.0
        %3261 = vmatprep.subr.mxu0 0.0
        %3262 = vmatpush2.msra.mxu0 0.0
        %3263 = vmatprep.subr.mxu0 0.0
        %3264 = vmatpush2.msra.mxu0 0.0
        %3265 = vmatprep.subr.mxu0 0.0
        %3266 = vmatpush2.msra.mxu0 0.0
        %3267 = vmatprep.subr.mxu0 0.0
        %3268 = vmatpush2.msra.mxu0 0.0
        %3269 = vmatprep.subr.mxu0 0.0
        %3270 = vmatpush2.msra.mxu0 0.0
        %3271 = vmatprep.subr.mxu0 0.0
        %3272 = vmatpush2.msra.mxu0 0.0
        %3273 = vmatprep.subr.mxu0 0.0
        %3274 = vmatpush2.msra.mxu0 0.0
        %3275 = vmatprep.subr.mxu0 0.0
        %3276 = vmatpush2.msra.mxu0 0.0
        %3277 = vmatprep.subr.mxu0 0.0
        %3278 = vmatpush2.msra.mxu0 0.0
        %3279 = vmatprep.subr.mxu0 0.0
        %3280 = vmatpush2.msra.mxu0 0.0
        %3281 = vmatprep.subr.mxu0 0.0
        %3282 = vmatpush2.msra.mxu0 0.0
        %3283 = vmatprep.subr.mxu0 0.0
        %3284 = vmatpush2.msra.mxu0 0.0
        %3285 = vmatprep.subr.mxu0 0.0
        %3286 = vmatpush2.msra.mxu0 0.0
        %3287 = vmatprep.subr.mxu0 0.0
        %3288 = vmatpush2.msra.mxu0 0.0
        %3289 = vmatprep.mubr.f32.mxu0 0.0
        %3290 = vmatmul.mubr.f32.gmra.mxu0 %v3223
        %v3291 = vpop.f32.mrf.mxu0
        %v3292 = vadd.f32 0.0, %v3291
        %v3293 = vpop.f32.mrf.mxu0
        %3294 = vdwg.mxu0
        %3295 = vrot.lane.b32.xlu0 %v640, 104
        %v3296 = vpop.permute.xlu0 %3295
        %3297 = vrot.lane.b32.xlu0 %v645, 104
        %v3298 = vpop.permute.xlu0 %3297
        %v3302 = vsel %vm957, %v3057, 0
        %3304 = vmatprep.subr.mxu0 0.0
        %3305 = vmatpush1.msra.mxu0 0.0
        %3306 = vmatprep.subr.mxu0 0.0
        %3307 = vmatpush1.msra.mxu0 0.0
        %3308 = vmatprep.subr.mxu0 0.0
        %3309 = vmatpush1.msra.mxu0 0.0
        %3310 = vmatprep.subr.mxu0 0.0
        %3311 = vmatpush1.msra.mxu0 0.0
        %3312 = vmatprep.subr.mxu0 0.0
        %3313 = vmatpush1.msra.mxu0 0.0
        %3314 = vmatprep.subr.mxu0 0.0
        %3315 = vmatpush1.msra.mxu0 0.0
        %3316 = vmatprep.subr.mxu0 0.0
        %3317 = vmatpush1.msra.mxu0 0.0
        %3318 = vmatprep.subr.mxu0 0.0
        %3319 = vmatpush1.msra.mxu0 0.0
        %3320 = vmatprep.subr.mxu0 0.0
        %3321 = vmatpush1.msra.mxu0 0.0
        %3322 = vmatprep.subr.mxu0 0.0
        %3323 = vmatpush1.msra.mxu0 0.0
        %3324 = vmatprep.subr.mxu0 0.0
        %3325 = vmatpush1.msra.mxu0 0.0
        %3326 = vmatprep.subr.mxu0 0.0
        %3327 = vmatpush1.msra.mxu0 0.0
        %3328 = vmatprep.subr.mxu0 0.0
        %3329 = vmatpush1.msra.mxu0 0.0
        %3330 = vmatprep.subr.mxu0 0.0
        %3331 = vmatpush1.msra.mxu0 0.0
        %3332 = vmatprep.subr.mxu0 0.0
        %3333 = vmatpush1.msra.mxu0 %v3298
        %3334 = vmatprep.subr.mxu0 0.0
        %3335 = vmatpush1.msra.mxu0 %v3296
        %3336 = vmatprep.subr.mxu0 0.0
        %3337 = vmatpush2.msra.mxu0 0.0
        %3338 = vmatprep.subr.mxu0 0.0
        %3339 = vmatpush2.msra.mxu0 0.0
        %3340 = vmatprep.subr.mxu0 0.0
        %3341 = vmatpush2.msra.mxu0 0.0
        %3342 = vmatprep.subr.mxu0 0.0
        %3343 = vmatpush2.msra.mxu0 0.0
        %3344 = vmatprep.subr.mxu0 0.0
        %3345 = vmatpush2.msra.mxu0 0.0
        %3346 = vmatprep.subr.mxu0 0.0
        %3347 = vmatpush2.msra.mxu0 0.0
        %3348 = vmatprep.subr.mxu0 0.0
        %3349 = vmatpush2.msra.mxu0 0.0
        %3350 = vmatprep.subr.mxu0 0.0
        %3351 = vmatpush2.msra.mxu0 0.0
        %3352 = vmatprep.subr.mxu0 0.0
        %3353 = vmatpush2.msra.mxu0 0.0
        %3354 = vmatprep.subr.mxu0 0.0
        %3355 = vmatpush2.msra.mxu0 0.0
        %3356 = vmatprep.subr.mxu0 0.0
        %3357 = vmatpush2.msra.mxu0 0.0
        %3358 = vmatprep.subr.mxu0 0.0
        %3359 = vmatpush2.msra.mxu0 0.0
        %3360 = vmatprep.subr.mxu0 0.0
        %3361 = vmatpush2.msra.mxu0 0.0
        %3362 = vmatprep.subr.mxu0 0.0
        %3363 = vmatpush2.msra.mxu0 0.0
        %3364 = vmatprep.subr.mxu0 0.0
        %3365 = vmatpush2.msra.mxu0 0.0
        %3366 = vmatprep.subr.mxu0 0.0
        %3367 = vmatpush2.msra.mxu0 0.0
        %3368 = vmatprep.mubr.f32.mxu0 0.0
        %3369 = vmatmul.mubr.f32.gmra.mxu0 %v3302
        %v3370 = vpop.f32.mrf.mxu0
        %v3371 = vadd.f32 0.0, %v3370
        %v3372 = vpop.f32.mrf.mxu0
        %3373 = vdwg.mxu0
        %3378 = vrot.lane.b32.xlu0 %v3134, 24
        %v3379 = vpop.permute.xlu0 %3378
        %3380 = vrot.lane.b32.xlu0 %v3213, 24
        %v3381 = vpop.permute.xlu0 %3380
        %3382 = vrot.lane.b32.xlu0 %v3292, 24
        %v3383 = vpop.permute.xlu0 %3382
        %3384 = vrot.lane.b32.xlu0 %v3371, 24
        %v3385 = vpop.permute.xlu0 %3384
        %v3390 = vadd.f32 %v648, %v3379
        %v3391 = vadd.f32 %v648, %v3381
        %v3392 = vadd.f32 %v648, %v3383
        %v3393 = vadd.f32 %v648, %v3385
        %v3394 = vsel %vm649, %v1294, %v1998
        %v3395 = vsel %vm649, %v1295, %v1999
        %v3396 = vsel %vm649, %v1296, %v2000
        %v3397 = vsel %vm649, %v1297, %v2001
        %v3398 = vsel %vm957, %v3394, %v2694
        %v3399 = vsel %vm957, %v3395, %v2695
        %v3400 = vsel %vm957, %v3396, %v2696
        %v3401 = vsel %vm957, %v3397, %v2697
        %vm3402 = vcmask 195584
        %v3403 = vsel %vm3402, %v3398, %v3390
        %v3404 = vsel %vm3402, %v3399, %v3391
        %v3405 = vsel %vm3402, %v3400, %v3392
        %v3406 = vsel %vm3402, %v3401, %v3393
        %v3407 = vld [vmem:[#allocation10] sm:$0xff]
        %v3408 = vld [vmem:[#allocation10 + $0x8] sm:$0xff]
        %v3409 = vld [vmem:[#allocation10 + $0x10] sm:$0xff]
        %v3410 = vld [vmem:[#allocation10 + $0x18] sm:$0xff]
        %v3411 = vld [vmem:[%s7] sm:$0x1]
        %v3413 = vlaneseq
        %v3414 = vshrl.u32 %v3413, 7
        %v3415 = vsub.s32 0, %v3414
        %v3416 = vrot.slane %v3411, %v3415
        %v3419 = vsel %vm402, %v3403, 0
        %v3422 = vsel %vm402, %v3404, 0
        %v3425 = vsel %vm402, %v3405, 0
        %v3428 = vsel %vm402, %v3406, 0
        %3430 = vmatprep.subr.mxu0 0.0
        %3431 = vmatpush1.msra.mxu0 0.0
        %3432 = vmatprep.subr.mxu0 0.0
        %3433 = vmatpush1.msra.mxu0 0.0
        %3434 = vmatprep.subr.mxu0 0.0
        %3435 = vmatpush1.msra.mxu0 0.0
        %3436 = vmatprep.subr.mxu0 0.0
        %3437 = vmatpush1.msra.mxu0 0.0
        %3438 = vmatprep.subr.mxu0 0.0
        %3439 = vmatpush1.msra.mxu0 0.0
        %3440 = vmatprep.subr.mxu0 0.0
        %3441 = vmatpush1.msra.mxu0 0.0
        %3442 = vmatprep.subr.mxu0 0.0
        %3443 = vmatpush1.msra.mxu0 0.0
        %3444 = vmatprep.subr.mxu0 0.0
        %3445 = vmatpush1.msra.mxu0 0.0
        %3446 = vmatprep.subr.mxu0 0.0
        %3447 = vmatpush1.msra.mxu0 0.0
        %3448 = vmatprep.subr.mxu0 0.0
        %3449 = vmatpush1.msra.mxu0 0.0
        %3450 = vmatprep.subr.mxu0 0.0
        %3451 = vmatpush1.msra.mxu0 0.0
        %3452 = vmatprep.subr.mxu0 0.0
        %3453 = vmatpush1.msra.mxu0 0.0
        %3454 = vmatprep.subr.mxu0 0.0
        %3455 = vmatpush1.msra.mxu0 %v3410
        %3456 = vmatprep.subr.mxu0 0.0
        %3457 = vmatpush1.msra.mxu0 %v3409
        %3458 = vmatprep.subr.mxu0 0.0
        %3459 = vmatpush1.msra.mxu0 %v3408
        %3460 = vmatprep.subr.mxu0 0.0
        %3461 = vmatpush1.msra.mxu0 %v3407
        %3462 = vmatprep.subr.mxu0 0.0
        %3463 = vmatpush2.msra.mxu0 0.0
        %3464 = vmatprep.subr.mxu0 0.0
        %3465 = vmatpush2.msra.mxu0 0.0
        %3466 = vmatprep.subr.mxu0 0.0
        %3467 = vmatpush2.msra.mxu0 0.0
        %3468 = vmatprep.subr.mxu0 0.0
        %3469 = vmatpush2.msra.mxu0 0.0
        %3470 = vmatprep.subr.mxu0 0.0
        %3471 = vmatpush2.msra.mxu0 0.0
        %3472 = vmatprep.subr.mxu0 0.0
        %3473 = vmatpush2.msra.mxu0 0.0
        %3474 = vmatprep.subr.mxu0 0.0
        %3475 = vmatpush2.msra.mxu0 0.0
        %3476 = vmatprep.subr.mxu0 0.0
        %3477 = vmatpush2.msra.mxu0 0.0
        %3478 = vmatprep.subr.mxu0 0.0
        %3479 = vmatpush2.msra.mxu0 0.0
        %3480 = vmatprep.subr.mxu0 0.0
        %3481 = vmatpush2.msra.mxu0 0.0
        %3482 = vmatprep.subr.mxu0 0.0
        %3483 = vmatpush2.msra.mxu0 0.0
        %3484 = vmatprep.subr.mxu0 0.0
        %3485 = vmatpush2.msra.mxu0 0.0
        %3486 = vmatprep.subr.mxu0 0.0
        %3487 = vmatpush2.msra.mxu0 0.0
        %3488 = vmatprep.subr.mxu0 0.0
        %3489 = vmatpush2.msra.mxu0 0.0
        %3490 = vmatprep.subr.mxu0 0.0
        %3491 = vmatpush2.msra.mxu0 0.0
        %3492 = vmatprep.subr.mxu0 0.0
        %3493 = vmatpush2.msra.mxu0 0.0
        %3494 = vmatprep.mubr.f32.mxu0 0.0
        %3495 = vmatmul.mubr.f32.gmra.mxu0 %v3419
        %v3496 = vpop.f32.mrf.mxu0
        %v3497 = vadd.f32 %v3416, %v3496
        %v3498 = vpop.f32.mrf.mxu0
        %3499 = vmatprep.mubr.f32.mxu0 0.0
        %3500 = vmatmul.mubr.f32.gmra.mxu0 %v3422
        %v3501 = vpop.f32.mrf.mxu0
        %v3502 = vadd.f32 %v3416, %v3501
        %v3503 = vpop.f32.mrf.mxu0
        %3504 = vmatprep.mubr.f32.mxu0 0.0
        %3505 = vmatmul.mubr.f32.gmra.mxu0 %v3425
        %v3506 = vpop.f32.mrf.mxu0
        %v3507 = vadd.f32 %v3416, %v3506
        %v3508 = vpop.f32.mrf.mxu0
        %3509 = vmatprep.mubr.f32.mxu0 0.0
        %3510 = vmatmul.mubr.f32.gmra.mxu0 %v3428
        %v3511 = vpop.f32.mrf.mxu0
        %v3512 = vadd.f32 %v3416, %v3511
        %v3513 = vpop.f32.mrf.mxu0
        %3514 = vdwg.mxu0
        %v3515 = vmax.f32 %v3497, 0.0
        %v3516 = vmax.f32 %v3502, 0.0
        %v3517 = vmax.f32 %v3507, 0.0
        %v3518 = vmax.f32 %v3512, 0.0
        %v3519 = vadd.f32 %v3403, %v3515
        %v3520 = vadd.f32 %v3404, %v3516
        %v3521 = vadd.f32 %v3405, %v3517
        %v3522 = vadd.f32 %v3406, %v3518
        %3523 = vst.msk [vmem:[%s380] sm:$0xff] %vm402, %v3519
        %3524 = vst.msk [vmem:[%s380 + $0x8] sm:$0xff] %vm402, %v3520
        %3525 = vst.msk [vmem:[%s380 + $0x10] sm:$0xff] %vm402, %v3521
        %3526 = vst.msk [vmem:[%s380 + $0x18] sm:$0xff] %vm402, %v3522
        %s3527 = sand.u32 %s208, 1
        %s3528 = scalar_lea.sflag [#allocation4], %s3527
        %s3529 = sand.u32 %s208, 1
        %s3530 = smul.addr %s3529, 32
        %s3531 = scalar_lea.vmem [#allocation11], %s3530
        // Predicated region
        $region73: #{tpu_custom_call.1} parent=51 // pred_check
          %p3532 = pneg %p218
        $region74: #{tpu_custom_call.1} parent=51 // pred_check_branch
          %3534 = sbr.rel (%p3532) target = $region76
        $region75: #{tpu_custom_call.1} parent=51 // pred_region
          %s3535 = smul.u32 4, %s27
          %s3537 = ssub.s32 512, 512
          %3538 = vsyncadd %s3528, %s3537
          %s3539 = smul.addr %s3535, 128
          %s3540 = scalar_lea.hbm %s8, %s3539
          %s3541 = sshll.u32 %s3531, 4
          %s3542 = int_to_ptr.vmem [resolvable:$true] %s3541
          %3547 = dma.vmem_to_hbm [thread:$0]  %s3542, 512, %s3540, %s3528, 128, 128, 8
        $region76: #{tpu_custom_call.1} parent=51 // pred_fallthru
          _
      $region52: #{tpu_custom_call.1} parent=5 // pred_fallthru
        _
      %p3548 = scmp.le.s32.totalorder 2, %s22
      // Predicated region
      $region77: #{tpu_custom_call.1} parent=5 // pred_check
        %p3549 = pneg %p3548
      $region78: #{tpu_custom_call.1} parent=5 // pred_check_branch
        %3551 = sbr.rel (%p3549) target = $region80
      $region79: #{tpu_custom_call.1} parent=5 // pred_region
        %s3552 = ssub.s32 %s22, 2
        // Predicated region
        $region81: #{tpu_custom_call.1} parent=79 // pred_check
          %p3553 = pneg %p224
        $region82: #{tpu_custom_call.1} parent=79 // pred_check_branch
          %3555 = sbr.rel (%p3553) target = $region84
        $region83: #{tpu_custom_call.1} parent=79 // pred_region
          %s3556 = sand.u32 %s209, 1
          %s3557 = scalar_lea.sflag [#allocation4], %s3556
          %s3558 = sand.u32 %s209, 1
          %s3559 = smul.addr %s3558, 32
          %s3560 = scalar_lea.vmem [#allocation11], %s3559
          %3561 = dma.done %s3557, 512
        $region84: #{tpu_custom_call.1} parent=79 // pred_fallthru
          _
      $region80: #{tpu_custom_call.1} parent=5 // pred_fallthru
        _
    $region6: #{tpu_custom_call.1} parent=1 // loop_footer
      %s26 = sadd.s32 1, %s22
    $region7: #{tpu_custom_call.1} parent=1 // loop_footer_branch
      %21 = sbr.rel target = $region3
    $region8: #{tpu_custom_call.1} parent=1 // loop_exit
      _
    %3562 = vsyncpa [#allocation3], 1
    %s3563 = scalar_lea.sflag [#allocation3], 1
    %3564 = vsyncpa %s3563, 1
    %3565 = vsyncpa [#allocation6], 1
    %s3566 = scalar_lea.sflag [#allocation6], 1
    %3567 = vsyncpa %s3566, 1
    %3568 = vsyncpa [#allocation9], 1
    %3569 = vsyncpa [#allocation4], 1
    %s3570 = scalar_lea.sflag [#allocation4], 1
    %3571 = vsyncpa %s3570, 1

</llo_original>
